<compile_context>
chip_gen: v7x
topology: tpu7x:2x2x1
jax: 0.10.0
libtpu: 0.0.40
codegen_flags: <defaults>
</compile_context>

<pallas_src>
import functools

import jax
import jax.numpy as jnp
from jax.experimental import pallas as pl
from jax.experimental.pallas import tpu as pltpu


def attention_block_kernel(num_heads, eps, tq,
                           x_ref, gsum_ref, bcast_ref, gamma_ref, beta_ref,
                           wqkv_ref, bqkv_ref, wproj_ref, bproj_ref,
                           o_ref, att_ref, qkv_ref):
    """One batch element per grid step. x block is (1, C, T), T on lanes."""
    C = x_ref.shape[1]
    T = x_ref.shape[2]
    ch = C // num_heads
    nq = T // tq

    x = x_ref[0].astype(jnp.float32)                                   # (C, T)

    # ---- GroupNorm(32, C): reduce over T first, then tiny matvecs ----------
    sx = jnp.sum(x, axis=1, keepdims=True)                             # (C, 1)
    sxx = jnp.sum(x * x, axis=1, keepdims=True)                        # (C, 1)
    gsum = gsum_ref[...]                                               # (G, C)
    bcast = bcast_ref[...]                                             # (C, G)
    mean = jnp.dot(bcast,
                   jnp.dot(gsum, sx, preferred_element_type=jnp.float32),
                   preferred_element_type=jnp.float32)                 # (C, 1)
    mean_sq = jnp.dot(bcast,
                      jnp.dot(gsum, sxx, preferred_element_type=jnp.float32),
                      preferred_element_type=jnp.float32)              # (C, 1)
    var = jnp.maximum(mean_sq - mean * mean, 0.0)
    xn = (x - mean) * jax.lax.rsqrt(var + eps)
    xn = xn * gamma_ref[...] + beta_ref[...]                           # (C, T)

    # ---- qkv: 1x1 conv over channels == matmul (bf16 operands, f32 acc) ----
    # Note: the q/k scale (ch**-0.25) was folded into wqkv/bqkv in the wrapper.
    qkv = jnp.dot(wqkv_ref[...], xn.astype(jnp.bfloat16),
                  preferred_element_type=jnp.float32)
    qkv = qkv + bqkv_ref[...]                                          # (3C, T)
    qkv_ref[...] = qkv.astype(jnp.bfloat16)

    # ---- QKVAttentionLegacy (per head, query-tiled) -------------------------
    # qkv channel layout per head h: [q(ch) | k(ch) | v(ch)] at offset h*3*ch.
    # TODO(synk): for num_heads >= 8 move this static unroll to a fori_loop /
    # grid axis to bound code size and vreg live ranges.
    for h in range(num_heads):
        base = h * 3 * ch
        k = qkv_ref[base + ch:base + 2 * ch, :]                        # (ch, T)
        v = qkv_ref[base + 2 * ch:base + 3 * ch, :]                    # (ch, T)

        def q_tile(qt, base=base, k=k, v=v, h=h):
            if isinstance(qt, int):
                q0 = qt * tq
            else:
                q0 = pl.multiple_of(qt * tq, tq)
            q = qkv_ref[base:base + ch, pl.ds(q0, tq)]                 # (ch, tq)

            # logits[s, t] = sum_c k[c, s] * q[c, t]   (key axis on sublanes)
            logits = jax.lax.dot_general(
                k, q, (((0,), (0,)), ((), ())),
                preferred_element_type=jnp.float32)                    # (T, tq)

            m = jnp.max(logits, axis=0, keepdims=True)                 # (1, tq)
            p = jnp.exp(logits - m)
            denom = jnp.sum(p, axis=0, keepdims=True)                  # (1, tq)

            # a[c, t] = sum_s v[c, s] * p[s, t]   — plain matmul, no transpose
            a = jax.lax.dot_general(
                v, p.astype(jnp.bfloat16), (((1,), (0,)), ((), ())),
                preferred_element_type=jnp.float32)                    # (ch, tq)
            # Deferred softmax normalization on the small (ch, tq) result.
            a = a * pl.reciprocal(denom, approx=True)
            att_ref[h * ch:(h + 1) * ch, pl.ds(q0, tq)] = a.astype(att_ref.dtype)

        if nq == 1:
            q_tile(0)
        else:
            def q_loop_body(i, carry):
                q_tile(i)
                return carry
            jax.lax.fori_loop(0, nq, q_loop_body, 0)

    # ---- proj_out (1x1 conv, bf16 operands) + residual (f32) ---------------
    proj = jnp.dot(wproj_ref[...], att_ref[...],
                   preferred_element_type=jnp.float32) + bproj_ref[...]
    o_ref[0] = (x + proj).astype(o_ref.dtype)


def attention_block_pallas(x_nchw, params, *, num_heads=1, num_groups=32,
                           eps=1e-5):
    """x_nchw: (B, C, H, W) float32, PyTorch NCHW convention."""
    gamma, beta, wqkv, bqkv, wproj, bproj = params
    B, C, H, W = x_nchw.shape
    T = H * W
    G = num_groups
    assert C % num_groups == 0, "GroupNorm(32, C) requires C % 32 == 0"
    assert C % num_heads == 0
    cg = C // num_groups
    ch = C // num_heads

    # Query-tile width (caps per-head logits stripe at T*tq f32).
    tq = T if T <= 512 else 512
    assert T % tq == 0

    # Free reshape (no transpose): channels-first, T = H*W on the lane axis.
    x = x_nchw.reshape(B, C, T)

    # Small group matrices for GroupNorm statistics (replace dense (C,C) gmat):
    #   gsum[g, c]  = 1/(cg*T) if channel c belongs to group g else 0
    #   bcast[c, g] = 1        if channel c belongs to group g else 0
    gid = jnp.arange(C, dtype=jnp.int32) // cg
    gidx = jnp.arange(G, dtype=jnp.int32)
    gsum = (gidx[:, None] == gid[None, :]).astype(jnp.float32) / float(cg * T)
    bcast = (gid[:, None] == gidx[None, :]).astype(jnp.float32)

    # Fold the q/k scale (ch**-0.25) into the q/k rows of the qkv projection.
    scale = float(ch) ** (-0.25)
    offset = jnp.arange(3 * C, dtype=jnp.int32) % (3 * ch)
    row_scale = jnp.where(offset < 2 * ch, scale, 1.0)[:, None]        # (3C, 1)
    wqkv_b = (wqkv * row_scale).astype(jnp.bfloat16)
    bqkv_s = (bqkv * row_scale).astype(jnp.float32)
    wproj_b = wproj.astype(jnp.bfloat16)

    # Explicit VMEM budget: x/out blocks (double-buffered), weights,
    # scratch slabs, f32 qkv temporary and the per-head logits stripe.
    f32b, bf16b = 4, 2
    param_bytes = ((3 * C * C + C * C) * bf16b
                   + (G * C + C * G + 3 * C + 3 * C) * f32b)
    est = (2 * 2 * (C * T * f32b)                 # x + out, double-buffered
           + 2 * param_bytes                      # grid-invariant operands
           + (C * T + 3 * C * T) * bf16b          # att + qkv scratch
           + 3 * C * T * f32b                     # f32 qkv accumulate
           + 2 * C * T * f32b                     # xn / elementwise temps
           + 2 * T * tq * f32b)                   # logits + exp stripe
    vmem_limit = int(min(100 * (1 << 20), max(8 * (1 << 20), 2 * est)))

    out = pl.pallas_call(
        functools.partial(attention_block_kernel, num_heads, eps, tq),
        out_shape=jax.ShapeDtypeStruct((B, C, T), x_nchw.dtype),
        grid_spec=pltpu.PrefetchScalarGridSpec(
            num_scalar_prefetch=0,
            grid=(B,),
            in_specs=[
                pl.BlockSpec((1, C, T), lambda b: (b, 0, 0)),      # x
                pl.BlockSpec((G, C), lambda b: (0, 0)),            # group sum mat
                pl.BlockSpec((C, G), lambda b: (0, 0)),            # broadcast mat
                pl.BlockSpec((C, 1), lambda b: (0, 0)),            # norm weight
                pl.BlockSpec((C, 1), lambda b: (0, 0)),            # norm bias
                pl.BlockSpec((3 * C, C), lambda b: (0, 0)),        # qkv weight (bf16, scale-folded)
                pl.BlockSpec((3 * C, 1), lambda b: (0, 0)),        # qkv bias (scale-folded)
                pl.BlockSpec((C, C), lambda b: (0, 0)),            # proj weight (bf16)
                pl.BlockSpec((C, 1), lambda b: (0, 0)),            # proj bias
            ],
            out_specs=pl.BlockSpec((1, C, T), lambda b: (b, 0, 0)),
            scratch_shapes=[
                pltpu.VMEM((C, T), jnp.bfloat16),       # per-head attention out
                pltpu.VMEM((3 * C, T), jnp.bfloat16),   # qkv (bf16 operands)
            ],
        ),
        compiler_params=pltpu.CompilerParams(
            dimension_semantics=("parallel",),
            vmem_limit_bytes=vmem_limit),
    )(x, gsum, bcast, gamma, beta, wqkv_b, bqkv_s, wproj_b, bproj)

    # Free reshape back to NCHW.
    return out.reshape(B, C, H, W)


def attention_block_reference(x_nchw, params, *, num_heads=1, num_groups=32,
                              eps=1e-5):
    """Pure-JAX f32 reference with identical semantics (correctness check)."""
    gamma, beta, wqkv, bqkv, wproj, bproj = params
    B, C, H, W = x_nchw.shape
    T = H * W
    ch = C // num_heads
    x = x_nchw.reshape(B, C, T)

    xg = x.reshape(B, num_groups, (C // num_groups) * T)
    mu = xg.mean(axis=-1, keepdims=True)
    var = xg.var(axis=-1, keepdims=True)
    xn = ((xg - mu) / jnp.sqrt(var + eps)).reshape(B, C, T)
    xn = xn * gamma.reshape(1, C, 1) + beta.reshape(1, C, 1)

    qkv = jnp.einsum('oc,bct->bot', wqkv, xn) + bqkv.reshape(1, 3 * C, 1)

    scale = float(ch) ** (-0.25)
    qkv_h = qkv.reshape(B * num_heads, 3 * ch, T)
    q, k, v = qkv_h[:, :ch], qkv_h[:, ch:2 * ch], qkv_h[:, 2 * ch:]
    logits = jnp.einsum('bct,bcs->bts', q * scale, k * scale)
    w = jax.nn.softmax(logits, axis=-1)
    a = jnp.einsum('bts,bcs->bct', w, v).reshape(B, C, T)

    proj = jnp.einsum('oc,bct->bot', wproj, a) + bproj.reshape(1, C, 1)
    return (x + proj).reshape(B, C, H, W)


def make_params(key, channels):
    ks = jax.random.split(key, 6)
    gamma = 1.0 + 0.1 * jax.random.normal(ks[0], (channels, 1), jnp.float32)
    beta = 0.1 * jax.random.normal(ks[1], (channels, 1), jnp.float32)
    wqkv = jax.random.normal(ks[2], (3 * channels, channels),
                             jnp.float32) * (channels ** -0.5)
    bqkv = 0.05 * jax.random.normal(ks[3], (3 * channels, 1), jnp.float32)
    # NOTE: the module zero-initialises proj_out (zero_module); random weights
    # exercise the full path — forward semantics are identical either way.
    wproj = jax.random.normal(ks[4], (channels, channels),
                              jnp.float32) * (channels ** -0.5)
    bproj = 0.05 * jax.random.normal(ks[5], (channels, 1), jnp.float32)
    return gamma, beta, wqkv, bqkv, wproj, bproj


if __name__ == "__main__":
    # GroupNorm(32, C) requires C % 32 == 0; use C=64, two heads (ch=32).
    B, C, H, W = 2, 64, 16, 16
    num_heads = 2

    key = jax.random.PRNGKey(0)
    kx, kp = jax.random.split(key)
    x = jax.random.normal(kx, (B, C, H, W), jnp.float32)
    params = make_params(kp, C)

    out = attention_block_pallas(x, params, num_heads=num_heads)
    out = jax.block_until_ready(out)

    ref = jax.block_until_ready(
        attention_block_reference(x, params, num_heads=num_heads))
    assert out.shape == (B, C, H, W)
    assert bool(jnp.isfinite(out).all())
    err = float(jnp.max(jnp.abs(out - ref)))
    # bf16 MXU operands + approx reciprocal vs. a pure-f32 reference.
    assert jnp.allclose(out, ref, atol=5e-2, rtol=2e-2), err

    # TODO(synk): torch.utils.checkpoint in forward() is a training-time
    # re-materialization trick only; forward math is unaffected.
    print("KERNEL_OK")
</pallas_src>

<mosaic_0001>
module attributes {stable_mosaic.version = 11 : i64} {
  func.func @attention_block_kernel(%arg0: i32, %arg1: memref<1x64x256xf32, #tpu.memory_space<vmem>>, %arg2: memref<32x64xf32, #tpu.memory_space<vmem>>, %arg3: memref<64x32xf32, #tpu.memory_space<vmem>>, %arg4: memref<64x1xf32, #tpu.memory_space<vmem>>, %arg5: memref<64x1xf32, #tpu.memory_space<vmem>>, %arg6: memref<192x64xbf16, #tpu.memory_space<vmem>>, %arg7: memref<192x1xf32, #tpu.memory_space<vmem>>, %arg8: memref<64x64xbf16, #tpu.memory_space<vmem>>, %arg9: memref<64x1xf32, #tpu.memory_space<vmem>>, %arg10: memref<1x64x256xf32, #tpu.memory_space<vmem>>, %arg11: memref<64x256xbf16, #tpu.memory_space<vmem>>, %arg12: memref<192x256xbf16, #tpu.memory_space<vmem>>) attributes {dimension_semantics = [#tpu.dimension_semantics<parallel>], iteration_bounds = array<i64: 2>, scalar_prefetch = 0 : i64, scratch_operands = 2 : i64, tpu.core_type = #tpu.core_type<tc>, window_params = [{transform_indices = @transform_0, window_bounds = array<i64: 1, 64, 256>}, {pipeline_mode = #tpu.pipeline_mode<synchronous>, transform_indices = @transform_1, window_bounds = array<i64: 32, 64>}, {pipeline_mode = #tpu.pipeline_mode<synchronous>, transform_indices = @transform_2, window_bounds = array<i64: 64, 32>}, {pipeline_mode = #tpu.pipeline_mode<synchronous>, transform_indices = @transform_3, window_bounds = array<i64: 64, 1>}, {pipeline_mode = #tpu.pipeline_mode<synchronous>, transform_indices = @transform_4, window_bounds = array<i64: 64, 1>}, {pipeline_mode = #tpu.pipeline_mode<synchronous>, transform_indices = @transform_5, window_bounds = array<i64: 192, 64>}, {pipeline_mode = #tpu.pipeline_mode<synchronous>, transform_indices = @transform_6, window_bounds = array<i64: 192, 1>}, {pipeline_mode = #tpu.pipeline_mode<synchronous>, transform_indices = @transform_7, window_bounds = array<i64: 64, 64>}, {pipeline_mode = #tpu.pipeline_mode<synchronous>, transform_indices = @transform_8, window_bounds = array<i64: 64, 1>}, {transform_indices = @transform_9, window_bounds = array<i64: 1, 64, 256>}]} {
    %c0 = arith.constant 0 : index
    %c0_0 = arith.constant 0 : index
    %c0_1 = arith.constant 0 : index
    %0 = vector.load %arg1[%c0, %c0_0, %c0_1] : memref<1x64x256xf32, #tpu.memory_space<vmem>>, vector<1x64x256xf32>
    %1 = vector.shape_cast %0 : vector<1x64x256xf32> to vector<64x256xf32>
    %cst = arith.constant dense<0.000000e+00> : vector<64xf32>
    %2 = vector.multi_reduction <add>, %1, %cst [1] : vector<64x256xf32> to vector<64xf32>
    %3 = vector.shape_cast %2 : vector<64xf32> to vector<64x1xf32>
    %4 = arith.mulf %1, %1 : vector<64x256xf32>
    %cst_2 = arith.constant dense<0.000000e+00> : vector<64xf32>
    %5 = vector.multi_reduction <add>, %4, %cst_2 [1] : vector<64x256xf32> to vector<64xf32>
    %6 = vector.shape_cast %5 : vector<64xf32> to vector<64x1xf32>
    %c0_3 = arith.constant 0 : index
    %c0_4 = arith.constant 0 : index
    %7 = vector.load %arg2[%c0_3, %c0_4] : memref<32x64xf32, #tpu.memory_space<vmem>>, vector<32x64xf32>
    %c0_5 = arith.constant 0 : index
    %c0_6 = arith.constant 0 : index
    %8 = vector.load %arg3[%c0_5, %c0_6] : memref<64x32xf32, #tpu.memory_space<vmem>>, vector<64x32xf32>
    %cst_7 = arith.constant dense<0.000000e+00> : vector<32x1xf32>
    %9 = tpu.matmul %7, %3, %cst_7 {dimension_numbers = #tpu.dot_dimension_numbers<[1], [0], [0], [1], [0, 0, 1, 1], [], []>} : vector<32x64xf32>, vector<64x1xf32>, vector<32x1xf32> -> vector<32x1xf32>
    %cst_8 = arith.constant dense<0.000000e+00> : vector<64x1xf32>
    %10 = tpu.matmul %8, %9, %cst_8 {dimension_numbers = #tpu.dot_dimension_numbers<[1], [0], [0], [1], [0, 0, 1, 1], [], []>} : vector<64x32xf32>, vector<32x1xf32>, vector<64x1xf32> -> vector<64x1xf32>
    %cst_9 = arith.constant dense<0.000000e+00> : vector<32x1xf32>
    %11 = tpu.matmul %7, %6, %cst_9 {dimension_numbers = #tpu.dot_dimension_numbers<[1], [0], [0], [1], [0, 0, 1, 1], [], []>} : vector<32x64xf32>, vector<64x1xf32>, vector<32x1xf32> -> vector<32x1xf32>
    %cst_10 = arith.constant dense<0.000000e+00> : vector<64x1xf32>
    %12 = tpu.matmul %8, %11, %cst_10 {dimension_numbers = #tpu.dot_dimension_numbers<[1], [0], [0], [1], [0, 0, 1, 1], [], []>} : vector<64x32xf32>, vector<32x1xf32>, vector<64x1xf32> -> vector<64x1xf32>
    %13 = arith.mulf %10, %10 : vector<64x1xf32>
    %14 = arith.subf %12, %13 : vector<64x1xf32>
    %cst_11 = arith.constant 0.000000e+00 : f32
    %15 = vector.broadcast %cst_11 : f32 to vector<64x1xf32>
    %16 = arith.maximumf %14, %15 : vector<64x1xf32>
    %17 = vector.broadcast %10 : vector<64x1xf32> to vector<64x256xf32>
    %18 = arith.subf %1, %17 : vector<64x256xf32>
    %cst_12 = arith.constant 9.99999974E-6 : f32
    %19 = vector.broadcast %cst_12 : f32 to vector<64x1xf32>
    %20 = arith.addf %16, %19 : vector<64x1xf32>
    %21 = math.rsqrt %20 : vector<64x1xf32>
    %22 = vector.broadcast %21 : vector<64x1xf32> to vector<64x256xf32>
    %23 = arith.mulf %18, %22 : vector<64x256xf32>
    %c0_13 = arith.constant 0 : index
    %c0_14 = arith.constant 0 : index
    %24 = vector.load %arg4[%c0_13, %c0_14] : memref<64x1xf32, #tpu.memory_space<vmem>>, vector<64x1xf32>
    %25 = vector.broadcast %24 : vector<64x1xf32> to vector<64x256xf32>
    %26 = arith.mulf %23, %25 : vector<64x256xf32>
    %c0_15 = arith.constant 0 : index
    %c0_16 = arith.constant 0 : index
    %27 = vector.load %arg5[%c0_15, %c0_16] : memref<64x1xf32, #tpu.memory_space<vmem>>, vector<64x1xf32>
    %28 = vector.broadcast %27 : vector<64x1xf32> to vector<64x256xf32>
    %29 = arith.addf %26, %28 : vector<64x256xf32>
    %c0_17 = arith.constant 0 : index
    %c0_18 = arith.constant 0 : index
    %30 = vector.load %arg6[%c0_17, %c0_18] : memref<192x64xbf16, #tpu.memory_space<vmem>>, vector<192x64xbf16>
    %31 = arith.truncf %29 : vector<64x256xf32> to vector<64x256xbf16>
    %cst_19 = arith.constant dense<0.000000e+00> : vector<192x256xf32>
    %32 = tpu.matmul %30, %31, %cst_19 {dimension_numbers = #tpu.dot_dimension_numbers<[1], [0], [0], [1], [0, 0, 1, 1], [], []>} : vector<192x64xbf16>, vector<64x256xbf16>, vector<192x256xf32> -> vector<192x256xf32>
    %c0_20 = arith.constant 0 : index
    %c0_21 = arith.constant 0 : index
    %33 = vector.load %arg7[%c0_20, %c0_21] : memref<192x1xf32, #tpu.memory_space<vmem>>, vector<192x1xf32>
    %34 = vector.broadcast %33 : vector<192x1xf32> to vector<192x256xf32>
    %35 = arith.addf %32, %34 : vector<192x256xf32>
    %36 = arith.truncf %35 : vector<192x256xf32> to vector<192x256xbf16>
    %c0_22 = arith.constant 0 : index
    %c0_23 = arith.constant 0 : index
    %37 = vector.load %arg12[%c0_22, %c0_23] : memref<192x256xbf16, #tpu.memory_space<vmem>>, vector<192x256xbf16>
    tpu.vector_store %arg12[%c0_22, %c0_23], %36 {strides = array<i32>} : memref<192x256xbf16, #tpu.memory_space<vmem>>, vector<192x256xbf16>,
    %c32 = arith.constant 32 : index
    %c0_24 = arith.constant 0 : index
    %38 = vector.load %arg12[%c32, %c0_24] : memref<192x256xbf16, #tpu.memory_space<vmem>>, vector<32x256xbf16>
    %c64 = arith.constant 64 : index
    %c0_25 = arith.constant 0 : index
    %39 = vector.load %arg12[%c64, %c0_25] : memref<192x256xbf16, #tpu.memory_space<vmem>>, vector<32x256xbf16>
    %c0_26 = arith.constant 0 : index
    %c0_27 = arith.constant 0 : index
    %40 = vector.load %arg12[%c0_26, %c0_27] : memref<192x256xbf16, #tpu.memory_space<vmem>>, vector<32x256xbf16>
    %cst_28 = arith.constant dense<0.000000e+00> : vector<256x256xf32>
    %41 = tpu.matmul %38, %40, %cst_28 {dimension_numbers = #tpu.dot_dimension_numbers<[0], [0], [1], [1], [0, 1, 1, 1], [], []>} : vector<32x256xbf16>, vector<32x256xbf16>, vector<256x256xf32> -> vector<256x256xf32>
    %cst_29 = arith.constant dense<0xFF800000> : vector<256xf32>
    %42 = vector.multi_reduction <maximumf>, %41, %cst_29 [0] : vector<256x256xf32> to vector<256xf32>
    %43 = vector.shape_cast %42 : vector<256xf32> to vector<1x256xf32>
    %44 = vector.broadcast %43 : vector<1x256xf32> to vector<256x256xf32>
    %45 = arith.subf %41, %44 : vector<256x256xf32>
    %46 = math.exp %45 : vector<256x256xf32>
    %cst_30 = arith.constant dense<0.000000e+00> : vector<256xf32>
    %47 = vector.multi_reduction <add>, %46, %cst_30 [0] : vector<256x256xf32> to vector<256xf32>
    %48 = vector.shape_cast %47 : vector<256xf32> to vector<1x256xf32>
    %49 = arith.truncf %46 : vector<256x256xf32> to vector<256x256xbf16>
    %cst_31 = arith.constant dense<0.000000e+00> : vector<32x256xf32>
    %50 = tpu.matmul %39, %49, %cst_31 {dimension_numbers = #tpu.dot_dimension_numbers<[1], [0], [0], [1], [0, 0, 1, 1], [], []>} : vector<32x256xbf16>, vector<256x256xbf16>, vector<32x256xf32> -> vector<32x256xf32>
    %51 = tpu.reciprocal %48 {approx = true} : vector<1x256xf32> -> vector<1x256xf32>
    %52 = vector.broadcast %51 : vector<1x256xf32> to vector<32x256xf32>
    %53 = arith.mulf %50, %52 : vector<32x256xf32>
    %54 = arith.truncf %53 : vector<32x256xf32> to vector<32x256xbf16>
    %c0_32 = arith.constant 0 : index
    %c0_33 = arith.constant 0 : index
    %55 = vector.load %arg11[%c0_32, %c0_33] : memref<64x256xbf16, #tpu.memory_space<vmem>>, vector<32x256xbf16>
    tpu.vector_store %arg11[%c0_32, %c0_33], %54 {strides = array<i32>} : memref<64x256xbf16, #tpu.memory_space<vmem>>, vector<32x256xbf16>,
    %c128 = arith.constant 128 : index
    %c0_34 = arith.constant 0 : index
    %56 = vector.load %arg12[%c128, %c0_34] : memref<192x256xbf16, #tpu.memory_space<vmem>>, vector<32x256xbf16>
    %c160 = arith.constant 160 : index
    %c0_35 = arith.constant 0 : index
    %57 = vector.load %arg12[%c160, %c0_35] : memref<192x256xbf16, #tpu.memory_space<vmem>>, vector<32x256xbf16>
    %c96 = arith.constant 96 : index
    %c0_36 = arith.constant 0 : index
    %58 = vector.load %arg12[%c96, %c0_36] : memref<192x256xbf16, #tpu.memory_space<vmem>>, vector<32x256xbf16>
    %cst_37 = arith.constant dense<0.000000e+00> : vector<256x256xf32>
    %59 = tpu.matmul %56, %58, %cst_37 {dimension_numbers = #tpu.dot_dimension_numbers<[0], [0], [1], [1], [0, 1, 1, 1], [], []>} : vector<32x256xbf16>, vector<32x256xbf16>, vector<256x256xf32> -> vector<256x256xf32>
    %cst_38 = arith.constant dense<0xFF800000> : vector<256xf32>
    %60 = vector.multi_reduction <maximumf>, %59, %cst_38 [0] : vector<256x256xf32> to vector<256xf32>
    %61 = vector.shape_cast %60 : vector<256xf32> to vector<1x256xf32>
    %62 = vector.broadcast %61 : vector<1x256xf32> to vector<256x256xf32>
    %63 = arith.subf %59, %62 : vector<256x256xf32>
    %64 = math.exp %63 : vector<256x256xf32>
    %cst_39 = arith.constant dense<0.000000e+00> : vector<256xf32>
    %65 = vector.multi_reduction <add>, %64, %cst_39 [0] : vector<256x256xf32> to vector<256xf32>
    %66 = vector.shape_cast %65 : vector<256xf32> to vector<1x256xf32>
    %67 = arith.truncf %64 : vector<256x256xf32> to vector<256x256xbf16>
    %cst_40 = arith.constant dense<0.000000e+00> : vector<32x256xf32>
    %68 = tpu.matmul %57, %67, %cst_40 {dimension_numbers = #tpu.dot_dimension_numbers<[1], [0], [0], [1], [0, 0, 1, 1], [], []>} : vector<32x256xbf16>, vector<256x256xbf16>, vector<32x256xf32> -> vector<32x256xf32>
    %69 = tpu.reciprocal %66 {approx = true} : vector<1x256xf32> -> vector<1x256xf32>
    %70 = vector.broadcast %69 : vector<1x256xf32> to vector<32x256xf32>
    %71 = arith.mulf %68, %70 : vector<32x256xf32>
    %72 = arith.truncf %71 : vector<32x256xf32> to vector<32x256xbf16>
    %c32_41 = arith.constant 32 : index
    %c0_42 = arith.constant 0 : index
    %73 = vector.load %arg11[%c32_41, %c0_42] : memref<64x256xbf16, #tpu.memory_space<vmem>>, vector<32x256xbf16>
    tpu.vector_store %arg11[%c32_41, %c0_42], %72 {strides = array<i32>} : memref<64x256xbf16, #tpu.memory_space<vmem>>, vector<32x256xbf16>,
    %c0_43 = arith.constant 0 : index
    %c0_44 = arith.constant 0 : index
    %74 = vector.load %arg8[%c0_43, %c0_44] : memref<64x64xbf16, #tpu.memory_space<vmem>>, vector<64x64xbf16>
    %c0_45 = arith.constant 0 : index
    %c0_46 = arith.constant 0 : index
    %75 = vector.load %arg11[%c0_45, %c0_46] : memref<64x256xbf16, #tpu.memory_space<vmem>>, vector<64x256xbf16>
    %cst_47 = arith.constant dense<0.000000e+00> : vector<64x256xf32>
    %76 = tpu.matmul %74, %75, %cst_47 {dimension_numbers = #tpu.dot_dimension_numbers<[1], [0], [0], [1], [0, 0, 1, 1], [], []>} : vector<64x64xbf16>, vector<64x256xbf16>, vector<64x256xf32> -> vector<64x256xf32>
    %c0_48 = arith.constant 0 : index
    %c0_49 = arith.constant 0 : index
    %77 = vector.load %arg9[%c0_48, %c0_49] : memref<64x1xf32, #tpu.memory_space<vmem>>, vector<64x1xf32>
    %78 = vector.broadcast %77 : vector<64x1xf32> to vector<64x256xf32>
    %79 = arith.addf %76, %78 : vector<64x256xf32>
    %80 = arith.addf %1, %79 : vector<64x256xf32>
    %c0_50 = arith.constant 0 : index
    %c0_51 = arith.constant 0 : index
    %c0_52 = arith.constant 0 : index
    %81 = vector.load %arg10[%c0_50, %c0_51, %c0_52] : memref<1x64x256xf32, #tpu.memory_space<vmem>>, vector<1x64x256xf32>
    %82 = vector.shape_cast %81 : vector<1x64x256xf32> to vector<64x256xf32>
    %83 = vector.shape_cast %80 : vector<64x256xf32> to vector<1x64x256xf32>
    tpu.vector_store %arg10[%c0_50, %c0_51, %c0_52], %83 {strides = array<i32>} : memref<1x64x256xf32, #tpu.memory_space<vmem>>, vector<1x64x256xf32>,
    return
  }
  func.func @transform_0(%arg0: i32) -> (i32, i32, i32) {
    %c0_i32 = arith.constant 0 : i32
    %c0_i32_0 = arith.constant 0 : i32
    %c0_i32_1 = arith.constant 0 : i32
    return %arg0, %c0_i32, %c0_i32_0 : i32, i32, i32
  }
  func.func @transform_1(%arg0: i32) -> (i32, i32) {
    %c0_i32 = arith.constant 0 : i32
    %c0_i32_0 = arith.constant 0 : i32
    %c0_i32_1 = arith.constant 0 : i32
    return %c0_i32, %c0_i32_0 : i32, i32
  }
  func.func @transform_2(%arg0: i32) -> (i32, i32) {
    %c0_i32 = arith.constant 0 : i32
    %c0_i32_0 = arith.constant 0 : i32
    %c0_i32_1 = arith.constant 0 : i32
    return %c0_i32, %c0_i32_0 : i32, i32
  }
  func.func @transform_3(%arg0: i32) -> (i32, i32) {
    %c0_i32 = arith.constant 0 : i32
    %c0_i32_0 = arith.constant 0 : i32
    %c0_i32_1 = arith.constant 0 : i32
    return %c0_i32, %c0_i32_0 : i32, i32
  }
  func.func @transform_4(%arg0: i32) -> (i32, i32) {
    %c0_i32 = arith.constant 0 : i32
    %c0_i32_0 = arith.constant 0 : i32
    %c0_i32_1 = arith.constant 0 : i32
    return %c0_i32, %c0_i32_0 : i32, i32
  }
  func.func @transform_5(%arg0: i32) -> (i32, i32) {
    %c0_i32 = arith.constant 0 : i32
    %c0_i32_0 = arith.constant 0 : i32
    %c0_i32_1 = arith.constant 0 : i32
    return %c0_i32, %c0_i32_0 : i32, i32
  }
  func.func @transform_6(%arg0: i32) -> (i32, i32) {
    %c0_i32 = arith.constant 0 : i32
    %c0_i32_0 = arith.constant 0 : i32
    %c0_i32_1 = arith.constant 0 : i32
    return %c0_i32, %c0_i32_0 : i32, i32
  }
  func.func @transform_7(%arg0: i32) -> (i32, i32) {
    %c0_i32 = arith.constant 0 : i32
    %c0_i32_0 = arith.constant 0 : i32
    %c0_i32_1 = arith.constant 0 : i32
    return %c0_i32, %c0_i32_0 : i32, i32
  }
  func.func @transform_8(%arg0: i32) -> (i32, i32) {
    %c0_i32 = arith.constant 0 : i32
    %c0_i32_0 = arith.constant 0 : i32
    %c0_i32_1 = arith.constant 0 : i32
    return %c0_i32, %c0_i32_0 : i32, i32
  }
  func.func @transform_9(%arg0: i32) -> (i32, i32, i32) {
    %c0_i32 = arith.constant 0 : i32
    %c0_i32_0 = arith.constant 0 : i32
    %c0_i32_1 = arith.constant 0 : i32
    return %arg0, %c0_i32, %c0_i32_0 : i32, i32, i32
  }
}

</mosaic_0001>

<llo_original>
// kernel: tpu_custom_call.1
$region0: #{tpu_custom_call.1}
  #allocation0 [shape = 'u32[]', space=smem, size = 0x4, offset = 0x4, fixed_abs, tag = 'smem constant byte address 0x4 - core index']
  #allocation1 [shape = 'u32[144,128]{1,0:T(1,128)}', space=vmem, size = 0x12000, scoped, tag = 'internal scratch']
  #allocation2 [shape = 'bf16[64,256]{1,0:T(16,128)(2,1)}', space=vmem, size = 0x8000, scoped, tag = 'scratch operand']
  #allocation3 [shape = 'bf16[192,256]{1,0:T(16,128)(2,1)}', space=vmem, size = 0x18000, scoped, tag = 'scratch operand']
  %s0 = inlined_call_operand.vmem [shape: f32[2,64,256], index: 0, kind: input, shape index: {}]
  %s1 = inlined_call_operand.vmem [shape: f32[32,64], index: 1, kind: input, shape index: {}]
  %s2 = inlined_call_operand.vmem [shape: f32[64,32], index: 2, kind: input, shape index: {}]
  %s3 = inlined_call_operand.vmem [shape: f32[64,1], index: 3, kind: input, shape index: {}]
  %s4 = inlined_call_operand.vmem [shape: f32[64,1], index: 4, kind: input, shape index: {}]
  %s5 = inlined_call_operand.vmem [shape: bf16[192,64], index: 5, kind: input, shape index: {}]
  %s6 = inlined_call_operand.vmem [shape: f32[192,1], index: 6, kind: input, shape index: {}]
  %s7 = inlined_call_operand.vmem [shape: bf16[64,64], index: 7, kind: input, shape index: {}]
  %s8 = inlined_call_operand.vmem [shape: f32[64,1], index: 8, kind: input, shape index: {}]
  %s9 = inlined_call_operand.hbm [shape: f32[2,64,256], index: 9, kind: output, shape index: {}]
  %s10 = sld [smem:[#allocation0]]
  $region69: #{tpu_custom_call.1} parent=0
    _
  %s12 = ssub.s32 1, %s10
  %s13 = scalar_select 0, %s12, %s10
  $region1: #{tpu_custom_call.1} parent=0
    #allocation4 [shape = 'u8[131072]{0}', space=vmem, size = 0x20000, scoped, tag = 'output window, operand 0']
    #allocation5 [shape = 's32[2]{0}', space=sflag, size = 0x8, scoped, tag = 'scoped memory for tpu_custom_call.1']
    %14 = vsyncpa [#allocation5], 0
    %s15 = scalar_lea.sflag [#allocation5], 1
    %16 = vsyncpa %s15, 0
    loop: start=0, step=1, limit=4
    $region2: #{tpu_custom_call.1} parent=1 // loop_pre_header
      _
    $region3: #{tpu_custom_call.1} parent=1 // loop_header
      %s18 = sphi 0, %s22
      %p19 = scmp.ge.s32.totalorder %s18, 4
      %s28 = sphi 0, %s30
      %s31 = sphi 0, %s28
      %s32 = sphi 0, %s31
      %s48 = sphi 0, %s32
      %s52 = sphi 0, %s52
      %s54 = sphi 0, %s52
      %s55 = sphi 0, %s54
      %s69 = sphi 0, %s55
      %s73 = sphi 0, %s73
      %s75 = sphi 0, %s73
      %s76 = sphi 0, %s75
      %s90 = sphi 0, %s76
      %s94 = sphi 0, %s94
      %s96 = sphi 0, %s94
      %s97 = sphi 0, %s96
      %s111 = sphi 0, %s97
      %s115 = sphi 0, %s115
      %s117 = sphi 0, %s115
      %s118 = sphi 0, %s117
      %s132 = sphi 0, %s118
      %s136 = sphi 0, %s136
      %s138 = sphi 0, %s136
      %s139 = sphi 0, %s138
      %s153 = sphi 0, %s139
      %s157 = sphi 0, %s157
      %s159 = sphi 0, %s157
      %s160 = sphi 0, %s159
      %s174 = sphi 0, %s160
      %s178 = sphi 0, %s178
      %s180 = sphi 0, %s178
      %s181 = sphi 0, %s180
      %s195 = sphi 0, %s181
      %s199 = sphi 0, %s199
      %s201 = sphi 0, %s199
      %s202 = sphi 0, %s201
      %s216 = sphi 0, %s202
      %s222 = sphi 0, %s224
      %s225 = sphi 0, %s222
      %s226 = sphi 0, %s225
      %s242 = sphi 0, %s226
    $region4: #{tpu_custom_call.1} parent=1 // loop_header_branch
      %21 = sbr.rel (%p19) target = $region8
    $region5: #{tpu_custom_call.1} parent=1 // loop_body
      %s23 = ssub.s32 %s18, 1
      %s24 = ssub.s32 %s18, 2
      %s25 = sadd.s32 %s18, 1
      %s26 = ssub.s32 %s18, %s25
      %p27 = scmp.eq.s32.totalorder %s26, 0
      %s29 = sadd.s32 %s28, 1
      %s30 = scalar_select %p27, %s28, %s29
      %p33 = pneg %p27
      %p34 = scmp.eq.s32.totalorder %s18, 1
      %p35 = por %p33, %p34
      %p36 = scmp.ne.s32.totalorder %s28, %s31
      %p37 = scmp.eq.s32.totalorder %s18, 0
      %p38 = por %p36, %p37
      %p39 = scmp.ne.s32.totalorder %s28, %s31
      %p40 = scmp.eq.s32.totalorder %s23, 1
      %p41 = por %p39, %p40
      %p42 = scmp.ne.s32.totalorder %s31, %s32
      %p43 = scmp.eq.s32.totalorder %s23, 0
      %p44 = por %p42, %p43
      %p45 = scmp.ne.s32.totalorder %s31, %s32
      %p46 = scmp.eq.s32.totalorder %s24, 1
      %p47 = por %p45, %p46
      %p49 = scmp.ne.s32.totalorder %s32, %s48
      %p50 = scmp.eq.s32.totalorder %s24, 0
      %p51 = por %p49, %p50
      %s53 = sadd.s32 %s52, 1
      %p56 = scmp.eq.s32.totalorder %s18, 1
      %p57 = scmp.ne.s32.totalorder %s52, %s54
      %p58 = scmp.eq.s32.totalorder %s18, 0
      %p59 = por %p57, %p58
      %p60 = scmp.ne.s32.totalorder %s52, %s54
      %p61 = scmp.eq.s32.totalorder %s23, 1
      %p62 = por %p60, %p61
      %p63 = scmp.ne.s32.totalorder %s54, %s55
      %p64 = scmp.eq.s32.totalorder %s23, 0
      %p65 = por %p63, %p64
      %p66 = scmp.ne.s32.totalorder %s54, %s55
      %p67 = scmp.eq.s32.totalorder %s24, 1
      %p68 = por %p66, %p67
      %p70 = scmp.ne.s32.totalorder %s55, %s69
      %p71 = scmp.eq.s32.totalorder %s24, 0
      %p72 = por %p70, %p71
      %s74 = sadd.s32 %s73, 1
      %p77 = scmp.eq.s32.totalorder %s18, 1
      %p78 = scmp.ne.s32.totalorder %s73, %s75
      %p79 = scmp.eq.s32.totalorder %s18, 0
      %p80 = por %p78, %p79
      %p81 = scmp.ne.s32.totalorder %s73, %s75
      %p82 = scmp.eq.s32.totalorder %s23, 1
      %p83 = por %p81, %p82
      %p84 = scmp.ne.s32.totalorder %s75, %s76
      %p85 = scmp.eq.s32.totalorder %s23, 0
      %p86 = por %p84, %p85
      %p87 = scmp.ne.s32.totalorder %s75, %s76
      %p88 = scmp.eq.s32.totalorder %s24, 1
      %p89 = por %p87, %p88
      %p91 = scmp.ne.s32.totalorder %s76, %s90
      %p92 = scmp.eq.s32.totalorder %s24, 0
      %p93 = por %p91, %p92
      %s95 = sadd.s32 %s94, 1
      %p98 = scmp.eq.s32.totalorder %s18, 1
      %p99 = scmp.ne.s32.totalorder %s94, %s96
      %p100 = scmp.eq.s32.totalorder %s18, 0
      %p101 = por %p99, %p100
      %p102 = scmp.ne.s32.totalorder %s94, %s96
      %p103 = scmp.eq.s32.totalorder %s23, 1
      %p104 = por %p102, %p103
      %p105 = scmp.ne.s32.totalorder %s96, %s97
      %p106 = scmp.eq.s32.totalorder %s23, 0
      %p107 = por %p105, %p106
      %p108 = scmp.ne.s32.totalorder %s96, %s97
      %p109 = scmp.eq.s32.totalorder %s24, 1
      %p110 = por %p108, %p109
      %p112 = scmp.ne.s32.totalorder %s97, %s111
      %p113 = scmp.eq.s32.totalorder %s24, 0
      %p114 = por %p112, %p113
      %s116 = sadd.s32 %s115, 1
      %p119 = scmp.eq.s32.totalorder %s18, 1
      %p120 = scmp.ne.s32.totalorder %s115, %s117
      %p121 = scmp.eq.s32.totalorder %s18, 0
      %p122 = por %p120, %p121
      %p123 = scmp.ne.s32.totalorder %s115, %s117
      %p124 = scmp.eq.s32.totalorder %s23, 1
      %p125 = por %p123, %p124
      %p126 = scmp.ne.s32.totalorder %s117, %s118
      %p127 = scmp.eq.s32.totalorder %s23, 0
      %p128 = por %p126, %p127
      %p129 = scmp.ne.s32.totalorder %s117, %s118
      %p130 = scmp.eq.s32.totalorder %s24, 1
      %p131 = por %p129, %p130
      %p133 = scmp.ne.s32.totalorder %s118, %s132
      %p134 = scmp.eq.s32.totalorder %s24, 0
      %p135 = por %p133, %p134
      %s137 = sadd.s32 %s136, 1
      %p140 = scmp.eq.s32.totalorder %s18, 1
      %p141 = scmp.ne.s32.totalorder %s136, %s138
      %p142 = scmp.eq.s32.totalorder %s18, 0
      %p143 = por %p141, %p142
      %p144 = scmp.ne.s32.totalorder %s136, %s138
      %p145 = scmp.eq.s32.totalorder %s23, 1
      %p146 = por %p144, %p145
      %p147 = scmp.ne.s32.totalorder %s138, %s139
      %p148 = scmp.eq.s32.totalorder %s23, 0
      %p149 = por %p147, %p148
      %p150 = scmp.ne.s32.totalorder %s138, %s139
      %p151 = scmp.eq.s32.totalorder %s24, 1
      %p152 = por %p150, %p151
      %p154 = scmp.ne.s32.totalorder %s139, %s153
      %p155 = scmp.eq.s32.totalorder %s24, 0
      %p156 = por %p154, %p155
      %s158 = sadd.s32 %s157, 1
      %p161 = scmp.eq.s32.totalorder %s18, 1
      %p162 = scmp.ne.s32.totalorder %s157, %s159
      %p163 = scmp.eq.s32.totalorder %s18, 0
      %p164 = por %p162, %p163
      %p165 = scmp.ne.s32.totalorder %s157, %s159
      %p166 = scmp.eq.s32.totalorder %s23, 1
      %p167 = por %p165, %p166
      %p168 = scmp.ne.s32.totalorder %s159, %s160
      %p169 = scmp.eq.s32.totalorder %s23, 0
      %p170 = por %p168, %p169
      %p171 = scmp.ne.s32.totalorder %s159, %s160
      %p172 = scmp.eq.s32.totalorder %s24, 1
      %p173 = por %p171, %p172
      %p175 = scmp.ne.s32.totalorder %s160, %s174
      %p176 = scmp.eq.s32.totalorder %s24, 0
      %p177 = por %p175, %p176
      %s179 = sadd.s32 %s178, 1
      %p182 = scmp.eq.s32.totalorder %s18, 1
      %p183 = scmp.ne.s32.totalorder %s178, %s180
      %p184 = scmp.eq.s32.totalorder %s18, 0
      %p185 = por %p183, %p184
      %p186 = scmp.ne.s32.totalorder %s178, %s180
      %p187 = scmp.eq.s32.totalorder %s23, 1
      %p188 = por %p186, %p187
      %p189 = scmp.ne.s32.totalorder %s180, %s181
      %p190 = scmp.eq.s32.totalorder %s23, 0
      %p191 = por %p189, %p190
      %p192 = scmp.ne.s32.totalorder %s180, %s181
      %p193 = scmp.eq.s32.totalorder %s24, 1
      %p194 = por %p192, %p193
      %p196 = scmp.ne.s32.totalorder %s181, %s195
      %p197 = scmp.eq.s32.totalorder %s24, 0
      %p198 = por %p196, %p197
      %s200 = sadd.s32 %s199, 1
      %p203 = scmp.eq.s32.totalorder %s18, 1
      %p204 = scmp.ne.s32.totalorder %s199, %s201
      %p205 = scmp.eq.s32.totalorder %s18, 0
      %p206 = por %p204, %p205
      %p207 = scmp.ne.s32.totalorder %s199, %s201
      %p208 = scmp.eq.s32.totalorder %s23, 1
      %p209 = por %p207, %p208
      %p210 = scmp.ne.s32.totalorder %s201, %s202
      %p211 = scmp.eq.s32.totalorder %s23, 0
      %p212 = por %p210, %p211
      %p213 = scmp.ne.s32.totalorder %s201, %s202
      %p214 = scmp.eq.s32.totalorder %s24, 1
      %p215 = por %p213, %p214
      %p217 = scmp.ne.s32.totalorder %s202, %s216
      %p218 = scmp.eq.s32.totalorder %s24, 0
      %p219 = por %p217, %p218
      %s220 = ssub.s32 %s18, %s25
      %p221 = scmp.eq.s32.totalorder %s220, 0
      %s223 = sadd.s32 %s222, 1
      %s224 = scalar_select %p221, %s222, %s223
      %p227 = pneg %p221
      %p228 = scmp.eq.s32.totalorder %s18, 1
      %p229 = por %p227, %p228
      %p230 = scmp.ne.s32.totalorder %s222, %s225
      %p231 = scmp.eq.s32.totalorder %s18, 0
      %p232 = por %p230, %p231
      %p233 = scmp.ne.s32.totalorder %s222, %s225
      %p234 = scmp.eq.s32.totalorder %s23, 1
      %p235 = por %p233, %p234
      %p236 = scmp.ne.s32.totalorder %s225, %s226
      %p237 = scmp.eq.s32.totalorder %s23, 0
      %p238 = por %p236, %p237
      %p239 = scmp.ne.s32.totalorder %s225, %s226
      %p240 = scmp.eq.s32.totalorder %s24, 1
      %p241 = por %p239, %p240
      %p243 = scmp.ne.s32.totalorder %s226, %s242
      %p244 = scmp.eq.s32.totalorder %s24, 0
      %p245 = por %p243, %p244
      %p246 = scmp.le.s32.totalorder 1, %s18
      %p247 = scmp.lt.s32.totalorder %s18, 3
      %p248 = pnand %p246, %p247
      %p249 = pneg %p248
      // Predicated region
      $region9: #{tpu_custom_call.1} parent=5 // pred_check
        _
      $region10: #{tpu_custom_call.1} parent=5 // pred_check_branch
        %251 = sbr.rel (%p248) target = $region12
      $region11: #{tpu_custom_call.1} parent=5 // pred_region
        %s252 = ssub.s32 %s18, 1
        // Predicated region
        $region13: #{tpu_custom_call.1} parent=11 // pred_check
          %p253 = pneg %p65
        $region14: #{tpu_custom_call.1} parent=11 // pred_check_branch
          %255 = sbr.rel (%p253) target = $region16
        $region15: #{tpu_custom_call.1} parent=11 // pred_region
          _
        $region16: #{tpu_custom_call.1} parent=11 // pred_fallthru
          _
        // Predicated region
        $region17: #{tpu_custom_call.1} parent=11 // pred_check
          %p256 = pneg %p86
        $region18: #{tpu_custom_call.1} parent=11 // pred_check_branch
          %258 = sbr.rel (%p256) target = $region20
        $region19: #{tpu_custom_call.1} parent=11 // pred_region
          _
        $region20: #{tpu_custom_call.1} parent=11 // pred_fallthru
          _
        // Predicated region
        $region21: #{tpu_custom_call.1} parent=11 // pred_check
          %p259 = pneg %p107
        $region22: #{tpu_custom_call.1} parent=11 // pred_check_branch
          %261 = sbr.rel (%p259) target = $region24
        $region23: #{tpu_custom_call.1} parent=11 // pred_region
          _
        $region24: #{tpu_custom_call.1} parent=11 // pred_fallthru
          _
        // Predicated region
        $region25: #{tpu_custom_call.1} parent=11 // pred_check
          %p262 = pneg %p128
        $region26: #{tpu_custom_call.1} parent=11 // pred_check_branch
          %264 = sbr.rel (%p262) target = $region28
        $region27: #{tpu_custom_call.1} parent=11 // pred_region
          _
        $region28: #{tpu_custom_call.1} parent=11 // pred_fallthru
          _
        // Predicated region
        $region29: #{tpu_custom_call.1} parent=11 // pred_check
          %p265 = pneg %p149
        $region30: #{tpu_custom_call.1} parent=11 // pred_check_branch
          %267 = sbr.rel (%p265) target = $region32
        $region31: #{tpu_custom_call.1} parent=11 // pred_region
          _
        $region32: #{tpu_custom_call.1} parent=11 // pred_fallthru
          _
        // Predicated region
        $region33: #{tpu_custom_call.1} parent=11 // pred_check
          %p268 = pneg %p170
        $region34: #{tpu_custom_call.1} parent=11 // pred_check_branch
          %270 = sbr.rel (%p268) target = $region36
        $region35: #{tpu_custom_call.1} parent=11 // pred_region
          _
        $region36: #{tpu_custom_call.1} parent=11 // pred_fallthru
          _
        // Predicated region
        $region37: #{tpu_custom_call.1} parent=11 // pred_check
          %p271 = pneg %p191
        $region38: #{tpu_custom_call.1} parent=11 // pred_check_branch
          %273 = sbr.rel (%p271) target = $region40
        $region39: #{tpu_custom_call.1} parent=11 // pred_region
          _
        $region40: #{tpu_custom_call.1} parent=11 // pred_fallthru
          _
        // Predicated region
        $region41: #{tpu_custom_call.1} parent=11 // pred_check
          %p274 = pneg %p212
        $region42: #{tpu_custom_call.1} parent=11 // pred_check_branch
          %276 = sbr.rel (%p274) target = $region44
        $region43: #{tpu_custom_call.1} parent=11 // pred_region
          _
        $region44: #{tpu_custom_call.1} parent=11 // pred_fallthru
          _
      $region12: #{tpu_custom_call.1} parent=5 // pred_fallthru
        _
      %p277 = scmp.lt.s32.totalorder %s18, 2
      // Predicated region
      $region45: #{tpu_custom_call.1} parent=5 // pred_check
        %p278 = pneg %p277
      $region46: #{tpu_custom_call.1} parent=5 // pred_check_branch
        %280 = sbr.rel (%p278) target = $region48
      $region47: #{tpu_custom_call.1} parent=5 // pred_region
        // Predicated region
        $region49: #{tpu_custom_call.1} parent=47 // pred_check
          %p281 = pneg %p38
        $region50: #{tpu_custom_call.1} parent=47 // pred_check_branch
          %283 = sbr.rel (%p281) target = $region52
        $region51: #{tpu_custom_call.1} parent=47 // pred_region
          %p284 = scmp.lt.s32.totalorder %s18, 1
          %s285 = scalar_select %p284, %s18, 1
          %s286 = smul.addr %s285, 16
          %s287 = smul.addr %s286, 8
          %s288 = scalar_lea.vmem %s0, %s287
        $region52: #{tpu_custom_call.1} parent=47 // pred_fallthru
          _
      $region48: #{tpu_custom_call.1} parent=5 // pred_fallthru
        _
      %p289 = scmp.le.s32.totalorder 1, %s18
      %p290 = scmp.lt.s32.totalorder %s18, 3
      %p291 = pnand %p289, %p290
      %p292 = pneg %p291
      // Predicated region
      $region53: #{tpu_custom_call.1} parent=5 // pred_check
        _
      $region54: #{tpu_custom_call.1} parent=5 // pred_check_branch
        %294 = sbr.rel (%p291) target = $region56
      $region55: #{tpu_custom_call.1} parent=5 // pred_region
        %s295 = ssub.s32 %s18, 1
        %p296 = scmp.lt.s32.totalorder %s23, 1
        %s297 = scalar_select %p296, %s23, 1
        %s298 = smul.addr %s297, 16
        %s299 = smul.addr %s298, 8
        %s300 = scalar_lea.vmem %s0, %s299
        %p301 = pneg %p44
        %p302 = pneg %p41
        %p303 = pneg %p65
        %p304 = pneg %p62
        %p305 = pneg %p86
        %p306 = pneg %p83
        %p307 = pneg %p107
        %p308 = pneg %p104
        %p309 = pneg %p128
        %p310 = pneg %p125
        %p311 = pneg %p149
        %p312 = pneg %p146
        %p313 = pneg %p170
        %p314 = pneg %p167
        %p315 = pneg %p191
        %p316 = pneg %p188
        %p317 = pneg %p212
        %p318 = pneg %p209
        %p319 = pneg %p238
        %p320 = pneg %p235
        %s321 = sand.u32 %s225, 1
        %s322 = scalar_lea.sflag [#allocation5], %s321
        %s323 = sand.u32 %s225, 1
        %s324 = smul.addr %s323, 128
        %s325 = scalar_lea.vmem [#allocation4], %s324
        %p326 = scmp.lt.s32.totalorder %s23, 1
        %s327 = scalar_select %p326, %s23, 1
        %s328 = smul.addr %s327, 16
        %s329 = smul.addr %s328, 8
        %s330 = scalar_lea.vmem %s0, %s329
        %v332 = vld [vmem:[%s330] sm:$0xff]
        %v333 = vld [vmem:[%s330 + $0x8] sm:$0xff]
        %v334 = vld [vmem:[%s330 + $0x10] sm:$0xff]
        %v335 = vld [vmem:[%s330 + $0x18] sm:$0xff]
        %v336 = vld [vmem:[%s330 + $0x20] sm:$0xff]
        %v337 = vld [vmem:[%s330 + $0x28] sm:$0xff]
        %v338 = vld [vmem:[%s330 + $0x30] sm:$0xff]
        %v339 = vld [vmem:[%s330 + $0x38] sm:$0xff]
        %v340 = vld [vmem:[%s330 + $0x40] sm:$0xff]
        %v341 = vld [vmem:[%s330 + $0x48] sm:$0xff]
        %v342 = vld [vmem:[%s330 + $0x50] sm:$0xff]
        %v343 = vld [vmem:[%s330 + $0x58] sm:$0xff]
        %v344 = vld [vmem:[%s330 + $0x60] sm:$0xff]
        %v345 = vld [vmem:[%s330 + $0x68] sm:$0xff]
        %v346 = vld [vmem:[%s330 + $0x70] sm:$0xff]
        %v347 = vld [vmem:[%s330 + $0x78] sm:$0xff]
        %v348 = vadd.f32 %v332, %v333
        %349 = vadd.xlane.f32.xlu0 %v348
        %v350 = vpop.xlane.xlu0 %349
        %v351 = vadd.f32 %v334, %v335
        %352 = vadd.xlane.f32.xlu0 %v351
        %v353 = vpop.xlane.xlu0 %352
        %v354 = vadd.f32 %v336, %v337
        %355 = vadd.xlane.f32.xlu0 %v354
        %v356 = vpop.xlane.xlu0 %355
        %v357 = vadd.f32 %v338, %v339
        %358 = vadd.xlane.f32.xlu0 %v357
        %v359 = vpop.xlane.xlu0 %358
        %v360 = vadd.f32 %v340, %v341
        %361 = vadd.xlane.f32.xlu0 %v360
        %v362 = vpop.xlane.xlu0 %361
        %v363 = vadd.f32 %v342, %v343
        %364 = vadd.xlane.f32.xlu0 %v363
        %v365 = vpop.xlane.xlu0 %364
        %v366 = vadd.f32 %v344, %v345
        %367 = vadd.xlane.f32.xlu0 %v366
        %v368 = vpop.xlane.xlu0 %367
        %v369 = vadd.f32 %v346, %v347
        %370 = vadd.xlane.f32.xlu0 %v369
        %v371 = vpop.xlane.xlu0 %370
        %v372 = vmul.f32 %v332, %v332
        %v373 = vmul.f32 %v333, %v333
        %v374 = vmul.f32 %v334, %v334
        %v375 = vmul.f32 %v335, %v335
        %v376 = vmul.f32 %v336, %v336
        %v377 = vmul.f32 %v337, %v337
        %v378 = vmul.f32 %v338, %v338
        %v379 = vmul.f32 %v339, %v339
        %v380 = vmul.f32 %v340, %v340
        %v381 = vmul.f32 %v341, %v341
        %v382 = vmul.f32 %v342, %v342
        %v383 = vmul.f32 %v343, %v343
        %v384 = vmul.f32 %v344, %v344
        %v385 = vmul.f32 %v345, %v345
        %v386 = vmul.f32 %v346, %v346
        %v387 = vmul.f32 %v347, %v347
        %v388 = vadd.f32 %v372, %v373
        %389 = vadd.xlane.f32.xlu0 %v388
        %v390 = vpop.xlane.xlu0 %389
        %v391 = vadd.f32 %v374, %v375
        %392 = vadd.xlane.f32.xlu0 %v391
        %v393 = vpop.xlane.xlu0 %392
        %v394 = vadd.f32 %v376, %v377
        %395 = vadd.xlane.f32.xlu0 %v394
        %v396 = vpop.xlane.xlu0 %395
        %v397 = vadd.f32 %v378, %v379
        %398 = vadd.xlane.f32.xlu0 %v397
        %v399 = vpop.xlane.xlu0 %398
        %v400 = vadd.f32 %v380, %v381
        %401 = vadd.xlane.f32.xlu0 %v400
        %v402 = vpop.xlane.xlu0 %401
        %v403 = vadd.f32 %v382, %v383
        %404 = vadd.xlane.f32.xlu0 %v403
        %v405 = vpop.xlane.xlu0 %404
        %v406 = vadd.f32 %v384, %v385
        %407 = vadd.xlane.f32.xlu0 %v406
        %v408 = vpop.xlane.xlu0 %407
        %v409 = vadd.f32 %v386, %v387
        %410 = vadd.xlane.f32.xlu0 %v409
        %v411 = vpop.xlane.xlu0 %410
        %v412 = vld [vmem:[%s1] sm:$0xff]
        %v413 = vld [vmem:[%s1 + $0x8] sm:$0xff]
        %v414 = vld [vmem:[%s1 + $0x10] sm:$0xff]
        %v415 = vld [vmem:[%s1 + $0x18] sm:$0xff]
        %v416 = vld [vmem:[%s2] sm:$0xff]
        %v417 = vld [vmem:[%s2 + $0x8] sm:$0xff]
        %v418 = vld [vmem:[%s2 + $0x10] sm:$0xff]
        %v419 = vld [vmem:[%s2 + $0x18] sm:$0xff]
        %v420 = vld [vmem:[%s2 + $0x20] sm:$0xff]
        %v421 = vld [vmem:[%s2 + $0x28] sm:$0xff]
        %v422 = vld [vmem:[%s2 + $0x30] sm:$0xff]
        %v423 = vld [vmem:[%s2 + $0x38] sm:$0xff]
        %vm424 = vcmask 523264
        %v426 = vsel %vm424, %v412, 0
        %v429 = vsel %vm424, %v413, 0
        %v432 = vsel %vm424, %v414, 0
        %v435 = vsel %vm424, %v415, 0
        %437 = vmatprep.subr.mxu0 0.0
        %438 = vmatpush1.msra.mxu0 %v350
        %439 = vmatprep.subr.mxu0 0.0
        %440 = vmatpush1.msra.mxu0 %v353
        %441 = vmatprep.subr.mxu0 0.0
        %442 = vmatpush1.msra.mxu0 %v356
        %443 = vmatprep.subr.mxu0 0.0
        %444 = vmatpush1.msra.mxu0 %v359
        %445 = vmatprep.subr.mxu0 0.0
        %446 = vmatpush1.msra.mxu0 %v362
        %447 = vmatprep.subr.mxu0 0.0
        %448 = vmatpush1.msra.mxu0 %v365
        %449 = vmatprep.subr.mxu0 0.0
        %450 = vmatpush1.msra.mxu0 %v368
        %451 = vmatprep.subr.mxu0 0.0
        %452 = vmatpush1.msra.mxu0 %v371
        %453 = vmatprep.subr.mxu0 0.0
        %454 = vmatpush1.msra.mxu0 0.0
        %455 = vmatprep.subr.mxu0 0.0
        %456 = vmatpush1.msra.mxu0 0.0
        %457 = vmatprep.subr.mxu0 0.0
        %458 = vmatpush1.msra.mxu0 0.0
        %459 = vmatprep.subr.mxu0 0.0
        %460 = vmatpush1.msra.mxu0 0.0
        %461 = vmatprep.subr.mxu0 0.0
        %462 = vmatpush1.msra.mxu0 0.0
        %463 = vmatprep.subr.mxu0 0.0
        %464 = vmatpush1.msra.mxu0 0.0
        %465 = vmatprep.subr.mxu0 0.0
        %466 = vmatpush1.msra.mxu0 0.0
        %467 = vmatprep.subr.mxu0 0.0
        %468 = vmatpush1.msra.mxu0 0.0
        %469 = vmatprep.subr.mxu0 0.0
        %470 = vmatpush1.msra.mxu0 0.0
        %471 = vmatprep.subr.mxu0 0.0
        %472 = vmatpush1.msra.mxu0 0.0
        %473 = vmatprep.subr.mxu0 0.0
        %474 = vmatpush1.msra.mxu0 0.0
        %475 = vmatprep.subr.mxu0 0.0
        %476 = vmatpush1.msra.mxu0 0.0
        %477 = vmatprep.subr.mxu0 0.0
        %478 = vmatpush1.msra.mxu0 0.0
        %479 = vmatprep.subr.mxu0 0.0
        %480 = vmatpush1.msra.mxu0 0.0
        %481 = vmatprep.subr.mxu0 0.0
        %482 = vmatpush1.msra.mxu0 0.0
        %483 = vmatprep.subr.mxu0 0.0
        %484 = vmatpush1.msra.mxu0 0.0
        %485 = vmatprep.subr.mxu0 0.0
        %486 = vmatpush1.msra.mxu0 0.0
        %487 = vmatprep.subr.mxu0 0.0
        %488 = vmatpush1.msra.mxu0 0.0
        %489 = vmatprep.subr.mxu0 0.0
        %490 = vmatpush1.msra.mxu0 0.0
        %491 = vmatprep.subr.mxu0 0.0
        %492 = vmatpush1.msra.mxu0 0.0
        %493 = vmatprep.subr.mxu0 0.0
        %494 = vmatpush1.msra.mxu0 0.0
        %495 = vmatprep.subr.mxu0 0.0
        %496 = vmatpush1.msra.mxu0 0.0
        %497 = vmatprep.subr.mxu0 0.0
        %498 = vmatpush1.msra.mxu0 0.0
        %499 = vmatprep.subr.mxu0 0.0
        %500 = vmatpush1.msra.mxu0 0.0
        %501 = vmatprep.mubr.f32.mxu0 0.0
        %502 = vmatmul.mubr.f32.gmra.mrb[0].mxu0 %v426
        %v503 = vpop.f32.mrb[0].mxu0
        %v504 = vadd.f32 0.0, %v503
        %v505 = vpop.f32.mrb[0].mxu0
        %506 = vmatprep.mubr.f32.mxu0 0.0
        %507 = vmatmul.mubr.f32.gmra.mrb[0].mxu0 %v429
        %v508 = vpop.f32.mrb[0].mxu0
        %v509 = vadd.f32 0.0, %v508
        %v510 = vpop.f32.mrb[0].mxu0
        %511 = vmatprep.mubr.f32.mxu0 0.0
        %512 = vmatmul.mubr.f32.gmra.mrb[0].mxu0 %v432
        %v513 = vpop.f32.mrb[0].mxu0
        %v514 = vadd.f32 0.0, %v513
        %v515 = vpop.f32.mrb[0].mxu0
        %516 = vmatprep.mubr.f32.mxu0 0.0
        %517 = vmatmul.mubr.f32.gmra.mrb[0].mxu0 %v435
        %v518 = vpop.f32.mrb[0].mxu0
        %v519 = vadd.f32 0.0, %v518
        %v520 = vpop.f32.mrb[0].mxu0
        %521 = vdwg.mxu0
        %vm522 = vcmask 261120
        %v524 = vsel %vm522, %v416, 0
        %v527 = vsel %vm522, %v417, 0
        %v530 = vsel %vm522, %v418, 0
        %v533 = vsel %vm522, %v419, 0
        %v536 = vsel %vm522, %v420, 0
        %v539 = vsel %vm522, %v421, 0
        %v542 = vsel %vm522, %v422, 0
        %v545 = vsel %vm522, %v423, 0
        %547 = vmatprep.subr.mxu0 0.0
        %548 = vmatpush1.msra.mxu0 %v504
        %549 = vmatprep.subr.mxu0 0.0
        %550 = vmatpush1.msra.mxu0 %v509
        %551 = vmatprep.subr.mxu0 0.0
        %552 = vmatpush1.msra.mxu0 %v514
        %553 = vmatprep.subr.mxu0 0.0
        %554 = vmatpush1.msra.mxu0 %v519
        %555 = vmatprep.subr.mxu0 0.0
        %556 = vmatpush1.msra.mxu0 0.0
        %557 = vmatprep.subr.mxu0 0.0
        %558 = vmatpush1.msra.mxu0 0.0
        %559 = vmatprep.subr.mxu0 0.0
        %560 = vmatpush1.msra.mxu0 0.0
        %561 = vmatprep.subr.mxu0 0.0
        %562 = vmatpush1.msra.mxu0 0.0
        %563 = vmatprep.subr.mxu0 0.0
        %564 = vmatpush1.msra.mxu0 0.0
        %565 = vmatprep.subr.mxu0 0.0
        %566 = vmatpush1.msra.mxu0 0.0
        %567 = vmatprep.subr.mxu0 0.0
        %568 = vmatpush1.msra.mxu0 0.0
        %569 = vmatprep.subr.mxu0 0.0
        %570 = vmatpush1.msra.mxu0 0.0
        %571 = vmatprep.subr.mxu0 0.0
        %572 = vmatpush1.msra.mxu0 0.0
        %573 = vmatprep.subr.mxu0 0.0
        %574 = vmatpush1.msra.mxu0 0.0
        %575 = vmatprep.subr.mxu0 0.0
        %576 = vmatpush1.msra.mxu0 0.0
        %577 = vmatprep.subr.mxu0 0.0
        %578 = vmatpush1.msra.mxu0 0.0
        %579 = vmatprep.subr.mxu0 0.0
        %580 = vmatpush1.msra.mxu0 0.0
        %581 = vmatprep.subr.mxu0 0.0
        %582 = vmatpush1.msra.mxu0 0.0
        %583 = vmatprep.subr.mxu0 0.0
        %584 = vmatpush1.msra.mxu0 0.0
        %585 = vmatprep.subr.mxu0 0.0
        %586 = vmatpush1.msra.mxu0 0.0
        %587 = vmatprep.subr.mxu0 0.0
        %588 = vmatpush1.msra.mxu0 0.0
        %589 = vmatprep.subr.mxu0 0.0
        %590 = vmatpush1.msra.mxu0 0.0
        %591 = vmatprep.subr.mxu0 0.0
        %592 = vmatpush1.msra.mxu0 0.0
        %593 = vmatprep.subr.mxu0 0.0
        %594 = vmatpush1.msra.mxu0 0.0
        %595 = vmatprep.subr.mxu0 0.0
        %596 = vmatpush1.msra.mxu0 0.0
        %597 = vmatprep.subr.mxu0 0.0
        %598 = vmatpush1.msra.mxu0 0.0
        %599 = vmatprep.subr.mxu0 0.0
        %600 = vmatpush1.msra.mxu0 0.0
        %601 = vmatprep.subr.mxu0 0.0
        %602 = vmatpush1.msra.mxu0 0.0
        %603 = vmatprep.subr.mxu0 0.0
        %604 = vmatpush1.msra.mxu0 0.0
        %605 = vmatprep.subr.mxu0 0.0
        %606 = vmatpush1.msra.mxu0 0.0
        %607 = vmatprep.subr.mxu0 0.0
        %608 = vmatpush1.msra.mxu0 0.0
        %609 = vmatprep.subr.mxu0 0.0
        %610 = vmatpush1.msra.mxu0 0.0
        %611 = vmatprep.mubr.f32.mxu0 0.0
        %612 = vmatmul.mubr.f32.gmra.mrb[0].mxu0 %v524
        %v613 = vpop.f32.mrb[0].mxu0
        %v614 = vadd.f32 0.0, %v613
        %v615 = vpop.f32.mrb[0].mxu0
        %616 = vmatprep.mubr.f32.mxu0 0.0
        %617 = vmatmul.mubr.f32.gmra.mrb[0].mxu0 %v527
        %v618 = vpop.f32.mrb[0].mxu0
        %v619 = vadd.f32 0.0, %v618
        %v620 = vpop.f32.mrb[0].mxu0
        %621 = vmatprep.mubr.f32.mxu0 0.0
        %622 = vmatmul.mubr.f32.gmra.mrb[0].mxu0 %v530
        %v623 = vpop.f32.mrb[0].mxu0
        %v624 = vadd.f32 0.0, %v623
        %v625 = vpop.f32.mrb[0].mxu0
        %626 = vmatprep.mubr.f32.mxu0 0.0
        %627 = vmatmul.mubr.f32.gmra.mrb[0].mxu0 %v533
        %v628 = vpop.f32.mrb[0].mxu0
        %v629 = vadd.f32 0.0, %v628
        %v630 = vpop.f32.mrb[0].mxu0
        %631 = vmatprep.mubr.f32.mxu0 0.0
        %632 = vmatmul.mubr.f32.gmra.mrb[0].mxu0 %v536
        %v633 = vpop.f32.mrb[0].mxu0
        %v634 = vadd.f32 0.0, %v633
        %v635 = vpop.f32.mrb[0].mxu0
        %636 = vmatprep.mubr.f32.mxu0 0.0
        %637 = vmatmul.mubr.f32.gmra.mrb[0].mxu0 %v539
        %v638 = vpop.f32.mrb[0].mxu0
        %v639 = vadd.f32 0.0, %v638
        %v640 = vpop.f32.mrb[0].mxu0
        %641 = vmatprep.mubr.f32.mxu0 0.0
        %642 = vmatmul.mubr.f32.gmra.mrb[0].mxu0 %v542
        %v643 = vpop.f32.mrb[0].mxu0
        %v644 = vadd.f32 0.0, %v643
        %v645 = vpop.f32.mrb[0].mxu0
        %646 = vmatprep.mubr.f32.mxu0 0.0
        %647 = vmatmul.mubr.f32.gmra.mrb[0].mxu0 %v545
        %v648 = vpop.f32.mrb[0].mxu0
        %v649 = vadd.f32 0.0, %v648
        %v650 = vpop.f32.mrb[0].mxu0
        %651 = vdwg.mxu0
        %652 = vmatprep.subr.mxu0 0.0
        %653 = vmatpush1.msra.mxu0 %v390
        %654 = vmatprep.subr.mxu0 0.0
        %655 = vmatpush1.msra.mxu0 %v393
        %656 = vmatprep.subr.mxu0 0.0
        %657 = vmatpush1.msra.mxu0 %v396
        %658 = vmatprep.subr.mxu0 0.0
        %659 = vmatpush1.msra.mxu0 %v399
        %660 = vmatprep.subr.mxu0 0.0
        %661 = vmatpush1.msra.mxu0 %v402
        %662 = vmatprep.subr.mxu0 0.0
        %663 = vmatpush1.msra.mxu0 %v405
        %664 = vmatprep.subr.mxu0 0.0
        %665 = vmatpush1.msra.mxu0 %v408
        %666 = vmatprep.subr.mxu0 0.0
        %667 = vmatpush1.msra.mxu0 %v411
        %668 = vmatprep.subr.mxu0 0.0
        %669 = vmatpush1.msra.mxu0 0.0
        %670 = vmatprep.subr.mxu0 0.0
        %671 = vmatpush1.msra.mxu0 0.0
        %672 = vmatprep.subr.mxu0 0.0
        %673 = vmatpush1.msra.mxu0 0.0
        %674 = vmatprep.subr.mxu0 0.0
        %675 = vmatpush1.msra.mxu0 0.0
        %676 = vmatprep.subr.mxu0 0.0
        %677 = vmatpush1.msra.mxu0 0.0
        %678 = vmatprep.subr.mxu0 0.0
        %679 = vmatpush1.msra.mxu0 0.0
        %680 = vmatprep.subr.mxu0 0.0
        %681 = vmatpush1.msra.mxu0 0.0
        %682 = vmatprep.subr.mxu0 0.0
        %683 = vmatpush1.msra.mxu0 0.0
        %684 = vmatprep.subr.mxu0 0.0
        %685 = vmatpush1.msra.mxu0 0.0
        %686 = vmatprep.subr.mxu0 0.0
        %687 = vmatpush1.msra.mxu0 0.0
        %688 = vmatprep.subr.mxu0 0.0
        %689 = vmatpush1.msra.mxu0 0.0
        %690 = vmatprep.subr.mxu0 0.0
        %691 = vmatpush1.msra.mxu0 0.0
        %692 = vmatprep.subr.mxu0 0.0
        %693 = vmatpush1.msra.mxu0 0.0
        %694 = vmatprep.subr.mxu0 0.0
        %695 = vmatpush1.msra.mxu0 0.0
        %696 = vmatprep.subr.mxu0 0.0
        %697 = vmatpush1.msra.mxu0 0.0
        %698 = vmatprep.subr.mxu0 0.0
        %699 = vmatpush1.msra.mxu0 0.0
        %700 = vmatprep.subr.mxu0 0.0
        %701 = vmatpush1.msra.mxu0 0.0
        %702 = vmatprep.subr.mxu0 0.0
        %703 = vmatpush1.msra.mxu0 0.0
        %704 = vmatprep.subr.mxu0 0.0
        %705 = vmatpush1.msra.mxu0 0.0
        %706 = vmatprep.subr.mxu0 0.0
        %707 = vmatpush1.msra.mxu0 0.0
        %708 = vmatprep.subr.mxu0 0.0
        %709 = vmatpush1.msra.mxu0 0.0
        %710 = vmatprep.subr.mxu0 0.0
        %711 = vmatpush1.msra.mxu0 0.0
        %712 = vmatprep.subr.mxu0 0.0
        %713 = vmatpush1.msra.mxu0 0.0
        %714 = vmatprep.subr.mxu0 0.0
        %715 = vmatpush1.msra.mxu0 0.0
        %716 = vmatprep.mubr.f32.mxu0 0.0
        %717 = vmatmul.mubr.f32.gmra.mrb[0].mxu0 %v426
        %v718 = vpop.f32.mrb[0].mxu0
        %v719 = vadd.f32 0.0, %v718
        %v720 = vpop.f32.mrb[0].mxu0
        %721 = vmatprep.mubr.f32.mxu0 0.0
        %722 = vmatmul.mubr.f32.gmra.mrb[0].mxu0 %v429
        %v723 = vpop.f32.mrb[0].mxu0
        %v724 = vadd.f32 0.0, %v723
        %v725 = vpop.f32.mrb[0].mxu0
        %726 = vmatprep.mubr.f32.mxu0 0.0
        %727 = vmatmul.mubr.f32.gmra.mrb[0].mxu0 %v432
        %v728 = vpop.f32.mrb[0].mxu0
        %v729 = vadd.f32 0.0, %v728
        %v730 = vpop.f32.mrb[0].mxu0
        %731 = vmatprep.mubr.f32.mxu0 0.0
        %732 = vmatmul.mubr.f32.gmra.mrb[0].mxu0 %v435
        %v733 = vpop.f32.mrb[0].mxu0
        %v734 = vadd.f32 0.0, %v733
        %v735 = vpop.f32.mrb[0].mxu0
        %736 = vdwg.mxu0
        %737 = vmatprep.subr.mxu0 0.0
        %738 = vmatpush1.msra.mxu0 %v719
        %739 = vmatprep.subr.mxu0 0.0
        %740 = vmatpush1.msra.mxu0 %v724
        %741 = vmatprep.subr.mxu0 0.0
        %742 = vmatpush1.msra.mxu0 %v729
        %743 = vmatprep.subr.mxu0 0.0
        %744 = vmatpush1.msra.mxu0 %v734
        %745 = vmatprep.subr.mxu0 0.0
        %746 = vmatpush1.msra.mxu0 0.0
        %747 = vmatprep.subr.mxu0 0.0
        %748 = vmatpush1.msra.mxu0 0.0
        %749 = vmatprep.subr.mxu0 0.0
        %750 = vmatpush1.msra.mxu0 0.0
        %751 = vmatprep.subr.mxu0 0.0
        %752 = vmatpush1.msra.mxu0 0.0
        %753 = vmatprep.subr.mxu0 0.0
        %754 = vmatpush1.msra.mxu0 0.0
        %755 = vmatprep.subr.mxu0 0.0
        %756 = vmatpush1.msra.mxu0 0.0
        %757 = vmatprep.subr.mxu0 0.0
        %758 = vmatpush1.msra.mxu0 0.0
        %759 = vmatprep.subr.mxu0 0.0
        %760 = vmatpush1.msra.mxu0 0.0
        %761 = vmatprep.subr.mxu0 0.0
        %762 = vmatpush1.msra.mxu0 0.0
        %763 = vmatprep.subr.mxu0 0.0
        %764 = vmatpush1.msra.mxu0 0.0
        %765 = vmatprep.subr.mxu0 0.0
        %766 = vmatpush1.msra.mxu0 0.0
        %767 = vmatprep.subr.mxu0 0.0
        %768 = vmatpush1.msra.mxu0 0.0
        %769 = vmatprep.subr.mxu0 0.0
        %770 = vmatpush1.msra.mxu0 0.0
        %771 = vmatprep.subr.mxu0 0.0
        %772 = vmatpush1.msra.mxu0 0.0
        %773 = vmatprep.subr.mxu0 0.0
        %774 = vmatpush1.msra.mxu0 0.0
        %775 = vmatprep.subr.mxu0 0.0
        %776 = vmatpush1.msra.mxu0 0.0
        %777 = vmatprep.subr.mxu0 0.0
        %778 = vmatpush1.msra.mxu0 0.0
        %779 = vmatprep.subr.mxu0 0.0
        %780 = vmatpush1.msra.mxu0 0.0
        %781 = vmatprep.subr.mxu0 0.0
        %782 = vmatpush1.msra.mxu0 0.0
        %783 = vmatprep.subr.mxu0 0.0
        %784 = vmatpush1.msra.mxu0 0.0
        %785 = vmatprep.subr.mxu0 0.0
        %786 = vmatpush1.msra.mxu0 0.0
        %787 = vmatprep.subr.mxu0 0.0
        %788 = vmatpush1.msra.mxu0 0.0
        %789 = vmatprep.subr.mxu0 0.0
        %790 = vmatpush1.msra.mxu0 0.0
        %791 = vmatprep.subr.mxu0 0.0
        %792 = vmatpush1.msra.mxu0 0.0
        %793 = vmatprep.subr.mxu0 0.0
        %794 = vmatpush1.msra.mxu0 0.0
        %795 = vmatprep.subr.mxu0 0.0
        %796 = vmatpush1.msra.mxu0 0.0
        %797 = vmatprep.subr.mxu0 0.0
        %798 = vmatpush1.msra.mxu0 0.0
        %799 = vmatprep.subr.mxu0 0.0
        %800 = vmatpush1.msra.mxu0 0.0
        %801 = vmatprep.mubr.f32.mxu0 0.0
        %802 = vmatmul.mubr.f32.gmra.mrb[0].mxu0 %v524
        %v803 = vpop.f32.mrb[0].mxu0
        %v804 = vadd.f32 0.0, %v803
        %v805 = vpop.f32.mrb[0].mxu0
        %806 = vmatprep.mubr.f32.mxu0 0.0
        %807 = vmatmul.mubr.f32.gmra.mrb[0].mxu0 %v527
        %v808 = vpop.f32.mrb[0].mxu0
        %v809 = vadd.f32 0.0, %v808
        %v810 = vpop.f32.mrb[0].mxu0
        %811 = vmatprep.mubr.f32.mxu0 0.0
        %812 = vmatmul.mubr.f32.gmra.mrb[0].mxu0 %v530
        %v813 = vpop.f32.mrb[0].mxu0
        %v814 = vadd.f32 0.0, %v813
        %v815 = vpop.f32.mrb[0].mxu0
        %816 = vmatprep.mubr.f32.mxu0 0.0
        %817 = vmatmul.mubr.f32.gmra.mrb[0].mxu0 %v533
        %v818 = vpop.f32.mrb[0].mxu0
        %v819 = vadd.f32 0.0, %v818
        %v820 = vpop.f32.mrb[0].mxu0
        %821 = vmatprep.mubr.f32.mxu0 0.0
        %822 = vmatmul.mubr.f32.gmra.mrb[0].mxu0 %v536
        %v823 = vpop.f32.mrb[0].mxu0
        %v824 = vadd.f32 0.0, %v823
        %v825 = vpop.f32.mrb[0].mxu0
        %826 = vmatprep.mubr.f32.mxu0 0.0
        %827 = vmatmul.mubr.f32.gmra.mrb[0].mxu0 %v539
        %v828 = vpop.f32.mrb[0].mxu0
        %v829 = vadd.f32 0.0, %v828
        %v830 = vpop.f32.mrb[0].mxu0
        %831 = vmatprep.mubr.f32.mxu0 0.0
        %832 = vmatmul.mubr.f32.gmra.mrb[0].mxu0 %v542
        %v833 = vpop.f32.mrb[0].mxu0
        %v834 = vadd.f32 0.0, %v833
        %v835 = vpop.f32.mrb[0].mxu0
        %836 = vmatprep.mubr.f32.mxu0 0.0
        %837 = vmatmul.mubr.f32.gmra.mrb[0].mxu0 %v545
        %v838 = vpop.f32.mrb[0].mxu0
        %v839 = vadd.f32 0.0, %v838
        %v840 = vpop.f32.mrb[0].mxu0
        %841 = vdwg.mxu0
        %v842 = vmul.f32 %v614, %v614
        %v843 = vmul.f32 %v619, %v619
        %v844 = vmul.f32 %v624, %v624
        %v845 = vmul.f32 %v629, %v629
        %v846 = vmul.f32 %v634, %v634
        %v847 = vmul.f32 %v639, %v639
        %v848 = vmul.f32 %v644, %v644
        %v849 = vmul.f32 %v649, %v649
        %v850 = vsub.f32 %v804, %v842
        %v851 = vsub.f32 %v809, %v843
        %v852 = vsub.f32 %v814, %v844
        %v853 = vsub.f32 %v819, %v845
        %v854 = vsub.f32 %v824, %v846
        %v855 = vsub.f32 %v829, %v847
        %v856 = vsub.f32 %v834, %v848
        %v857 = vsub.f32 %v839, %v849
        %v858 = vmax.f32 %v850, 0.0
        %v859 = vmax.f32 %v851, 0.0
        %v860 = vmax.f32 %v852, 0.0
        %v861 = vmax.f32 %v853, 0.0
        %v862 = vmax.f32 %v854, 0.0
        %v863 = vmax.f32 %v855, 0.0
        %v864 = vmax.f32 %v856, 0.0
        %v865 = vmax.f32 %v857, 0.0
        %867 = vset.pattern.permute.xlu0 0
        %868 = vperm.xlu0 %867, %v614
        %v869 = vpop.permute.xlu0 %868
        %872 = vset.pattern.permute.xlu0 0
        %873 = vperm.xlu0 %872, %v619
        %v874 = vpop.permute.xlu0 %873
        %877 = vset.pattern.permute.xlu0 0
        %878 = vperm.xlu0 %877, %v624
        %v879 = vpop.permute.xlu0 %878
        %882 = vset.pattern.permute.xlu0 0
        %883 = vperm.xlu0 %882, %v629
        %v884 = vpop.permute.xlu0 %883
        %887 = vset.pattern.permute.xlu0 0
        %888 = vperm.xlu0 %887, %v634
        %v889 = vpop.permute.xlu0 %888
        %892 = vset.pattern.permute.xlu0 0
        %893 = vperm.xlu0 %892, %v639
        %v894 = vpop.permute.xlu0 %893
        %897 = vset.pattern.permute.xlu0 0
        %898 = vperm.xlu0 %897, %v644
        %v899 = vpop.permute.xlu0 %898
        %902 = vset.pattern.permute.xlu0 0
        %903 = vperm.xlu0 %902, %v649
        %v904 = vpop.permute.xlu0 %903
        %v906 = vsub.f32 %v332, %v869
        %v907 = vsub.f32 %v333, %v869
        %v908 = vsub.f32 %v334, %v874
        %v909 = vsub.f32 %v335, %v874
        %v910 = vsub.f32 %v336, %v879
        %v911 = vsub.f32 %v337, %v879
        %v912 = vsub.f32 %v338, %v884
        %v913 = vsub.f32 %v339, %v884
        %v914 = vsub.f32 %v340, %v889
        %v915 = vsub.f32 %v341, %v889
        %v916 = vsub.f32 %v342, %v894
        %v917 = vsub.f32 %v343, %v894
        %v918 = vsub.f32 %v344, %v899
        %v919 = vsub.f32 %v345, %v899
        %v920 = vsub.f32 %v346, %v904
        %v921 = vsub.f32 %v347, %v904
        %v922 = vadd.f32 %v858, 1e-05
        %v923 = vadd.f32 %v859, 1e-05
        %v924 = vadd.f32 %v860, 1e-05
        %v925 = vadd.f32 %v861, 1e-05
        %v926 = vadd.f32 %v862, 1e-05
        %v927 = vadd.f32 %v863, 1e-05
        %v928 = vadd.f32 %v864, 1e-05
        %v929 = vadd.f32 %v865, 1e-05
        %v930 = vrsqrt.pop %v922
        %v931 = vrsqrt.pop %v923
        %v932 = vrsqrt.pop %v924
        %v933 = vrsqrt.pop %v925
        %v934 = vrsqrt.pop %v926
        %v935 = vrsqrt.pop %v927
        %v936 = vrsqrt.pop %v928
        %v937 = vrsqrt.pop %v929
        %939 = vset.pattern.permute.xlu0 0
        %940 = vperm.xlu0 %939, %v930
        %v941 = vpop.permute.xlu0 %940
        %944 = vset.pattern.permute.xlu0 0
        %945 = vperm.xlu0 %944, %v931
        %v946 = vpop.permute.xlu0 %945
        %949 = vset.pattern.permute.xlu0 0
        %950 = vperm.xlu0 %949, %v932
        %v951 = vpop.permute.xlu0 %950
        %954 = vset.pattern.permute.xlu0 0
        %955 = vperm.xlu0 %954, %v933
        %v956 = vpop.permute.xlu0 %955
        %959 = vset.pattern.permute.xlu0 0
        %960 = vperm.xlu0 %959, %v934
        %v961 = vpop.permute.xlu0 %960
        %964 = vset.pattern.permute.xlu0 0
        %965 = vperm.xlu0 %964, %v935
        %v966 = vpop.permute.xlu0 %965
        %969 = vset.pattern.permute.xlu0 0
        %970 = vperm.xlu0 %969, %v936
        %v971 = vpop.permute.xlu0 %970
        %974 = vset.pattern.permute.xlu0 0
        %975 = vperm.xlu0 %974, %v937
        %v976 = vpop.permute.xlu0 %975
        %v978 = vmul.f32 %v906, %v941
        %v979 = vmul.f32 %v907, %v941
        %v980 = vmul.f32 %v908, %v946
        %v981 = vmul.f32 %v909, %v946
        %v982 = vmul.f32 %v910, %v951
        %v983 = vmul.f32 %v911, %v951
        %v984 = vmul.f32 %v912, %v956
        %v985 = vmul.f32 %v913, %v956
        %v986 = vmul.f32 %v914, %v961
        %v987 = vmul.f32 %v915, %v961
        %v988 = vmul.f32 %v916, %v966
        %v989 = vmul.f32 %v917, %v966
        %v990 = vmul.f32 %v918, %v971
        %v991 = vmul.f32 %v919, %v971
        %v992 = vmul.f32 %v920, %v976
        %v993 = vmul.f32 %v921, %v976
        %v994 = vld [vmem:[%s3] sm:$0xff]
        %v995 = vld [vmem:[%s3 + $0x8] sm:$0xff]
        %v996 = vld [vmem:[%s3 + $0x10] sm:$0xff]
        %v997 = vld [vmem:[%s3 + $0x18] sm:$0xff]
        %v998 = vld [vmem:[%s3 + $0x20] sm:$0xff]
        %v999 = vld [vmem:[%s3 + $0x28] sm:$0xff]
        %v1000 = vld [vmem:[%s3 + $0x30] sm:$0xff]
        %v1001 = vld [vmem:[%s3 + $0x38] sm:$0xff]
        %1003 = vset.pattern.permute.xlu0 0
        %1004 = vperm.xlu0 %1003, %v994
        %v1005 = vpop.permute.xlu0 %1004
        %1008 = vset.pattern.permute.xlu0 0
        %1009 = vperm.xlu0 %1008, %v995
        %v1010 = vpop.permute.xlu0 %1009
        %1013 = vset.pattern.permute.xlu0 0
        %1014 = vperm.xlu0 %1013, %v996
        %v1015 = vpop.permute.xlu0 %1014
        %1018 = vset.pattern.permute.xlu0 0
        %1019 = vperm.xlu0 %1018, %v997
        %v1020 = vpop.permute.xlu0 %1019
        %1023 = vset.pattern.permute.xlu0 0
        %1024 = vperm.xlu0 %1023, %v998
        %v1025 = vpop.permute.xlu0 %1024
        %1028 = vset.pattern.permute.xlu0 0
        %1029 = vperm.xlu0 %1028, %v999
        %v1030 = vpop.permute.xlu0 %1029
        %1033 = vset.pattern.permute.xlu0 0
        %1034 = vperm.xlu0 %1033, %v1000
        %v1035 = vpop.permute.xlu0 %1034
        %1038 = vset.pattern.permute.xlu0 0
        %1039 = vperm.xlu0 %1038, %v1001
        %v1040 = vpop.permute.xlu0 %1039
        %v1042 = vmul.f32 %v978, %v1005
        %v1043 = vmul.f32 %v979, %v1005
        %v1044 = vmul.f32 %v980, %v1010
        %v1045 = vmul.f32 %v981, %v1010
        %v1046 = vmul.f32 %v982, %v1015
        %v1047 = vmul.f32 %v983, %v1015
        %v1048 = vmul.f32 %v984, %v1020
        %v1049 = vmul.f32 %v985, %v1020
        %v1050 = vmul.f32 %v986, %v1025
        %v1051 = vmul.f32 %v987, %v1025
        %v1052 = vmul.f32 %v988, %v1030
        %v1053 = vmul.f32 %v989, %v1030
        %v1054 = vmul.f32 %v990, %v1035
        %v1055 = vmul.f32 %v991, %v1035
        %v1056 = vmul.f32 %v992, %v1040
        %v1057 = vmul.f32 %v993, %v1040
        %v1058 = vld [vmem:[%s4] sm:$0xff]
        %v1059 = vld [vmem:[%s4 + $0x8] sm:$0xff]
        %v1060 = vld [vmem:[%s4 + $0x10] sm:$0xff]
        %v1061 = vld [vmem:[%s4 + $0x18] sm:$0xff]
        %v1062 = vld [vmem:[%s4 + $0x20] sm:$0xff]
        %v1063 = vld [vmem:[%s4 + $0x28] sm:$0xff]
        %v1064 = vld [vmem:[%s4 + $0x30] sm:$0xff]
        %v1065 = vld [vmem:[%s4 + $0x38] sm:$0xff]
        %1067 = vset.pattern.permute.xlu0 0
        %1068 = vperm.xlu0 %1067, %v1058
        %v1069 = vpop.permute.xlu0 %1068
        %1072 = vset.pattern.permute.xlu0 0
        %1073 = vperm.xlu0 %1072, %v1059
        %v1074 = vpop.permute.xlu0 %1073
        %1077 = vset.pattern.permute.xlu0 0
        %1078 = vperm.xlu0 %1077, %v1060
        %v1079 = vpop.permute.xlu0 %1078
        %1082 = vset.pattern.permute.xlu0 0
        %1083 = vperm.xlu0 %1082, %v1061
        %v1084 = vpop.permute.xlu0 %1083
        %1087 = vset.pattern.permute.xlu0 0
        %1088 = vperm.xlu0 %1087, %v1062
        %v1089 = vpop.permute.xlu0 %1088
        %1092 = vset.pattern.permute.xlu0 0
        %1093 = vperm.xlu0 %1092, %v1063
        %v1094 = vpop.permute.xlu0 %1093
        %1097 = vset.pattern.permute.xlu0 0
        %1098 = vperm.xlu0 %1097, %v1064
        %v1099 = vpop.permute.xlu0 %1098
        %1102 = vset.pattern.permute.xlu0 0
        %1103 = vperm.xlu0 %1102, %v1065
        %v1104 = vpop.permute.xlu0 %1103
        %v1106 = vadd.f32 %v1042, %v1069
        %v1107 = vadd.f32 %v1043, %v1069
        %v1108 = vadd.f32 %v1044, %v1074
        %v1109 = vadd.f32 %v1045, %v1074
        %v1110 = vadd.f32 %v1046, %v1079
        %v1111 = vadd.f32 %v1047, %v1079
        %v1112 = vadd.f32 %v1048, %v1084
        %v1113 = vadd.f32 %v1049, %v1084
        %v1114 = vadd.f32 %v1050, %v1089
        %v1115 = vadd.f32 %v1051, %v1089
        %v1116 = vadd.f32 %v1052, %v1094
        %v1117 = vadd.f32 %v1053, %v1094
        %v1118 = vadd.f32 %v1054, %v1099
        %v1119 = vadd.f32 %v1055, %v1099
        %v1120 = vadd.f32 %v1056, %v1104
        %v1121 = vadd.f32 %v1057, %v1104
        %v1122 = vld [vmem:[%s5] sm:$0xf]
        %v1123 = vld [vmem:[%s5 + $0x4] sm:$0xf]
        %v1124 = vld [vmem:[%s5 + $0x8] sm:$0xf]
        %v1125 = vld [vmem:[%s5 + $0xc] sm:$0xf]
        %v1126 = vld [vmem:[%s5 + $0x10] sm:$0xf]
        %v1127 = vld [vmem:[%s5 + $0x14] sm:$0xf]
        %v1128 = vld [vmem:[%s5 + $0x18] sm:$0xf]
        %v1129 = vld [vmem:[%s5 + $0x1c] sm:$0xf]
        %v1130 = vld [vmem:[%s5 + $0x20] sm:$0xf]
        %v1131 = vld [vmem:[%s5 + $0x24] sm:$0xf]
        %v1132 = vld [vmem:[%s5 + $0x28] sm:$0xf]
        %v1133 = vld [vmem:[%s5 + $0x2c] sm:$0xf]
        %v1134 = vld [vmem:[%s5 + $0x30] sm:$0xf]
        %v1135 = vld [vmem:[%s5 + $0x34] sm:$0xf]
        %v1136 = vld [vmem:[%s5 + $0x38] sm:$0xf]
        %v1137 = vld [vmem:[%s5 + $0x3c] sm:$0xf]
        %v1138 = vld [vmem:[%s5 + $0x40] sm:$0xf]
        %v1139 = vld [vmem:[%s5 + $0x44] sm:$0xf]
        %v1140 = vld [vmem:[%s5 + $0x48] sm:$0xf]
        %v1141 = vld [vmem:[%s5 + $0x4c] sm:$0xf]
        %v1142 = vld [vmem:[%s5 + $0x50] sm:$0xf]
        %v1143 = vld [vmem:[%s5 + $0x54] sm:$0xf]
        %v1144 = vld [vmem:[%s5 + $0x58] sm:$0xf]
        %v1145 = vld [vmem:[%s5 + $0x5c] sm:$0xf]
        %v1146 = vpack.c.bf16 %v1108, %v1106
        %v1147 = vpack.c.bf16 %v1109, %v1107
        %v1148 = vpack.c.bf16 %v1112, %v1110
        %v1149 = vpack.c.bf16 %v1113, %v1111
        %v1150 = vpack.c.bf16 %v1116, %v1114
        %v1151 = vpack.c.bf16 %v1117, %v1115
        %v1152 = vpack.c.bf16 %v1120, %v1118
        %v1153 = vpack.c.bf16 %v1121, %v1119
        %v1154 = vld [vmem:[%s6] sm:$0xff]
        %v1155 = vld [vmem:[%s6 + $0x8] sm:$0xff]
        %v1156 = vld [vmem:[%s6 + $0x10] sm:$0xff]
        %v1157 = vld [vmem:[%s6 + $0x18] sm:$0xff]
        %v1158 = vld [vmem:[%s6 + $0x20] sm:$0xff]
        %v1159 = vld [vmem:[%s6 + $0x28] sm:$0xff]
        %v1160 = vld [vmem:[%s6 + $0x30] sm:$0xff]
        %v1161 = vld [vmem:[%s6 + $0x38] sm:$0xff]
        %v1162 = vld [vmem:[%s6 + $0x40] sm:$0xff]
        %v1163 = vld [vmem:[%s6 + $0x48] sm:$0xff]
        %v1164 = vld [vmem:[%s6 + $0x50] sm:$0xff]
        %v1165 = vld [vmem:[%s6 + $0x58] sm:$0xff]
        %v1166 = vld [vmem:[%s6 + $0x60] sm:$0xff]
        %v1167 = vld [vmem:[%s6 + $0x68] sm:$0xff]
        %v1168 = vld [vmem:[%s6 + $0x70] sm:$0xff]
        %v1169 = vld [vmem:[%s6 + $0x78] sm:$0xff]
        %v1170 = vld [vmem:[%s6 + $0x80] sm:$0xff]
        %v1171 = vld [vmem:[%s6 + $0x88] sm:$0xff]
        %v1172 = vld [vmem:[%s6 + $0x90] sm:$0xff]
        %v1173 = vld [vmem:[%s6 + $0x98] sm:$0xff]
        %v1174 = vld [vmem:[%s6 + $0xa0] sm:$0xff]
        %v1175 = vld [vmem:[%s6 + $0xa8] sm:$0xff]
        %v1176 = vld [vmem:[%s6 + $0xb0] sm:$0xff]
        %v1177 = vld [vmem:[%s6 + $0xb8] sm:$0xff]
        %1179 = vset.pattern.permute.xlu0 0
        %1180 = vperm.xlu0 %1179, %v1154
        %v1181 = vpop.permute.xlu0 %1180
        %1184 = vset.pattern.permute.xlu0 0
        %1185 = vperm.xlu0 %1184, %v1155
        %v1186 = vpop.permute.xlu0 %1185
        %1189 = vset.pattern.permute.xlu0 0
        %1190 = vperm.xlu0 %1189, %v1156
        %v1191 = vpop.permute.xlu0 %1190
        %1194 = vset.pattern.permute.xlu0 0
        %1195 = vperm.xlu0 %1194, %v1157
        %v1196 = vpop.permute.xlu0 %1195
        %1199 = vset.pattern.permute.xlu0 0
        %1200 = vperm.xlu0 %1199, %v1158
        %v1201 = vpop.permute.xlu0 %1200
        %1204 = vset.pattern.permute.xlu0 0
        %1205 = vperm.xlu0 %1204, %v1159
        %v1206 = vpop.permute.xlu0 %1205
        %1209 = vset.pattern.permute.xlu0 0
        %1210 = vperm.xlu0 %1209, %v1160
        %v1211 = vpop.permute.xlu0 %1210
        %1214 = vset.pattern.permute.xlu0 0
        %1215 = vperm.xlu0 %1214, %v1161
        %v1216 = vpop.permute.xlu0 %1215
        %1219 = vset.pattern.permute.xlu0 0
        %1220 = vperm.xlu0 %1219, %v1162
        %v1221 = vpop.permute.xlu0 %1220
        %1224 = vset.pattern.permute.xlu0 0
        %1225 = vperm.xlu0 %1224, %v1163
        %v1226 = vpop.permute.xlu0 %1225
        %1229 = vset.pattern.permute.xlu0 0
        %1230 = vperm.xlu0 %1229, %v1164
        %v1231 = vpop.permute.xlu0 %1230
        %1234 = vset.pattern.permute.xlu0 0
        %1235 = vperm.xlu0 %1234, %v1165
        %v1236 = vpop.permute.xlu0 %1235
        %1239 = vset.pattern.permute.xlu0 0
        %1240 = vperm.xlu0 %1239, %v1166
        %v1241 = vpop.permute.xlu0 %1240
        %1244 = vset.pattern.permute.xlu0 0
        %1245 = vperm.xlu0 %1244, %v1167
        %v1246 = vpop.permute.xlu0 %1245
        %1249 = vset.pattern.permute.xlu0 0
        %1250 = vperm.xlu0 %1249, %v1168
        %v1251 = vpop.permute.xlu0 %1250
        %1254 = vset.pattern.permute.xlu0 0
        %1255 = vperm.xlu0 %1254, %v1169
        %v1256 = vpop.permute.xlu0 %1255
        %1259 = vset.pattern.permute.xlu0 0
        %1260 = vperm.xlu0 %1259, %v1170
        %v1261 = vpop.permute.xlu0 %1260
        %1264 = vset.pattern.permute.xlu0 0
        %1265 = vperm.xlu0 %1264, %v1171
        %v1266 = vpop.permute.xlu0 %1265
        %1269 = vset.pattern.permute.xlu0 0
        %1270 = vperm.xlu0 %1269, %v1172
        %v1271 = vpop.permute.xlu0 %1270
        %1274 = vset.pattern.permute.xlu0 0
        %1275 = vperm.xlu0 %1274, %v1173
        %v1276 = vpop.permute.xlu0 %1275
        %1279 = vset.pattern.permute.xlu0 0
        %1280 = vperm.xlu0 %1279, %v1174
        %v1281 = vpop.permute.xlu0 %1280
        %1284 = vset.pattern.permute.xlu0 0
        %1285 = vperm.xlu0 %1284, %v1175
        %v1286 = vpop.permute.xlu0 %1285
        %1289 = vset.pattern.permute.xlu0 0
        %1290 = vperm.xlu0 %1289, %v1176
        %v1291 = vpop.permute.xlu0 %1290
        %1294 = vset.pattern.permute.xlu0 0
        %1295 = vperm.xlu0 %1294, %v1177
        %v1296 = vpop.permute.xlu0 %1295
        %v1322 = vunpack.c.l.b16 %v1122
        %v1323 = vunpack.c.l.b16 %v1123
        %v1324 = vunpack.c.l.b16 %v1124
        %v1325 = vunpack.c.l.b16 %v1125
        %v1326 = vunpack.c.l.b16 %v1126
        %v1327 = vunpack.c.l.b16 %v1127
        %v1328 = vunpack.c.l.b16 %v1128
        %v1329 = vunpack.c.l.b16 %v1129
        %v1330 = vunpack.c.l.b16 %v1130
        %v1331 = vunpack.c.l.b16 %v1131
        %v1332 = vunpack.c.l.b16 %v1132
        %v1333 = vunpack.c.l.b16 %v1133
        %v1334 = vunpack.c.l.b16 %v1134
        %v1335 = vunpack.c.l.b16 %v1135
        %v1336 = vunpack.c.l.b16 %v1136
        %v1337 = vunpack.c.l.b16 %v1137
        %v1338 = vunpack.c.l.b16 %v1138
        %v1339 = vunpack.c.l.b16 %v1139
        %v1340 = vunpack.c.l.b16 %v1140
        %v1341 = vunpack.c.l.b16 %v1141
        %v1342 = vunpack.c.l.b16 %v1142
        %v1343 = vunpack.c.l.b16 %v1143
        %v1344 = vunpack.c.l.b16 %v1144
        %v1345 = vunpack.c.l.b16 %v1145
        %v1346 = vpack.c.b16 %v1323, %v1322
        %v1347 = vpack.c.b16 %v1325, %v1324
        %v1348 = vpack.c.b16 %v1327, %v1326
        %v1349 = vpack.c.b16 %v1329, %v1328
        %v1350 = vpack.c.b16 %v1331, %v1330
        %v1351 = vpack.c.b16 %v1333, %v1332
        %v1352 = vpack.c.b16 %v1335, %v1334
        %v1353 = vpack.c.b16 %v1337, %v1336
        %v1354 = vpack.c.b16 %v1339, %v1338
        %v1355 = vpack.c.b16 %v1341, %v1340
        %v1356 = vpack.c.b16 %v1343, %v1342
        %v1357 = vpack.c.b16 %v1345, %v1344
        %v1359 = vsel %vm424, %v1346, 0
        %v1362 = vsel %vm424, %v1347, 0
        %v1365 = vsel %vm424, %v1348, 0
        %v1368 = vsel %vm424, %v1349, 0
        %v1371 = vsel %vm424, %v1350, 0
        %v1374 = vsel %vm424, %v1351, 0
        %v1377 = vsel %vm424, %v1352, 0
        %v1380 = vsel %vm424, %v1353, 0
        %v1383 = vsel %vm424, %v1354, 0
        %v1386 = vsel %vm424, %v1355, 0
        %v1389 = vsel %vm424, %v1356, 0
        %v1392 = vsel %vm424, %v1357, 0
        %1394 = vmatprep.subr.bf16.mxu0 %v1147
        %1395 = vmatpush1.bf16.msra.mxu0 %v1146
        %1396 = vmatprep.subr.bf16.mxu0 %v1149
        %1397 = vmatpush1.bf16.msra.mxu0 %v1148
        %1398 = vmatprep.subr.bf16.mxu0 %v1151
        %1399 = vmatpush1.bf16.msra.mxu0 %v1150
        %1400 = vmatprep.subr.bf16.mxu0 %v1153
        %1401 = vmatpush1.bf16.msra.mxu0 %v1152
        %1402 = vmatprep.subr.bf16.mxu0 0
        %1403 = vmatpush1.bf16.msra.mxu0 0
        %1404 = vmatprep.subr.bf16.mxu0 0
        %1405 = vmatpush1.bf16.msra.mxu0 0
        %1406 = vmatprep.subr.bf16.mxu0 0
        %1407 = vmatpush1.bf16.msra.mxu0 0
        %1408 = vmatprep.subr.bf16.mxu0 0
        %1409 = vmatpush1.bf16.msra.mxu0 0
        %1410 = vmatprep.subr.bf16.mxu0 0
        %1411 = vmatpush1.bf16.msra.mxu0 0
        %1412 = vmatprep.subr.bf16.mxu0 0
        %1413 = vmatpush1.bf16.msra.mxu0 0
        %1414 = vmatprep.subr.bf16.mxu0 0
        %1415 = vmatpush1.bf16.msra.mxu0 0
        %1416 = vmatprep.subr.bf16.mxu0 0
        %1417 = vmatpush1.bf16.msra.mxu0 0
        %1418 = vmatprep.subr.bf16.mxu0 0
        %1419 = vmatpush1.bf16.msra.mxu0 0
        %1420 = vmatprep.subr.bf16.mxu0 0
        %1421 = vmatpush1.bf16.msra.mxu0 0
        %1422 = vmatprep.subr.bf16.mxu0 0
        %1423 = vmatpush1.bf16.msra.mxu0 0
        %1424 = vmatprep.subr.bf16.mxu0 0
        %1425 = vmatpush1.bf16.msra.mxu0 0
        %1426 = vmatprep.mubr.bf16.mxu0 0
        %1427 = vmatmul.mubr.bf16.gmra.mrb[0].mxu0 %v1359
        %v1428 = vpop.f32.mrb[0].mxu0
        %v1429 = vadd.f32 %v1181, %v1428
        %v1430 = vpop.f32.mrb[0].mxu0
        %v1431 = vadd.f32 %v1181, %v1430
        %v1432 = vpop.f32.mrb[0].mxu0
        %v1433 = vadd.f32 %v1186, %v1432
        %v1434 = vpop.f32.mrb[0].mxu0
        %v1435 = vadd.f32 %v1186, %v1434
        %1436 = vmatprep.mubr.bf16.mxu0 0
        %1437 = vmatmul.mubr.bf16.gmra.mrb[0].mxu0 %v1362
        %v1438 = vpop.f32.mrb[0].mxu0
        %v1439 = vadd.f32 %v1191, %v1438
        %v1440 = vpop.f32.mrb[0].mxu0
        %v1441 = vadd.f32 %v1191, %v1440
        %v1442 = vpop.f32.mrb[0].mxu0
        %v1443 = vadd.f32 %v1196, %v1442
        %v1444 = vpop.f32.mrb[0].mxu0
        %v1445 = vadd.f32 %v1196, %v1444
        %1446 = vmatprep.mubr.bf16.mxu0 0
        %1447 = vmatmul.mubr.bf16.gmra.mrb[0].mxu0 %v1365
        %v1448 = vpop.f32.mrb[0].mxu0
        %v1449 = vadd.f32 %v1201, %v1448
        %v1450 = vpop.f32.mrb[0].mxu0
        %v1451 = vadd.f32 %v1201, %v1450
        %v1452 = vpop.f32.mrb[0].mxu0
        %v1453 = vadd.f32 %v1206, %v1452
        %v1454 = vpop.f32.mrb[0].mxu0
        %v1455 = vadd.f32 %v1206, %v1454
        %1456 = vmatprep.mubr.bf16.mxu0 0
        %1457 = vmatmul.mubr.bf16.gmra.mrb[0].mxu0 %v1368
        %v1458 = vpop.f32.mrb[0].mxu0
        %v1459 = vadd.f32 %v1211, %v1458
        %v1460 = vpop.f32.mrb[0].mxu0
        %v1461 = vadd.f32 %v1211, %v1460
        %v1462 = vpop.f32.mrb[0].mxu0
        %v1463 = vadd.f32 %v1216, %v1462
        %v1464 = vpop.f32.mrb[0].mxu0
        %v1465 = vadd.f32 %v1216, %v1464
        %1466 = vmatprep.mubr.bf16.mxu0 0
        %1467 = vmatmul.mubr.bf16.gmra.mrb[0].mxu0 %v1371
        %v1468 = vpop.f32.mrb[0].mxu0
        %v1469 = vadd.f32 %v1221, %v1468
        %v1470 = vpop.f32.mrb[0].mxu0
        %v1471 = vadd.f32 %v1221, %v1470
        %v1472 = vpop.f32.mrb[0].mxu0
        %v1473 = vadd.f32 %v1226, %v1472
        %v1474 = vpop.f32.mrb[0].mxu0
        %v1475 = vadd.f32 %v1226, %v1474
        %1476 = vmatprep.mubr.bf16.mxu0 0
        %1477 = vmatmul.mubr.bf16.gmra.mrb[0].mxu0 %v1374
        %v1478 = vpop.f32.mrb[0].mxu0
        %v1479 = vadd.f32 %v1231, %v1478
        %v1480 = vpop.f32.mrb[0].mxu0
        %v1481 = vadd.f32 %v1231, %v1480
        %v1482 = vpop.f32.mrb[0].mxu0
        %v1483 = vadd.f32 %v1236, %v1482
        %v1484 = vpop.f32.mrb[0].mxu0
        %v1485 = vadd.f32 %v1236, %v1484
        %1486 = vmatprep.mubr.bf16.mxu0 0
        %1487 = vmatmul.mubr.bf16.gmra.mrb[0].mxu0 %v1377
        %v1488 = vpop.f32.mrb[0].mxu0
        %v1489 = vadd.f32 %v1241, %v1488
        %v1490 = vpop.f32.mrb[0].mxu0
        %v1491 = vadd.f32 %v1241, %v1490
        %v1492 = vpop.f32.mrb[0].mxu0
        %v1493 = vadd.f32 %v1246, %v1492
        %v1494 = vpop.f32.mrb[0].mxu0
        %v1495 = vadd.f32 %v1246, %v1494
        %1496 = vmatprep.mubr.bf16.mxu0 0
        %1497 = vmatmul.mubr.bf16.gmra.mrb[0].mxu0 %v1380
        %v1498 = vpop.f32.mrb[0].mxu0
        %v1499 = vadd.f32 %v1251, %v1498
        %v1500 = vpop.f32.mrb[0].mxu0
        %v1501 = vadd.f32 %v1251, %v1500
        %v1502 = vpop.f32.mrb[0].mxu0
        %v1503 = vadd.f32 %v1256, %v1502
        %v1504 = vpop.f32.mrb[0].mxu0
        %v1505 = vadd.f32 %v1256, %v1504
        %1506 = vmatprep.mubr.bf16.mxu0 0
        %1507 = vmatmul.mubr.bf16.gmra.mrb[0].mxu0 %v1383
        %v1508 = vpop.f32.mrb[0].mxu0
        %v1509 = vadd.f32 %v1261, %v1508
        %v1510 = vpop.f32.mrb[0].mxu0
        %v1511 = vadd.f32 %v1261, %v1510
        %v1512 = vpop.f32.mrb[0].mxu0
        %v1513 = vadd.f32 %v1266, %v1512
        %v1514 = vpop.f32.mrb[0].mxu0
        %v1515 = vadd.f32 %v1266, %v1514
        %1516 = vmatprep.mubr.bf16.mxu0 0
        %1517 = vmatmul.mubr.bf16.gmra.mrb[0].mxu0 %v1386
        %v1518 = vpop.f32.mrb[0].mxu0
        %v1519 = vadd.f32 %v1271, %v1518
        %v1520 = vpop.f32.mrb[0].mxu0
        %v1521 = vadd.f32 %v1271, %v1520
        %v1522 = vpop.f32.mrb[0].mxu0
        %v1523 = vadd.f32 %v1276, %v1522
        %v1524 = vpop.f32.mrb[0].mxu0
        %v1525 = vadd.f32 %v1276, %v1524
        %1526 = vmatprep.mubr.bf16.mxu0 0
        %1527 = vmatmul.mubr.bf16.gmra.mrb[0].mxu0 %v1389
        %v1528 = vpop.f32.mrb[0].mxu0
        %v1529 = vadd.f32 %v1281, %v1528
        %v1530 = vpop.f32.mrb[0].mxu0
        %v1531 = vadd.f32 %v1281, %v1530
        %v1532 = vpop.f32.mrb[0].mxu0
        %v1533 = vadd.f32 %v1286, %v1532
        %v1534 = vpop.f32.mrb[0].mxu0
        %v1535 = vadd.f32 %v1286, %v1534
        %1536 = vmatprep.mubr.bf16.mxu0 0
        %1537 = vmatmul.mubr.bf16.gmra.mrb[0].mxu0 %v1392
        %v1538 = vpop.f32.mrb[0].mxu0
        %v1539 = vadd.f32 %v1291, %v1538
        %v1540 = vpop.f32.mrb[0].mxu0
        %v1541 = vadd.f32 %v1291, %v1540
        %v1542 = vpop.f32.mrb[0].mxu0
        %v1543 = vadd.f32 %v1296, %v1542
        %v1544 = vpop.f32.mrb[0].mxu0
        %v1545 = vadd.f32 %v1296, %v1544
        %1546 = vdwg.mxu0
        %v1547 = vpack.c.bf16 %v1433, %v1429
        %v1548 = vpack.c.bf16 %v1435, %v1431
        %v1549 = vpack.c.bf16 %v1443, %v1439
        %v1550 = vpack.c.bf16 %v1445, %v1441
        %v1551 = vpack.c.bf16 %v1453, %v1449
        %v1552 = vpack.c.bf16 %v1455, %v1451
        %v1553 = vpack.c.bf16 %v1463, %v1459
        %v1554 = vpack.c.bf16 %v1465, %v1461
        %v1555 = vpack.c.bf16 %v1473, %v1469
        %v1556 = vpack.c.bf16 %v1475, %v1471
        %v1557 = vpack.c.bf16 %v1483, %v1479
        %v1558 = vpack.c.bf16 %v1485, %v1481
        %v1559 = vpack.c.bf16 %v1493, %v1489
        %v1560 = vpack.c.bf16 %v1495, %v1491
        %v1561 = vpack.c.bf16 %v1503, %v1499
        %v1562 = vpack.c.bf16 %v1505, %v1501
        %v1563 = vpack.c.bf16 %v1513, %v1509
        %v1564 = vpack.c.bf16 %v1515, %v1511
        %v1565 = vpack.c.bf16 %v1523, %v1519
        %v1566 = vpack.c.bf16 %v1525, %v1521
        %v1567 = vpack.c.bf16 %v1533, %v1529
        %v1568 = vpack.c.bf16 %v1535, %v1531
        %v1569 = vpack.c.bf16 %v1543, %v1539
        %v1570 = vpack.c.bf16 %v1545, %v1541
        %1571 = vst [vmem:[#allocation3] sm:$0xff] %v1547
        %1572 = vst [vmem:[#allocation3 + $0x8] sm:$0xff] %v1548
        %1573 = vst [vmem:[#allocation3 + $0x10] sm:$0xff] %v1549
        %1574 = vst [vmem:[#allocation3 + $0x18] sm:$0xff] %v1550
        %1575 = vst [vmem:[#allocation3 + $0x20] sm:$0xff] %v1551
        %1576 = vst [vmem:[#allocation3 + $0x28] sm:$0xff] %v1552
        %1577 = vst [vmem:[#allocation3 + $0x30] sm:$0xff] %v1553
        %1578 = vst [vmem:[#allocation3 + $0x38] sm:$0xff] %v1554
        %1579 = vst [vmem:[#allocation3 + $0x40] sm:$0xff] %v1555
        %1580 = vst [vmem:[#allocation3 + $0x48] sm:$0xff] %v1556
        %1581 = vst [vmem:[#allocation3 + $0x50] sm:$0xff] %v1557
        %1582 = vst [vmem:[#allocation3 + $0x58] sm:$0xff] %v1558
        %1583 = vst [vmem:[#allocation3 + $0x60] sm:$0xff] %v1559
        %1584 = vst [vmem:[#allocation3 + $0x68] sm:$0xff] %v1560
        %1585 = vst [vmem:[#allocation3 + $0x70] sm:$0xff] %v1561
        %1586 = vst [vmem:[#allocation3 + $0x78] sm:$0xff] %v1562
        %1587 = vst [vmem:[#allocation3 + $0x80] sm:$0xff] %v1563
        %1588 = vst [vmem:[#allocation3 + $0x88] sm:$0xff] %v1564
        %1589 = vst [vmem:[#allocation3 + $0x90] sm:$0xff] %v1565
        %1590 = vst [vmem:[#allocation3 + $0x98] sm:$0xff] %v1566
        %1591 = vst [vmem:[#allocation3 + $0xa0] sm:$0xff] %v1567
        %1592 = vst [vmem:[#allocation3 + $0xa8] sm:$0xff] %v1568
        %1593 = vst [vmem:[#allocation3 + $0xb0] sm:$0xff] %v1569
        %1594 = vst [vmem:[#allocation3 + $0xb8] sm:$0xff] %v1570
        %v1595 = vld [vmem:[#allocation3 + $0x20] sm:$0xff]
        %v1596 = vld [vmem:[#allocation3 + $0x28] sm:$0xff]
        %v1597 = vld [vmem:[#allocation3 + $0x30] sm:$0xff]
        %v1598 = vld [vmem:[#allocation3 + $0x38] sm:$0xff]
        %v1599 = vld [vmem:[#allocation3 + $0x40] sm:$0xff]
        %v1600 = vld [vmem:[#allocation3 + $0x48] sm:$0xff]
        %v1601 = vld [vmem:[#allocation3 + $0x50] sm:$0xff]
        %v1602 = vld [vmem:[#allocation3 + $0x58] sm:$0xff]
        %v1603 = vld [vmem:[#allocation3] sm:$0xff]
        %v1604 = vld [vmem:[#allocation3 + $0x8] sm:$0xff]
        %v1605 = vld [vmem:[#allocation3 + $0x10] sm:$0xff]
        %v1606 = vld [vmem:[#allocation3 + $0x18] sm:$0xff]
        %1607 = vxpose.xlu0.c.b16.start [1/8] %v1595, 128
        %1608 = vxpose.xlu0.c.b16.cont [2/8] %v1597, 128
        %1609 = vxpose.xlu0.c.b16.cont [3/8] 0, 128
        %1610 = vxpose.xlu0.c.b16.cont [4/8] 0, 128
        %1611 = vxpose.xlu0.c.b16.cont [5/8] 0, 128
        %1612 = vxpose.xlu0.c.b16.cont [6/8] 0, 128
        %1613 = vxpose.xlu0.c.b16.cont [7/8] 0, 128
        %1614 = vxpose.xlu0.c.b16.end [8/8] 0, 128
        %v1615 = vpop.trf.xlu0
        %v1616 = vpop.trf.xlu0
        %v1617 = vpop.trf.xlu0
        %v1618 = vpop.trf.xlu0
        %v1619 = vpop.trf.xlu0
        %v1620 = vpop.trf.xlu0
        %v1621 = vpop.trf.xlu0
        %v1622 = vpop.trf.xlu0
        %1623 = vxpose.xlu0.c.b16.start [1/8] %v1596, 128
        %1624 = vxpose.xlu0.c.b16.cont [2/8] %v1598, 128
        %1625 = vxpose.xlu0.c.b16.cont [3/8] 0, 128
        %1626 = vxpose.xlu0.c.b16.cont [4/8] 0, 128
        %1627 = vxpose.xlu0.c.b16.cont [5/8] 0, 128
        %1628 = vxpose.xlu0.c.b16.cont [6/8] 0, 128
        %1629 = vxpose.xlu0.c.b16.cont [7/8] 0, 128
        %1630 = vxpose.xlu0.c.b16.end [8/8] 0, 128
        %v1631 = vpop.trf.xlu0
        %v1632 = vpop.trf.xlu0
        %v1633 = vpop.trf.xlu0
        %v1634 = vpop.trf.xlu0
        %v1635 = vpop.trf.xlu0
        %v1636 = vpop.trf.xlu0
        %v1637 = vpop.trf.xlu0
        %v1638 = vpop.trf.xlu0
        %v1640 = vsel %vm522, %v1615, 0
        %v1643 = vsel %vm522, %v1616, 0
        %v1646 = vsel %vm522, %v1617, 0
        %v1649 = vsel %vm522, %v1618, 0
        %v1652 = vsel %vm522, %v1619, 0
        %v1655 = vsel %vm522, %v1620, 0
        %v1658 = vsel %vm522, %v1621, 0
        %v1661 = vsel %vm522, %v1622, 0
        %v1664 = vsel %vm522, %v1631, 0
        %v1667 = vsel %vm522, %v1632, 0
        %v1670 = vsel %vm522, %v1633, 0
        %v1673 = vsel %vm522, %v1634, 0
        %v1676 = vsel %vm522, %v1635, 0
        %v1679 = vsel %vm522, %v1636, 0
        %v1682 = vsel %vm522, %v1637, 0
        %v1685 = vsel %vm522, %v1638, 0
        %1687 = vmatprep.subr.bf16.mxu0 %v1604
        %1688 = vmatpush1.bf16.msra.mxu0 %v1603
        %1689 = vmatprep.subr.bf16.mxu0 %v1606
        %1690 = vmatpush1.bf16.msra.mxu0 %v1605
        %1691 = vmatprep.subr.bf16.mxu0 0
        %1692 = vmatpush1.bf16.msra.mxu0 0
        %1693 = vmatprep.subr.bf16.mxu0 0
        %1694 = vmatpush1.bf16.msra.mxu0 0
        %1695 = vmatprep.subr.bf16.mxu0 0
        %1696 = vmatpush1.bf16.msra.mxu0 0
        %1697 = vmatprep.subr.bf16.mxu0 0
        %1698 = vmatpush1.bf16.msra.mxu0 0
        %1699 = vmatprep.subr.bf16.mxu0 0
        %1700 = vmatpush1.bf16.msra.mxu0 0
        %1701 = vmatprep.subr.bf16.mxu0 0
        %1702 = vmatpush1.bf16.msra.mxu0 0
        %1703 = vmatprep.subr.bf16.mxu0 0
        %1704 = vmatpush1.bf16.msra.mxu0 0
        %1705 = vmatprep.subr.bf16.mxu0 0
        %1706 = vmatpush1.bf16.msra.mxu0 0
        %1707 = vmatprep.subr.bf16.mxu0 0
        %1708 = vmatpush1.bf16.msra.mxu0 0
        %1709 = vmatprep.subr.bf16.mxu0 0
        %1710 = vmatpush1.bf16.msra.mxu0 0
        %1711 = vmatprep.subr.bf16.mxu0 0
        %1712 = vmatpush1.bf16.msra.mxu0 0
        %1713 = vmatprep.subr.bf16.mxu0 0
        %1714 = vmatpush1.bf16.msra.mxu0 0
        %1715 = vmatprep.subr.bf16.mxu0 0
        %1716 = vmatpush1.bf16.msra.mxu0 0
        %1717 = vmatprep.subr.bf16.mxu0 0
        %1718 = vmatpush1.bf16.msra.mxu0 0
        %1719 = vmatprep.mubr.bf16.mxu0 0
        %1720 = vmatmul.mubr.bf16.gmra.mrb[0].mxu0 %v1640
        %v1721 = vpop.f32.mrb[0].mxu0
        %v1722 = vadd.f32 0.0, %v1721
        %v1723 = vpop.f32.mrb[0].mxu0
        %v1724 = vadd.f32 0.0, %v1723
        %v1725 = vpop.f32.mrb[0].mxu0
        %v1726 = vadd.f32 0.0, %v1725
        %v1727 = vpop.f32.mrb[0].mxu0
        %v1728 = vadd.f32 0.0, %v1727
        %1729 = vmatprep.mubr.bf16.mxu0 0
        %1730 = vmatmul.mubr.bf16.gmra.mrb[0].mxu0 %v1643
        %v1731 = vpop.f32.mrb[0].mxu0
        %v1732 = vadd.f32 0.0, %v1731
        %v1733 = vpop.f32.mrb[0].mxu0
        %v1734 = vadd.f32 0.0, %v1733
        %v1735 = vpop.f32.mrb[0].mxu0
        %v1736 = vadd.f32 0.0, %v1735
        %v1737 = vpop.f32.mrb[0].mxu0
        %v1738 = vadd.f32 0.0, %v1737
        %1739 = vmatprep.mubr.bf16.mxu0 0
        %1740 = vmatmul.mubr.bf16.gmra.mrb[0].mxu0 %v1646
        %v1741 = vpop.f32.mrb[0].mxu0
        %v1742 = vadd.f32 0.0, %v1741
        %v1743 = vpop.f32.mrb[0].mxu0
        %v1744 = vadd.f32 0.0, %v1743
        %v1745 = vpop.f32.mrb[0].mxu0
        %v1746 = vadd.f32 0.0, %v1745
        %v1747 = vpop.f32.mrb[0].mxu0
        %v1748 = vadd.f32 0.0, %v1747
        %1749 = vmatprep.mubr.bf16.mxu0 0
        %1750 = vmatmul.mubr.bf16.gmra.mrb[0].mxu0 %v1649
        %v1751 = vpop.f32.mrb[0].mxu0
        %v1752 = vadd.f32 0.0, %v1751
        %v1753 = vpop.f32.mrb[0].mxu0
        %v1754 = vadd.f32 0.0, %v1753
        %v1755 = vpop.f32.mrb[0].mxu0
        %v1756 = vadd.f32 0.0, %v1755
        %v1757 = vpop.f32.mrb[0].mxu0
        %v1758 = vadd.f32 0.0, %v1757
        %1759 = vmatprep.mubr.bf16.mxu0 0
        %1760 = vmatmul.mubr.bf16.gmra.mrb[0].mxu0 %v1652
        %v1761 = vpop.f32.mrb[0].mxu0
        %v1762 = vadd.f32 0.0, %v1761
        %v1763 = vpop.f32.mrb[0].mxu0
        %v1764 = vadd.f32 0.0, %v1763
        %v1765 = vpop.f32.mrb[0].mxu0
        %v1766 = vadd.f32 0.0, %v1765
        %v1767 = vpop.f32.mrb[0].mxu0
        %v1768 = vadd.f32 0.0, %v1767
        %1769 = vmatprep.mubr.bf16.mxu0 0
        %1770 = vmatmul.mubr.bf16.gmra.mrb[0].mxu0 %v1655
        %v1771 = vpop.f32.mrb[0].mxu0
        %v1772 = vadd.f32 0.0, %v1771
        %v1773 = vpop.f32.mrb[0].mxu0
        %v1774 = vadd.f32 0.0, %v1773
        %v1775 = vpop.f32.mrb[0].mxu0
        %v1776 = vadd.f32 0.0, %v1775
        %v1777 = vpop.f32.mrb[0].mxu0
        %v1778 = vadd.f32 0.0, %v1777
        %1779 = vmatprep.mubr.bf16.mxu0 0
        %1780 = vmatmul.mubr.bf16.gmra.mrb[0].mxu0 %v1658
        %v1781 = vpop.f32.mrb[0].mxu0
        %v1782 = vadd.f32 0.0, %v1781
        %v1783 = vpop.f32.mrb[0].mxu0
        %v1784 = vadd.f32 0.0, %v1783
        %v1785 = vpop.f32.mrb[0].mxu0
        %v1786 = vadd.f32 0.0, %v1785
        %v1787 = vpop.f32.mrb[0].mxu0
        %v1788 = vadd.f32 0.0, %v1787
        %1789 = vmatprep.mubr.bf16.mxu0 0
        %1790 = vmatmul.mubr.bf16.gmra.mrb[0].mxu0 %v1661
        %v1791 = vpop.f32.mrb[0].mxu0
        %v1792 = vadd.f32 0.0, %v1791
        %v1793 = vpop.f32.mrb[0].mxu0
        %v1794 = vadd.f32 0.0, %v1793
        %v1795 = vpop.f32.mrb[0].mxu0
        %v1796 = vadd.f32 0.0, %v1795
        %v1797 = vpop.f32.mrb[0].mxu0
        %v1798 = vadd.f32 0.0, %v1797
        %1799 = vmatprep.mubr.bf16.mxu0 0
        %1800 = vmatmul.mubr.bf16.gmra.mrb[0].mxu0 %v1664
        %v1801 = vpop.f32.mrb[0].mxu0
        %v1802 = vadd.f32 0.0, %v1801
        %v1803 = vpop.f32.mrb[0].mxu0
        %v1804 = vadd.f32 0.0, %v1803
        %v1805 = vpop.f32.mrb[0].mxu0
        %v1806 = vadd.f32 0.0, %v1805
        %v1807 = vpop.f32.mrb[0].mxu0
        %v1808 = vadd.f32 0.0, %v1807
        %1809 = vmatprep.mubr.bf16.mxu0 0
        %1810 = vmatmul.mubr.bf16.gmra.mrb[0].mxu0 %v1667
        %v1811 = vpop.f32.mrb[0].mxu0
        %v1812 = vadd.f32 0.0, %v1811
        %v1813 = vpop.f32.mrb[0].mxu0
        %v1814 = vadd.f32 0.0, %v1813
        %v1815 = vpop.f32.mrb[0].mxu0
        %v1816 = vadd.f32 0.0, %v1815
        %v1817 = vpop.f32.mrb[0].mxu0
        %v1818 = vadd.f32 0.0, %v1817
        %1819 = vmatprep.mubr.bf16.mxu0 0
        %1820 = vmatmul.mubr.bf16.gmra.mrb[0].mxu0 %v1670
        %v1821 = vpop.f32.mrb[0].mxu0
        %v1822 = vadd.f32 0.0, %v1821
        %v1823 = vpop.f32.mrb[0].mxu0
        %v1824 = vadd.f32 0.0, %v1823
        %v1825 = vpop.f32.mrb[0].mxu0
        %v1826 = vadd.f32 0.0, %v1825
        %v1827 = vpop.f32.mrb[0].mxu0
        %v1828 = vadd.f32 0.0, %v1827
        %1829 = vmatprep.mubr.bf16.mxu0 0
        %1830 = vmatmul.mubr.bf16.gmra.mrb[0].mxu0 %v1673
        %v1831 = vpop.f32.mrb[0].mxu0
        %v1832 = vadd.f32 0.0, %v1831
        %v1833 = vpop.f32.mrb[0].mxu0
        %v1834 = vadd.f32 0.0, %v1833
        %v1835 = vpop.f32.mrb[0].mxu0
        %v1836 = vadd.f32 0.0, %v1835
        %v1837 = vpop.f32.mrb[0].mxu0
        %v1838 = vadd.f32 0.0, %v1837
        %1839 = vmatprep.mubr.bf16.mxu0 0
        %1840 = vmatmul.mubr.bf16.gmra.mrb[0].mxu0 %v1676
        %v1841 = vpop.f32.mrb[0].mxu0
        %v1842 = vadd.f32 0.0, %v1841
        %v1843 = vpop.f32.mrb[0].mxu0
        %v1844 = vadd.f32 0.0, %v1843
        %v1845 = vpop.f32.mrb[0].mxu0
        %v1846 = vadd.f32 0.0, %v1845
        %v1847 = vpop.f32.mrb[0].mxu0
        %v1848 = vadd.f32 0.0, %v1847
        %1849 = vmatprep.mubr.bf16.mxu0 0
        %1850 = vmatmul.mubr.bf16.gmra.mrb[0].mxu0 %v1679
        %v1851 = vpop.f32.mrb[0].mxu0
        %v1852 = vadd.f32 0.0, %v1851
        %v1853 = vpop.f32.mrb[0].mxu0
        %v1854 = vadd.f32 0.0, %v1853
        %v1855 = vpop.f32.mrb[0].mxu0
        %v1856 = vadd.f32 0.0, %v1855
        %v1857 = vpop.f32.mrb[0].mxu0
        %v1858 = vadd.f32 0.0, %v1857
        %1859 = vmatprep.mubr.bf16.mxu0 0
        %1860 = vmatmul.mubr.bf16.gmra.mrb[0].mxu0 %v1682
        %v1861 = vpop.f32.mrb[0].mxu0
        %v1862 = vadd.f32 0.0, %v1861
        %v1863 = vpop.f32.mrb[0].mxu0
        %v1864 = vadd.f32 0.0, %v1863
        %v1865 = vpop.f32.mrb[0].mxu0
        %v1866 = vadd.f32 0.0, %v1865
        %v1867 = vpop.f32.mrb[0].mxu0
        %v1868 = vadd.f32 0.0, %v1867
        %1869 = vmatprep.mubr.bf16.mxu0 0
        %1870 = vmatmul.mubr.bf16.gmra.mrb[0].mxu0 %v1685
        %v1871 = vpop.f32.mrb[0].mxu0
        %v1872 = vadd.f32 0.0, %v1871
        %v1873 = vpop.f32.mrb[0].mxu0
        %v1874 = vadd.f32 0.0, %v1873
        %v1875 = vpop.f32.mrb[0].mxu0
        %v1876 = vadd.f32 0.0, %v1875
        %v1877 = vpop.f32.mrb[0].mxu0
        %v1878 = vadd.f32 0.0, %v1877
        %1879 = vdwg.mxu0
        %v1880 = vmax.f32 %v1722, %v1732
        %v1881 = vmax.f32 %v1726, %v1736
        %v1882 = vmax.f32 %v1880, %v1742
        %v1883 = vmax.f32 %v1881, %v1746
        %v1884 = vmax.f32 %v1882, %v1752
        %v1885 = vmax.f32 %v1883, %v1756
        %v1886 = vmax.f32 %v1884, %v1762
        %v1887 = vmax.f32 %v1885, %v1766
        %v1888 = vmax.f32 %v1886, %v1772
        %v1889 = vmax.f32 %v1887, %v1776
        %v1890 = vmax.f32 %v1888, %v1782
        %v1891 = vmax.f32 %v1889, %v1786
        %v1892 = vmax.f32 %v1890, %v1792
        %v1893 = vmax.f32 %v1891, %v1796
        %v1894 = vmax.f32 %v1892, %v1802
        %v1895 = vmax.f32 %v1893, %v1806
        %v1896 = vmax.f32 %v1894, %v1812
        %v1897 = vmax.f32 %v1895, %v1816
        %v1898 = vmax.f32 %v1896, %v1822
        %v1899 = vmax.f32 %v1897, %v1826
        %v1900 = vmax.f32 %v1898, %v1832
        %v1901 = vmax.f32 %v1899, %v1836
        %v1902 = vmax.f32 %v1900, %v1842
        %v1903 = vmax.f32 %v1901, %v1846
        %v1904 = vmax.f32 %v1902, %v1852
        %v1905 = vmax.f32 %v1903, %v1856
        %v1906 = vmax.f32 %v1904, %v1862
        %v1907 = vmax.f32 %v1905, %v1866
        %v1908 = vmax.f32 %v1906, %v1872
        %v1909 = vmax.f32 %v1907, %v1876
        %v1910 = vmax.f32 %v1908, %v1909
        %v1911 = vrot.slane %v1910, 4
        %v1912 = vmax.f32 %v1910, %v1911
        %v1913 = vrot.slane %v1912, 2
        %v1914 = vmax.f32 %v1912, %v1913
        %v1915 = vrot.slane %v1914, 1
        %v1916 = vmax.f32 %v1914, %v1915
        %v1917 = vmax.f32 %v1724, %v1734
        %v1918 = vmax.f32 %v1728, %v1738
        %v1919 = vmax.f32 %v1917, %v1744
        %v1920 = vmax.f32 %v1918, %v1748
        %v1921 = vmax.f32 %v1919, %v1754
        %v1922 = vmax.f32 %v1920, %v1758
        %v1923 = vmax.f32 %v1921, %v1764
        %v1924 = vmax.f32 %v1922, %v1768
        %v1925 = vmax.f32 %v1923, %v1774
        %v1926 = vmax.f32 %v1924, %v1778
        %v1927 = vmax.f32 %v1925, %v1784
        %v1928 = vmax.f32 %v1926, %v1788
        %v1929 = vmax.f32 %v1927, %v1794
        %v1930 = vmax.f32 %v1928, %v1798
        %v1931 = vmax.f32 %v1929, %v1804
        %v1932 = vmax.f32 %v1930, %v1808
        %v1933 = vmax.f32 %v1931, %v1814
        %v1934 = vmax.f32 %v1932, %v1818
        %v1935 = vmax.f32 %v1933, %v1824
        %v1936 = vmax.f32 %v1934, %v1828
        %v1937 = vmax.f32 %v1935, %v1834
        %v1938 = vmax.f32 %v1936, %v1838
        %v1939 = vmax.f32 %v1937, %v1844
        %v1940 = vmax.f32 %v1938, %v1848
        %v1941 = vmax.f32 %v1939, %v1854
        %v1942 = vmax.f32 %v1940, %v1858
        %v1943 = vmax.f32 %v1941, %v1864
        %v1944 = vmax.f32 %v1942, %v1868
        %v1945 = vmax.f32 %v1943, %v1874
        %v1946 = vmax.f32 %v1944, %v1878
        %v1947 = vmax.f32 %v1945, %v1946
        %v1948 = vrot.slane %v1947, 4
        %v1949 = vmax.f32 %v1947, %v1948
        %v1950 = vrot.slane %v1949, 2
        %v1951 = vmax.f32 %v1949, %v1950
        %v1952 = vrot.slane %v1951, 1
        %v1953 = vmax.f32 %v1951, %v1952
        %v1954 = vsub.f32 %v1722, %v1916
        %v1955 = vsub.f32 %v1724, %v1953
        %v1956 = vsub.f32 %v1726, %v1916
        %v1957 = vsub.f32 %v1728, %v1953
        %v1958 = vsub.f32 %v1732, %v1916
        %v1959 = vsub.f32 %v1734, %v1953
        %v1960 = vsub.f32 %v1736, %v1916
        %v1961 = vsub.f32 %v1738, %v1953
        %v1962 = vsub.f32 %v1742, %v1916
        %v1963 = vsub.f32 %v1744, %v1953
        %v1964 = vsub.f32 %v1746, %v1916
        %v1965 = vsub.f32 %v1748, %v1953
        %v1966 = vsub.f32 %v1752, %v1916
        %v1967 = vsub.f32 %v1754, %v1953
        %v1968 = vsub.f32 %v1756, %v1916
        %v1969 = vsub.f32 %v1758, %v1953
        %v1970 = vsub.f32 %v1762, %v1916
        %v1971 = vsub.f32 %v1764, %v1953
        %v1972 = vsub.f32 %v1766, %v1916
        %v1973 = vsub.f32 %v1768, %v1953
        %v1974 = vsub.f32 %v1772, %v1916
        %v1975 = vsub.f32 %v1774, %v1953
        %v1976 = vsub.f32 %v1776, %v1916
        %v1977 = vsub.f32 %v1778, %v1953
        %v1978 = vsub.f32 %v1782, %v1916
        %v1979 = vsub.f32 %v1784, %v1953
        %v1980 = vsub.f32 %v1786, %v1916
        %v1981 = vsub.f32 %v1788, %v1953
        %v1982 = vsub.f32 %v1792, %v1916
        %v1983 = vsub.f32 %v1794, %v1953
        %v1984 = vsub.f32 %v1796, %v1916
        %v1985 = vsub.f32 %v1798, %v1953
        %v1986 = vsub.f32 %v1802, %v1916
        %v1987 = vsub.f32 %v1804, %v1953
        %v1988 = vsub.f32 %v1806, %v1916
        %v1989 = vsub.f32 %v1808, %v1953
        %v1990 = vsub.f32 %v1812, %v1916
        %v1991 = vsub.f32 %v1814, %v1953
        %v1992 = vsub.f32 %v1816, %v1916
        %v1993 = vsub.f32 %v1818, %v1953
        %v1994 = vsub.f32 %v1822, %v1916
        %v1995 = vsub.f32 %v1824, %v1953
        %v1996 = vsub.f32 %v1826, %v1916
        %v1997 = vsub.f32 %v1828, %v1953
        %v1998 = vsub.f32 %v1832, %v1916
        %v1999 = vsub.f32 %v1834, %v1953
        %v2000 = vsub.f32 %v1836, %v1916
        %v2001 = vsub.f32 %v1838, %v1953
        %v2002 = vsub.f32 %v1842, %v1916
        %v2003 = vsub.f32 %v1844, %v1953
        %v2004 = vsub.f32 %v1846, %v1916
        %v2005 = vsub.f32 %v1848, %v1953
        %v2006 = vsub.f32 %v1852, %v1916
        %v2007 = vsub.f32 %v1854, %v1953
        %v2008 = vsub.f32 %v1856, %v1916
        %v2009 = vsub.f32 %v1858, %v1953
        %v2010 = vsub.f32 %v1862, %v1916
        %v2011 = vsub.f32 %v1864, %v1953
        %v2012 = vsub.f32 %v1866, %v1916
        %v2013 = vsub.f32 %v1868, %v1953
        %v2014 = vsub.f32 %v1872, %v1916
        %v2015 = vsub.f32 %v1874, %v1953
        %v2016 = vsub.f32 %v1876, %v1916
        %v2017 = vsub.f32 %v1878, %v1953
        %v2018 = vmul.f32 %v1954, 1.442695
        %v2019 = vpow.pop %v2018
        %v2020 = vmul.f32 %v1955, 1.442695
        %v2021 = vpow.pop %v2020
        %v2022 = vmul.f32 %v1956, 1.442695
        %v2023 = vpow.pop %v2022
        %v2024 = vmul.f32 %v1957, 1.442695
        %v2025 = vpow.pop %v2024
        %v2026 = vmul.f32 %v1958, 1.442695
        %v2027 = vpow.pop %v2026
        %v2028 = vmul.f32 %v1959, 1.442695
        %v2029 = vpow.pop %v2028
        %v2030 = vmul.f32 %v1960, 1.442695
        %v2031 = vpow.pop %v2030
        %v2032 = vmul.f32 %v1961, 1.442695
        %v2033 = vpow.pop %v2032
        %v2034 = vmul.f32 %v1962, 1.442695
        %v2035 = vpow.pop %v2034
        %v2036 = vmul.f32 %v1963, 1.442695
        %v2037 = vpow.pop %v2036
        %v2038 = vmul.f32 %v1964, 1.442695
        %v2039 = vpow.pop %v2038
        %v2040 = vmul.f32 %v1965, 1.442695
        %v2041 = vpow.pop %v2040
        %v2042 = vmul.f32 %v1966, 1.442695
        %v2043 = vpow.pop %v2042
        %v2044 = vmul.f32 %v1967, 1.442695
        %v2045 = vpow.pop %v2044
        %v2046 = vmul.f32 %v1968, 1.442695
        %v2047 = vpow.pop %v2046
        %v2048 = vmul.f32 %v1969, 1.442695
        %v2049 = vpow.pop %v2048
        %v2050 = vmul.f32 %v1970, 1.442695
        %v2051 = vpow.pop %v2050
        %v2052 = vmul.f32 %v1971, 1.442695
        %v2053 = vpow.pop %v2052
        %v2054 = vmul.f32 %v1972, 1.442695
        %v2055 = vpow.pop %v2054
        %v2056 = vmul.f32 %v1973, 1.442695
        %v2057 = vpow.pop %v2056
        %v2058 = vmul.f32 %v1974, 1.442695
        %v2059 = vpow.pop %v2058
        %v2060 = vmul.f32 %v1975, 1.442695
        %v2061 = vpow.pop %v2060
        %v2062 = vmul.f32 %v1976, 1.442695
        %v2063 = vpow.pop %v2062
        %v2064 = vmul.f32 %v1977, 1.442695
        %v2065 = vpow.pop %v2064
        %v2066 = vmul.f32 %v1978, 1.442695
        %v2067 = vpow.pop %v2066
        %v2068 = vmul.f32 %v1979, 1.442695
        %v2069 = vpow.pop %v2068
        %v2070 = vmul.f32 %v1980, 1.442695
        %v2071 = vpow.pop %v2070
        %v2072 = vmul.f32 %v1981, 1.442695
        %v2073 = vpow.pop %v2072
        %v2074 = vmul.f32 %v1982, 1.442695
        %v2075 = vpow.pop %v2074
        %v2076 = vmul.f32 %v1983, 1.442695
        %v2077 = vpow.pop %v2076
        %v2078 = vmul.f32 %v1984, 1.442695
        %v2079 = vpow.pop %v2078
        %v2080 = vmul.f32 %v1985, 1.442695
        %v2081 = vpow.pop %v2080
        %v2082 = vmul.f32 %v1986, 1.442695
        %v2083 = vpow.pop %v2082
        %v2084 = vmul.f32 %v1987, 1.442695
        %v2085 = vpow.pop %v2084
        %v2086 = vmul.f32 %v1988, 1.442695
        %v2087 = vpow.pop %v2086
        %v2088 = vmul.f32 %v1989, 1.442695
        %v2089 = vpow.pop %v2088
        %v2090 = vmul.f32 %v1990, 1.442695
        %v2091 = vpow.pop %v2090
        %v2092 = vmul.f32 %v1991, 1.442695
        %v2093 = vpow.pop %v2092
        %v2094 = vmul.f32 %v1992, 1.442695
        %v2095 = vpow.pop %v2094
        %v2096 = vmul.f32 %v1993, 1.442695
        %v2097 = vpow.pop %v2096
        %v2098 = vmul.f32 %v1994, 1.442695
        %v2099 = vpow.pop %v2098
        %v2100 = vmul.f32 %v1995, 1.442695
        %v2101 = vpow.pop %v2100
        %v2102 = vmul.f32 %v1996, 1.442695
        %v2103 = vpow.pop %v2102
        %v2104 = vmul.f32 %v1997, 1.442695
        %v2105 = vpow.pop %v2104
        %v2106 = vmul.f32 %v1998, 1.442695
        %v2107 = vpow.pop %v2106
        %v2108 = vmul.f32 %v1999, 1.442695
        %v2109 = vpow.pop %v2108
        %v2110 = vmul.f32 %v2000, 1.442695
        %v2111 = vpow.pop %v2110
        %v2112 = vmul.f32 %v2001, 1.442695
        %v2113 = vpow.pop %v2112
        %v2114 = vmul.f32 %v2002, 1.442695
        %v2115 = vpow.pop %v2114
        %v2116 = vmul.f32 %v2003, 1.442695
        %v2117 = vpow.pop %v2116
        %v2118 = vmul.f32 %v2004, 1.442695
        %v2119 = vpow.pop %v2118
        %v2120 = vmul.f32 %v2005, 1.442695
        %v2121 = vpow.pop %v2120
        %v2122 = vmul.f32 %v2006, 1.442695
        %v2123 = vpow.pop %v2122
        %v2124 = vmul.f32 %v2007, 1.442695
        %v2125 = vpow.pop %v2124
        %v2126 = vmul.f32 %v2008, 1.442695
        %v2127 = vpow.pop %v2126
        %v2128 = vmul.f32 %v2009, 1.442695
        %v2129 = vpow.pop %v2128
        %v2130 = vmul.f32 %v2010, 1.442695
        %v2131 = vpow.pop %v2130
        %v2132 = vmul.f32 %v2011, 1.442695
        %v2133 = vpow.pop %v2132
        %v2134 = vmul.f32 %v2012, 1.442695
        %v2135 = vpow.pop %v2134
        %v2136 = vmul.f32 %v2013, 1.442695
        %v2137 = vpow.pop %v2136
        %v2138 = vmul.f32 %v2014, 1.442695
        %v2139 = vpow.pop %v2138
        %v2140 = vmul.f32 %v2015, 1.442695
        %v2141 = vpow.pop %v2140
        %v2142 = vmul.f32 %v2016, 1.442695
        %v2143 = vpow.pop %v2142
        %v2144 = vmul.f32 %v2017, 1.442695
        %v2145 = vpow.pop %v2144
        %v2146 = vadd.f32 %v2019, %v2023
        %v2147 = vadd.f32 %v2146, %v2027
        %v2148 = vadd.f32 %v2147, %v2031
        %v2149 = vadd.f32 %v2148, %v2035
        %v2150 = vadd.f32 %v2149, %v2039
        %v2151 = vadd.f32 %v2150, %v2043
        %v2152 = vadd.f32 %v2151, %v2047
        %v2153 = vadd.f32 %v2152, %v2051
        %v2154 = vadd.f32 %v2153, %v2055
        %v2155 = vadd.f32 %v2154, %v2059
        %v2156 = vadd.f32 %v2155, %v2063
        %v2157 = vadd.f32 %v2156, %v2067
        %v2158 = vadd.f32 %v2157, %v2071
        %v2159 = vadd.f32 %v2158, %v2075
        %v2160 = vadd.f32 %v2159, %v2079
        %v2161 = vadd.f32 %v2160, %v2083
        %v2162 = vadd.f32 %v2161, %v2087
        %v2163 = vadd.f32 %v2162, %v2091
        %v2164 = vadd.f32 %v2163, %v2095
        %v2165 = vadd.f32 %v2164, %v2099
        %v2166 = vadd.f32 %v2165, %v2103
        %v2167 = vadd.f32 %v2166, %v2107
        %v2168 = vadd.f32 %v2167, %v2111
        %v2169 = vadd.f32 %v2168, %v2115
        %v2170 = vadd.f32 %v2169, %v2119
        %v2171 = vadd.f32 %v2170, %v2123
        %v2172 = vadd.f32 %v2171, %v2127
        %v2173 = vadd.f32 %v2172, %v2131
        %v2174 = vadd.f32 %v2173, %v2135
        %v2175 = vadd.f32 %v2174, %v2139
        %v2176 = vadd.f32 %v2175, %v2143
        %v2177 = vrot.slane %v2176, 4
        %v2178 = vadd.f32 %v2176, %v2177
        %v2179 = vrot.slane %v2178, 2
        %v2180 = vadd.f32 %v2178, %v2179
        %v2181 = vrot.slane %v2180, 1
        %v2182 = vadd.f32 %v2180, %v2181
        %v2183 = vadd.f32 %v2021, %v2025
        %v2184 = vadd.f32 %v2183, %v2029
        %v2185 = vadd.f32 %v2184, %v2033
        %v2186 = vadd.f32 %v2185, %v2037
        %v2187 = vadd.f32 %v2186, %v2041
        %v2188 = vadd.f32 %v2187, %v2045
        %v2189 = vadd.f32 %v2188, %v2049
        %v2190 = vadd.f32 %v2189, %v2053
        %v2191 = vadd.f32 %v2190, %v2057
        %v2192 = vadd.f32 %v2191, %v2061
        %v2193 = vadd.f32 %v2192, %v2065
        %v2194 = vadd.f32 %v2193, %v2069
        %v2195 = vadd.f32 %v2194, %v2073
        %v2196 = vadd.f32 %v2195, %v2077
        %v2197 = vadd.f32 %v2196, %v2081
        %v2198 = vadd.f32 %v2197, %v2085
        %v2199 = vadd.f32 %v2198, %v2089
        %v2200 = vadd.f32 %v2199, %v2093
        %v2201 = vadd.f32 %v2200, %v2097
        %v2202 = vadd.f32 %v2201, %v2101
        %v2203 = vadd.f32 %v2202, %v2105
        %v2204 = vadd.f32 %v2203, %v2109
        %v2205 = vadd.f32 %v2204, %v2113
        %v2206 = vadd.f32 %v2205, %v2117
        %v2207 = vadd.f32 %v2206, %v2121
        %v2208 = vadd.f32 %v2207, %v2125
        %v2209 = vadd.f32 %v2208, %v2129
        %v2210 = vadd.f32 %v2209, %v2133
        %v2211 = vadd.f32 %v2210, %v2137
        %v2212 = vadd.f32 %v2211, %v2141
        %v2213 = vadd.f32 %v2212, %v2145
        %v2214 = vrot.slane %v2213, 4
        %v2215 = vadd.f32 %v2213, %v2214
        %v2216 = vrot.slane %v2215, 2
        %v2217 = vadd.f32 %v2215, %v2216
        %v2218 = vrot.slane %v2217, 1
        %v2219 = vadd.f32 %v2217, %v2218
        %v2220 = vpack.c.bf16 %v2023, %v2019
        %v2221 = vpack.c.bf16 %v2025, %v2021
        %v2222 = vpack.c.bf16 %v2031, %v2027
        %v2223 = vpack.c.bf16 %v2033, %v2029
        %v2224 = vpack.c.bf16 %v2039, %v2035
        %v2225 = vpack.c.bf16 %v2041, %v2037
        %v2226 = vpack.c.bf16 %v2047, %v2043
        %v2227 = vpack.c.bf16 %v2049, %v2045
        %v2228 = vpack.c.bf16 %v2055, %v2051
        %v2229 = vpack.c.bf16 %v2057, %v2053
        %v2230 = vpack.c.bf16 %v2063, %v2059
        %v2231 = vpack.c.bf16 %v2065, %v2061
        %v2232 = vpack.c.bf16 %v2071, %v2067
        %v2233 = vpack.c.bf16 %v2073, %v2069
        %v2234 = vpack.c.bf16 %v2079, %v2075
        %v2235 = vpack.c.bf16 %v2081, %v2077
        %v2236 = vpack.c.bf16 %v2087, %v2083
        %v2237 = vpack.c.bf16 %v2089, %v2085
        %v2238 = vpack.c.bf16 %v2095, %v2091
        %v2239 = vpack.c.bf16 %v2097, %v2093
        %v2240 = vpack.c.bf16 %v2103, %v2099
        %v2241 = vpack.c.bf16 %v2105, %v2101
        %v2242 = vpack.c.bf16 %v2111, %v2107
        %v2243 = vpack.c.bf16 %v2113, %v2109
        %v2244 = vpack.c.bf16 %v2119, %v2115
        %v2245 = vpack.c.bf16 %v2121, %v2117
        %v2246 = vpack.c.bf16 %v2127, %v2123
        %v2247 = vpack.c.bf16 %v2129, %v2125
        %v2248 = vpack.c.bf16 %v2135, %v2131
        %v2249 = vpack.c.bf16 %v2137, %v2133
        %v2250 = vpack.c.bf16 %v2143, %v2139
        %v2251 = vpack.c.bf16 %v2145, %v2141
        %2252 = vmatprep.subr.bf16.mxu0 %v2221
        %2253 = vmatpush1.bf16.msra.mxu0 %v2220
        %2254 = vmatprep.subr.bf16.mxu0 %v2223
        %2255 = vmatpush1.bf16.msra.mxu0 %v2222
        %2256 = vmatprep.subr.bf16.mxu0 %v2225
        %2257 = vmatpush1.bf16.msra.mxu0 %v2224
        %2258 = vmatprep.subr.bf16.mxu0 %v2227
        %2259 = vmatpush1.bf16.msra.mxu0 %v2226
        %2260 = vmatprep.subr.bf16.mxu0 %v2229
        %2261 = vmatpush1.bf16.msra.mxu0 %v2228
        %2262 = vmatprep.subr.bf16.mxu0 %v2231
        %2263 = vmatpush1.bf16.msra.mxu0 %v2230
        %2264 = vmatprep.subr.bf16.mxu0 %v2233
        %2265 = vmatpush1.bf16.msra.mxu0 %v2232
        %2266 = vmatprep.subr.bf16.mxu0 %v2235
        %2267 = vmatpush1.bf16.msra.mxu0 %v2234
        %2268 = vmatprep.subr.bf16.mxu0 %v2237
        %2269 = vmatpush1.bf16.msra.mxu0 %v2236
        %2270 = vmatprep.subr.bf16.mxu0 %v2239
        %2271 = vmatpush1.bf16.msra.mxu0 %v2238
        %2272 = vmatprep.subr.bf16.mxu0 %v2241
        %2273 = vmatpush1.bf16.msra.mxu0 %v2240
        %2274 = vmatprep.subr.bf16.mxu0 %v2243
        %2275 = vmatpush1.bf16.msra.mxu0 %v2242
        %2276 = vmatprep.subr.bf16.mxu0 %v2245
        %2277 = vmatpush1.bf16.msra.mxu0 %v2244
        %2278 = vmatprep.subr.bf16.mxu0 %v2247
        %2279 = vmatpush1.bf16.msra.mxu0 %v2246
        %2280 = vmatprep.subr.bf16.mxu0 %v2249
        %2281 = vmatpush1.bf16.msra.mxu0 %v2248
        %2282 = vmatprep.subr.bf16.mxu0 %v2251
        %2283 = vmatpush1.bf16.msra.mxu0 %v2250
        %2284 = vmatprep.mubr.bf16.mxu0 %v1600
        %2285 = vmatmul.mubr.bf16.gmra.mrb[0].mxu0 %v1599
        %v2286 = vpop.f32.mrb[0].mxu0
        %v2287 = vadd.f32 0.0, %v2286
        %v2288 = vpop.f32.mrb[0].mxu0
        %v2289 = vadd.f32 0.0, %v2288
        %v2290 = vpop.f32.mrb[0].mxu0
        %v2291 = vadd.f32 0.0, %v2290
        %v2292 = vpop.f32.mrb[0].mxu0
        %v2293 = vadd.f32 0.0, %v2292
        %2294 = vmatprep.mubr.bf16.mxu0 %v1602
        %2295 = vmatmul.mubr.bf16.gmra.mrb[0].mxu0 %v1601
        %v2296 = vpop.f32.mrb[0].mxu0
        %v2297 = vadd.f32 0.0, %v2296
        %v2298 = vpop.f32.mrb[0].mxu0
        %v2299 = vadd.f32 0.0, %v2298
        %v2300 = vpop.f32.mrb[0].mxu0
        %v2301 = vadd.f32 0.0, %v2300
        %v2302 = vpop.f32.mrb[0].mxu0
        %v2303 = vadd.f32 0.0, %v2302
        %2304 = vdwg.mxu0
        %v2305 = vrcp.pop %v2182
        %v2306 = vrcp.pop %v2219
        %v2307 = vmul.f32 %v2287, %v2305
        %v2308 = vmul.f32 %v2289, %v2306
        %v2309 = vmul.f32 %v2291, %v2305
        %v2310 = vmul.f32 %v2293, %v2306
        %v2311 = vmul.f32 %v2297, %v2305
        %v2312 = vmul.f32 %v2299, %v2306
        %v2313 = vmul.f32 %v2301, %v2305
        %v2314 = vmul.f32 %v2303, %v2306
        %v2315 = vpack.c.bf16 %v2309, %v2307
        %v2316 = vpack.c.bf16 %v2310, %v2308
        %v2317 = vpack.c.bf16 %v2313, %v2311
        %v2318 = vpack.c.bf16 %v2314, %v2312
        %2319 = vst [vmem:[#allocation2] sm:$0xff] %v2315
        %2320 = vst [vmem:[#allocation2 + $0x8] sm:$0xff] %v2316
        %2321 = vst [vmem:[#allocation2 + $0x10] sm:$0xff] %v2317
        %2322 = vst [vmem:[#allocation2 + $0x18] sm:$0xff] %v2318
        %v2323 = vld [vmem:[#allocation3 + $0x80] sm:$0xff]
        %v2324 = vld [vmem:[#allocation3 + $0x88] sm:$0xff]
        %v2325 = vld [vmem:[#allocation3 + $0x90] sm:$0xff]
        %v2326 = vld [vmem:[#allocation3 + $0x98] sm:$0xff]
        %v2327 = vld [vmem:[#allocation3 + $0xa0] sm:$0xff]
        %v2328 = vld [vmem:[#allocation3 + $0xa8] sm:$0xff]
        %v2329 = vld [vmem:[#allocation3 + $0xb0] sm:$0xff]
        %v2330 = vld [vmem:[#allocation3 + $0xb8] sm:$0xff]
        %v2331 = vld [vmem:[#allocation3 + $0x60] sm:$0xff]
        %v2332 = vld [vmem:[#allocation3 + $0x68] sm:$0xff]
        %v2333 = vld [vmem:[#allocation3 + $0x70] sm:$0xff]
        %v2334 = vld [vmem:[#allocation3 + $0x78] sm:$0xff]
        %2335 = vxpose.xlu0.c.b16.start [1/8] %v2323, 128
        %2336 = vxpose.xlu0.c.b16.cont [2/8] %v2325, 128
        %2337 = vxpose.xlu0.c.b16.cont [3/8] 0, 128
        %2338 = vxpose.xlu0.c.b16.cont [4/8] 0, 128
        %2339 = vxpose.xlu0.c.b16.cont [5/8] 0, 128
        %2340 = vxpose.xlu0.c.b16.cont [6/8] 0, 128
        %2341 = vxpose.xlu0.c.b16.cont [7/8] 0, 128
        %2342 = vxpose.xlu0.c.b16.end [8/8] 0, 128
        %v2343 = vpop.trf.xlu0
        %v2344 = vpop.trf.xlu0
        %v2345 = vpop.trf.xlu0
        %v2346 = vpop.trf.xlu0
        %v2347 = vpop.trf.xlu0
        %v2348 = vpop.trf.xlu0
        %v2349 = vpop.trf.xlu0
        %v2350 = vpop.trf.xlu0
        %2351 = vxpose.xlu0.c.b16.start [1/8] %v2324, 128
        %2352 = vxpose.xlu0.c.b16.cont [2/8] %v2326, 128
        %2353 = vxpose.xlu0.c.b16.cont [3/8] 0, 128
        %2354 = vxpose.xlu0.c.b16.cont [4/8] 0, 128
        %2355 = vxpose.xlu0.c.b16.cont [5/8] 0, 128
        %2356 = vxpose.xlu0.c.b16.cont [6/8] 0, 128
        %2357 = vxpose.xlu0.c.b16.cont [7/8] 0, 128
        %2358 = vxpose.xlu0.c.b16.end [8/8] 0, 128
        %v2359 = vpop.trf.xlu0
        %v2360 = vpop.trf.xlu0
        %v2361 = vpop.trf.xlu0
        %v2362 = vpop.trf.xlu0
        %v2363 = vpop.trf.xlu0
        %v2364 = vpop.trf.xlu0
        %v2365 = vpop.trf.xlu0
        %v2366 = vpop.trf.xlu0
        %v2368 = vsel %vm522, %v2343, 0
        %v2371 = vsel %vm522, %v2344, 0
        %v2374 = vsel %vm522, %v2345, 0
        %v2377 = vsel %vm522, %v2346, 0
        %v2380 = vsel %vm522, %v2347, 0
        %v2383 = vsel %vm522, %v2348, 0
        %v2386 = vsel %vm522, %v2349, 0
        %v2389 = vsel %vm522, %v2350, 0
        %v2392 = vsel %vm522, %v2359, 0
        %v2395 = vsel %vm522, %v2360, 0
        %v2398 = vsel %vm522, %v2361, 0
        %v2401 = vsel %vm522, %v2362, 0
        %v2404 = vsel %vm522, %v2363, 0
        %v2407 = vsel %vm522, %v2364, 0
        %v2410 = vsel %vm522, %v2365, 0
        %v2413 = vsel %vm522, %v2366, 0
        %2415 = vmatprep.subr.bf16.mxu0 %v2332
        %2416 = vmatpush1.bf16.msra.mxu0 %v2331
        %2417 = vmatprep.subr.bf16.mxu0 %v2334
        %2418 = vmatpush1.bf16.msra.mxu0 %v2333
        %2419 = vmatprep.subr.bf16.mxu0 0
        %2420 = vmatpush1.bf16.msra.mxu0 0
        %2421 = vmatprep.subr.bf16.mxu0 0
        %2422 = vmatpush1.bf16.msra.mxu0 0
        %2423 = vmatprep.subr.bf16.mxu0 0
        %2424 = vmatpush1.bf16.msra.mxu0 0
        %2425 = vmatprep.subr.bf16.mxu0 0
        %2426 = vmatpush1.bf16.msra.mxu0 0
        %2427 = vmatprep.subr.bf16.mxu0 0
        %2428 = vmatpush1.bf16.msra.mxu0 0
        %2429 = vmatprep.subr.bf16.mxu0 0
        %2430 = vmatpush1.bf16.msra.mxu0 0
        %2431 = vmatprep.subr.bf16.mxu0 0
        %2432 = vmatpush1.bf16.msra.mxu0 0
        %2433 = vmatprep.subr.bf16.mxu0 0
        %2434 = vmatpush1.bf16.msra.mxu0 0
        %2435 = vmatprep.subr.bf16.mxu0 0
        %2436 = vmatpush1.bf16.msra.mxu0 0
        %2437 = vmatprep.subr.bf16.mxu0 0
        %2438 = vmatpush1.bf16.msra.mxu0 0
        %2439 = vmatprep.subr.bf16.mxu0 0
        %2440 = vmatpush1.bf16.msra.mxu0 0
        %2441 = vmatprep.subr.bf16.mxu0 0
        %2442 = vmatpush1.bf16.msra.mxu0 0
        %2443 = vmatprep.subr.bf16.mxu0 0
        %2444 = vmatpush1.bf16.msra.mxu0 0
        %2445 = vmatprep.subr.bf16.mxu0 0
        %2446 = vmatpush1.bf16.msra.mxu0 0
        %2447 = vmatprep.mubr.bf16.mxu0 0
        %2448 = vmatmul.mubr.bf16.gmra.mrb[0].mxu0 %v2368
        %v2449 = vpop.f32.mrb[0].mxu0
        %v2450 = vadd.f32 0.0, %v2449
        %v2451 = vpop.f32.mrb[0].mxu0
        %v2452 = vadd.f32 0.0, %v2451
        %v2453 = vpop.f32.mrb[0].mxu0
        %v2454 = vadd.f32 0.0, %v2453
        %v2455 = vpop.f32.mrb[0].mxu0
        %v2456 = vadd.f32 0.0, %v2455
        %2457 = vmatprep.mubr.bf16.mxu0 0
        %2458 = vmatmul.mubr.bf16.gmra.mrb[0].mxu0 %v2371
        %v2459 = vpop.f32.mrb[0].mxu0
        %v2460 = vadd.f32 0.0, %v2459
        %v2461 = vpop.f32.mrb[0].mxu0
        %v2462 = vadd.f32 0.0, %v2461
        %v2463 = vpop.f32.mrb[0].mxu0
        %v2464 = vadd.f32 0.0, %v2463
        %v2465 = vpop.f32.mrb[0].mxu0
        %v2466 = vadd.f32 0.0, %v2465
        %2467 = vmatprep.mubr.bf16.mxu0 0
        %2468 = vmatmul.mubr.bf16.gmra.mrb[0].mxu0 %v2374
        %v2469 = vpop.f32.mrb[0].mxu0
        %v2470 = vadd.f32 0.0, %v2469
        %v2471 = vpop.f32.mrb[0].mxu0
        %v2472 = vadd.f32 0.0, %v2471
        %v2473 = vpop.f32.mrb[0].mxu0
        %v2474 = vadd.f32 0.0, %v2473
        %v2475 = vpop.f32.mrb[0].mxu0
        %v2476 = vadd.f32 0.0, %v2475
        %2477 = vmatprep.mubr.bf16.mxu0 0
        %2478 = vmatmul.mubr.bf16.gmra.mrb[0].mxu0 %v2377
        %v2479 = vpop.f32.mrb[0].mxu0
        %v2480 = vadd.f32 0.0, %v2479
        %v2481 = vpop.f32.mrb[0].mxu0
        %v2482 = vadd.f32 0.0, %v2481
        %v2483 = vpop.f32.mrb[0].mxu0
        %v2484 = vadd.f32 0.0, %v2483
        %v2485 = vpop.f32.mrb[0].mxu0
        %v2486 = vadd.f32 0.0, %v2485
        %2487 = vmatprep.mubr.bf16.mxu0 0
        %2488 = vmatmul.mubr.bf16.gmra.mrb[0].mxu0 %v2380
        %v2489 = vpop.f32.mrb[0].mxu0
        %v2490 = vadd.f32 0.0, %v2489
        %v2491 = vpop.f32.mrb[0].mxu0
        %v2492 = vadd.f32 0.0, %v2491
        %v2493 = vpop.f32.mrb[0].mxu0
        %v2494 = vadd.f32 0.0, %v2493
        %v2495 = vpop.f32.mrb[0].mxu0
        %v2496 = vadd.f32 0.0, %v2495
        %2497 = vmatprep.mubr.bf16.mxu0 0
        %2498 = vmatmul.mubr.bf16.gmra.mrb[0].mxu0 %v2383
        %v2499 = vpop.f32.mrb[0].mxu0
        %v2500 = vadd.f32 0.0, %v2499
        %v2501 = vpop.f32.mrb[0].mxu0
        %v2502 = vadd.f32 0.0, %v2501
        %v2503 = vpop.f32.mrb[0].mxu0
        %v2504 = vadd.f32 0.0, %v2503
        %v2505 = vpop.f32.mrb[0].mxu0
        %v2506 = vadd.f32 0.0, %v2505
        %2507 = vmatprep.mubr.bf16.mxu0 0
        %2508 = vmatmul.mubr.bf16.gmra.mrb[0].mxu0 %v2386
        %v2509 = vpop.f32.mrb[0].mxu0
        %v2510 = vadd.f32 0.0, %v2509
        %v2511 = vpop.f32.mrb[0].mxu0
        %v2512 = vadd.f32 0.0, %v2511
        %v2513 = vpop.f32.mrb[0].mxu0
        %v2514 = vadd.f32 0.0, %v2513
        %v2515 = vpop.f32.mrb[0].mxu0
        %v2516 = vadd.f32 0.0, %v2515
        %2517 = vmatprep.mubr.bf16.mxu0 0
        %2518 = vmatmul.mubr.bf16.gmra.mrb[0].mxu0 %v2389
        %v2519 = vpop.f32.mrb[0].mxu0
        %v2520 = vadd.f32 0.0, %v2519
        %v2521 = vpop.f32.mrb[0].mxu0
        %v2522 = vadd.f32 0.0, %v2521
        %v2523 = vpop.f32.mrb[0].mxu0
        %v2524 = vadd.f32 0.0, %v2523
        %v2525 = vpop.f32.mrb[0].mxu0
        %v2526 = vadd.f32 0.0, %v2525
        %2527 = vmatprep.mubr.bf16.mxu0 0
        %2528 = vmatmul.mubr.bf16.gmra.mrb[0].mxu0 %v2392
        %v2529 = vpop.f32.mrb[0].mxu0
        %v2530 = vadd.f32 0.0, %v2529
        %v2531 = vpop.f32.mrb[0].mxu0
        %v2532 = vadd.f32 0.0, %v2531
        %v2533 = vpop.f32.mrb[0].mxu0
        %v2534 = vadd.f32 0.0, %v2533
        %v2535 = vpop.f32.mrb[0].mxu0
        %v2536 = vadd.f32 0.0, %v2535
        %2537 = vmatprep.mubr.bf16.mxu0 0
        %2538 = vmatmul.mubr.bf16.gmra.mrb[0].mxu0 %v2395
        %v2539 = vpop.f32.mrb[0].mxu0
        %v2540 = vadd.f32 0.0, %v2539
        %v2541 = vpop.f32.mrb[0].mxu0
        %v2542 = vadd.f32 0.0, %v2541
        %v2543 = vpop.f32.mrb[0].mxu0
        %v2544 = vadd.f32 0.0, %v2543
        %v2545 = vpop.f32.mrb[0].mxu0
        %v2546 = vadd.f32 0.0, %v2545
        %2547 = vmatprep.mubr.bf16.mxu0 0
        %2548 = vmatmul.mubr.bf16.gmra.mrb[0].mxu0 %v2398
        %v2549 = vpop.f32.mrb[0].mxu0
        %v2550 = vadd.f32 0.0, %v2549
        %v2551 = vpop.f32.mrb[0].mxu0
        %v2552 = vadd.f32 0.0, %v2551
        %v2553 = vpop.f32.mrb[0].mxu0
        %v2554 = vadd.f32 0.0, %v2553
        %v2555 = vpop.f32.mrb[0].mxu0
        %v2556 = vadd.f32 0.0, %v2555
        %2557 = vmatprep.mubr.bf16.mxu0 0
        %2558 = vmatmul.mubr.bf16.gmra.mrb[0].mxu0 %v2401
        %v2559 = vpop.f32.mrb[0].mxu0
        %v2560 = vadd.f32 0.0, %v2559
        %v2561 = vpop.f32.mrb[0].mxu0
        %v2562 = vadd.f32 0.0, %v2561
        %v2563 = vpop.f32.mrb[0].mxu0
        %v2564 = vadd.f32 0.0, %v2563
        %v2565 = vpop.f32.mrb[0].mxu0
        %v2566 = vadd.f32 0.0, %v2565
        %2567 = vmatprep.mubr.bf16.mxu0 0
        %2568 = vmatmul.mubr.bf16.gmra.mrb[0].mxu0 %v2404
        %v2569 = vpop.f32.mrb[0].mxu0
        %v2570 = vadd.f32 0.0, %v2569
        %v2571 = vpop.f32.mrb[0].mxu0
        %v2572 = vadd.f32 0.0, %v2571
        %v2573 = vpop.f32.mrb[0].mxu0
        %v2574 = vadd.f32 0.0, %v2573
        %v2575 = vpop.f32.mrb[0].mxu0
        %v2576 = vadd.f32 0.0, %v2575
        %2577 = vmatprep.mubr.bf16.mxu0 0
        %2578 = vmatmul.mubr.bf16.gmra.mrb[0].mxu0 %v2407
        %v2579 = vpop.f32.mrb[0].mxu0
        %v2580 = vadd.f32 0.0, %v2579
        %v2581 = vpop.f32.mrb[0].mxu0
        %v2582 = vadd.f32 0.0, %v2581
        %v2583 = vpop.f32.mrb[0].mxu0
        %v2584 = vadd.f32 0.0, %v2583
        %v2585 = vpop.f32.mrb[0].mxu0
        %v2586 = vadd.f32 0.0, %v2585
        %2587 = vmatprep.mubr.bf16.mxu0 0
        %2588 = vmatmul.mubr.bf16.gmra.mrb[0].mxu0 %v2410
        %v2589 = vpop.f32.mrb[0].mxu0
        %v2590 = vadd.f32 0.0, %v2589
        %v2591 = vpop.f32.mrb[0].mxu0
        %v2592 = vadd.f32 0.0, %v2591
        %v2593 = vpop.f32.mrb[0].mxu0
        %v2594 = vadd.f32 0.0, %v2593
        %v2595 = vpop.f32.mrb[0].mxu0
        %v2596 = vadd.f32 0.0, %v2595
        %2597 = vmatprep.mubr.bf16.mxu0 0
        %2598 = vmatmul.mubr.bf16.gmra.mrb[0].mxu0 %v2413
        %v2599 = vpop.f32.mrb[0].mxu0
        %v2600 = vadd.f32 0.0, %v2599
        %v2601 = vpop.f32.mrb[0].mxu0
        %v2602 = vadd.f32 0.0, %v2601
        %v2603 = vpop.f32.mrb[0].mxu0
        %v2604 = vadd.f32 0.0, %v2603
        %v2605 = vpop.f32.mrb[0].mxu0
        %v2606 = vadd.f32 0.0, %v2605
        %2607 = vdwg.mxu0
        %v2608 = vmax.f32 %v2450, %v2460
        %v2609 = vmax.f32 %v2454, %v2464
        %v2610 = vmax.f32 %v2608, %v2470
        %v2611 = vmax.f32 %v2609, %v2474
        %v2612 = vmax.f32 %v2610, %v2480
        %v2613 = vmax.f32 %v2611, %v2484
        %v2614 = vmax.f32 %v2612, %v2490
        %v2615 = vmax.f32 %v2613, %v2494
        %v2616 = vmax.f32 %v2614, %v2500
        %v2617 = vmax.f32 %v2615, %v2504
        %v2618 = vmax.f32 %v2616, %v2510
        %v2619 = vmax.f32 %v2617, %v2514
        %v2620 = vmax.f32 %v2618, %v2520
        %v2621 = vmax.f32 %v2619, %v2524
        %v2622 = vmax.f32 %v2620, %v2530
        %v2623 = vmax.f32 %v2621, %v2534
        %v2624 = vmax.f32 %v2622, %v2540
        %v2625 = vmax.f32 %v2623, %v2544
        %v2626 = vmax.f32 %v2624, %v2550
        %v2627 = vmax.f32 %v2625, %v2554
        %v2628 = vmax.f32 %v2626, %v2560
        %v2629 = vmax.f32 %v2627, %v2564
        %v2630 = vmax.f32 %v2628, %v2570
        %v2631 = vmax.f32 %v2629, %v2574
        %v2632 = vmax.f32 %v2630, %v2580
        %v2633 = vmax.f32 %v2631, %v2584
        %v2634 = vmax.f32 %v2632, %v2590
        %v2635 = vmax.f32 %v2633, %v2594
        %v2636 = vmax.f32 %v2634, %v2600
        %v2637 = vmax.f32 %v2635, %v2604
        %v2638 = vmax.f32 %v2636, %v2637
        %v2639 = vrot.slane %v2638, 4
        %v2640 = vmax.f32 %v2638, %v2639
        %v2641 = vrot.slane %v2640, 2
        %v2642 = vmax.f32 %v2640, %v2641
        %v2643 = vrot.slane %v2642, 1
        %v2644 = vmax.f32 %v2642, %v2643
        %v2645 = vmax.f32 %v2452, %v2462
        %v2646 = vmax.f32 %v2456, %v2466
        %v2647 = vmax.f32 %v2645, %v2472
        %v2648 = vmax.f32 %v2646, %v2476
        %v2649 = vmax.f32 %v2647, %v2482
        %v2650 = vmax.f32 %v2648, %v2486
        %v2651 = vmax.f32 %v2649, %v2492
        %v2652 = vmax.f32 %v2650, %v2496
        %v2653 = vmax.f32 %v2651, %v2502
        %v2654 = vmax.f32 %v2652, %v2506
        %v2655 = vmax.f32 %v2653, %v2512
        %v2656 = vmax.f32 %v2654, %v2516
        %v2657 = vmax.f32 %v2655, %v2522
        %v2658 = vmax.f32 %v2656, %v2526
        %v2659 = vmax.f32 %v2657, %v2532
        %v2660 = vmax.f32 %v2658, %v2536
        %v2661 = vmax.f32 %v2659, %v2542
        %v2662 = vmax.f32 %v2660, %v2546
        %v2663 = vmax.f32 %v2661, %v2552
        %v2664 = vmax.f32 %v2662, %v2556
        %v2665 = vmax.f32 %v2663, %v2562
        %v2666 = vmax.f32 %v2664, %v2566
        %v2667 = vmax.f32 %v2665, %v2572
        %v2668 = vmax.f32 %v2666, %v2576
        %v2669 = vmax.f32 %v2667, %v2582
        %v2670 = vmax.f32 %v2668, %v2586
        %v2671 = vmax.f32 %v2669, %v2592
        %v2672 = vmax.f32 %v2670, %v2596
        %v2673 = vmax.f32 %v2671, %v2602
        %v2674 = vmax.f32 %v2672, %v2606
        %v2675 = vmax.f32 %v2673, %v2674
        %v2676 = vrot.slane %v2675, 4
        %v2677 = vmax.f32 %v2675, %v2676
        %v2678 = vrot.slane %v2677, 2
        %v2679 = vmax.f32 %v2677, %v2678
        %v2680 = vrot.slane %v2679, 1
        %v2681 = vmax.f32 %v2679, %v2680
        %v2682 = vsub.f32 %v2450, %v2644
        %v2683 = vsub.f32 %v2452, %v2681
        %v2684 = vsub.f32 %v2454, %v2644
        %v2685 = vsub.f32 %v2456, %v2681
        %v2686 = vsub.f32 %v2460, %v2644
        %v2687 = vsub.f32 %v2462, %v2681
        %v2688 = vsub.f32 %v2464, %v2644
        %v2689 = vsub.f32 %v2466, %v2681
        %v2690 = vsub.f32 %v2470, %v2644
        %v2691 = vsub.f32 %v2472, %v2681
        %v2692 = vsub.f32 %v2474, %v2644
        %v2693 = vsub.f32 %v2476, %v2681
        %v2694 = vsub.f32 %v2480, %v2644
        %v2695 = vsub.f32 %v2482, %v2681
        %v2696 = vsub.f32 %v2484, %v2644
        %v2697 = vsub.f32 %v2486, %v2681
        %v2698 = vsub.f32 %v2490, %v2644
        %v2699 = vsub.f32 %v2492, %v2681
        %v2700 = vsub.f32 %v2494, %v2644
        %v2701 = vsub.f32 %v2496, %v2681
        %v2702 = vsub.f32 %v2500, %v2644
        %v2703 = vsub.f32 %v2502, %v2681
        %v2704 = vsub.f32 %v2504, %v2644
        %v2705 = vsub.f32 %v2506, %v2681
        %v2706 = vsub.f32 %v2510, %v2644
        %v2707 = vsub.f32 %v2512, %v2681
        %v2708 = vsub.f32 %v2514, %v2644
        %v2709 = vsub.f32 %v2516, %v2681
        %v2710 = vsub.f32 %v2520, %v2644
        %v2711 = vsub.f32 %v2522, %v2681
        %v2712 = vsub.f32 %v2524, %v2644
        %v2713 = vsub.f32 %v2526, %v2681
        %v2714 = vsub.f32 %v2530, %v2644
        %v2715 = vsub.f32 %v2532, %v2681
        %v2716 = vsub.f32 %v2534, %v2644
        %v2717 = vsub.f32 %v2536, %v2681
        %v2718 = vsub.f32 %v2540, %v2644
        %v2719 = vsub.f32 %v2542, %v2681
        %v2720 = vsub.f32 %v2544, %v2644
        %v2721 = vsub.f32 %v2546, %v2681
        %v2722 = vsub.f32 %v2550, %v2644
        %v2723 = vsub.f32 %v2552, %v2681
        %v2724 = vsub.f32 %v2554, %v2644
        %v2725 = vsub.f32 %v2556, %v2681
        %v2726 = vsub.f32 %v2560, %v2644
        %v2727 = vsub.f32 %v2562, %v2681
        %v2728 = vsub.f32 %v2564, %v2644
        %v2729 = vsub.f32 %v2566, %v2681
        %v2730 = vsub.f32 %v2570, %v2644
        %v2731 = vsub.f32 %v2572, %v2681
        %v2732 = vsub.f32 %v2574, %v2644
        %v2733 = vsub.f32 %v2576, %v2681
        %v2734 = vsub.f32 %v2580, %v2644
        %v2735 = vsub.f32 %v2582, %v2681
        %v2736 = vsub.f32 %v2584, %v2644
        %v2737 = vsub.f32 %v2586, %v2681
        %v2738 = vsub.f32 %v2590, %v2644
        %v2739 = vsub.f32 %v2592, %v2681
        %v2740 = vsub.f32 %v2594, %v2644
        %v2741 = vsub.f32 %v2596, %v2681
        %v2742 = vsub.f32 %v2600, %v2644
        %v2743 = vsub.f32 %v2602, %v2681
        %v2744 = vsub.f32 %v2604, %v2644
        %v2745 = vsub.f32 %v2606, %v2681
        %v2746 = vmul.f32 %v2682, 1.442695
        %v2747 = vpow.pop %v2746
        %v2748 = vmul.f32 %v2683, 1.442695
        %v2749 = vpow.pop %v2748
        %v2750 = vmul.f32 %v2684, 1.442695
        %v2751 = vpow.pop %v2750
        %v2752 = vmul.f32 %v2685, 1.442695
        %v2753 = vpow.pop %v2752
        %v2754 = vmul.f32 %v2686, 1.442695
        %v2755 = vpow.pop %v2754
        %v2756 = vmul.f32 %v2687, 1.442695
        %v2757 = vpow.pop %v2756
        %v2758 = vmul.f32 %v2688, 1.442695
        %v2759 = vpow.pop %v2758
        %v2760 = vmul.f32 %v2689, 1.442695
        %v2761 = vpow.pop %v2760
        %v2762 = vmul.f32 %v2690, 1.442695
        %v2763 = vpow.pop %v2762
        %v2764 = vmul.f32 %v2691, 1.442695
        %v2765 = vpow.pop %v2764
        %v2766 = vmul.f32 %v2692, 1.442695
        %v2767 = vpow.pop %v2766
        %v2768 = vmul.f32 %v2693, 1.442695
        %v2769 = vpow.pop %v2768
        %v2770 = vmul.f32 %v2694, 1.442695
        %v2771 = vpow.pop %v2770
        %v2772 = vmul.f32 %v2695, 1.442695
        %v2773 = vpow.pop %v2772
        %v2774 = vmul.f32 %v2696, 1.442695
        %v2775 = vpow.pop %v2774
        %v2776 = vmul.f32 %v2697, 1.442695
        %v2777 = vpow.pop %v2776
        %v2778 = vmul.f32 %v2698, 1.442695
        %v2779 = vpow.pop %v2778
        %v2780 = vmul.f32 %v2699, 1.442695
        %v2781 = vpow.pop %v2780
        %v2782 = vmul.f32 %v2700, 1.442695
        %v2783 = vpow.pop %v2782
        %v2784 = vmul.f32 %v2701, 1.442695
        %v2785 = vpow.pop %v2784
        %v2786 = vmul.f32 %v2702, 1.442695
        %v2787 = vpow.pop %v2786
        %v2788 = vmul.f32 %v2703, 1.442695
        %v2789 = vpow.pop %v2788
        %v2790 = vmul.f32 %v2704, 1.442695
        %v2791 = vpow.pop %v2790
        %v2792 = vmul.f32 %v2705, 1.442695
        %v2793 = vpow.pop %v2792
        %v2794 = vmul.f32 %v2706, 1.442695
        %v2795 = vpow.pop %v2794
        %v2796 = vmul.f32 %v2707, 1.442695
        %v2797 = vpow.pop %v2796
        %v2798 = vmul.f32 %v2708, 1.442695
        %v2799 = vpow.pop %v2798
        %v2800 = vmul.f32 %v2709, 1.442695
        %v2801 = vpow.pop %v2800
        %v2802 = vmul.f32 %v2710, 1.442695
        %v2803 = vpow.pop %v2802
        %v2804 = vmul.f32 %v2711, 1.442695
        %v2805 = vpow.pop %v2804
        %v2806 = vmul.f32 %v2712, 1.442695
        %v2807 = vpow.pop %v2806
        %v2808 = vmul.f32 %v2713, 1.442695
        %v2809 = vpow.pop %v2808
        %v2810 = vmul.f32 %v2714, 1.442695
        %v2811 = vpow.pop %v2810
        %v2812 = vmul.f32 %v2715, 1.442695
        %v2813 = vpow.pop %v2812
        %v2814 = vmul.f32 %v2716, 1.442695
        %v2815 = vpow.pop %v2814
        %v2816 = vmul.f32 %v2717, 1.442695
        %v2817 = vpow.pop %v2816
        %v2818 = vmul.f32 %v2718, 1.442695
        %v2819 = vpow.pop %v2818
        %v2820 = vmul.f32 %v2719, 1.442695
        %v2821 = vpow.pop %v2820
        %v2822 = vmul.f32 %v2720, 1.442695
        %v2823 = vpow.pop %v2822
        %v2824 = vmul.f32 %v2721, 1.442695
        %v2825 = vpow.pop %v2824
        %v2826 = vmul.f32 %v2722, 1.442695
        %v2827 = vpow.pop %v2826
        %v2828 = vmul.f32 %v2723, 1.442695
        %v2829 = vpow.pop %v2828
        %v2830 = vmul.f32 %v2724, 1.442695
        %v2831 = vpow.pop %v2830
        %v2832 = vmul.f32 %v2725, 1.442695
        %v2833 = vpow.pop %v2832
        %v2834 = vmul.f32 %v2726, 1.442695
        %v2835 = vpow.pop %v2834
        %v2836 = vmul.f32 %v2727, 1.442695
        %v2837 = vpow.pop %v2836
        %v2838 = vmul.f32 %v2728, 1.442695
        %v2839 = vpow.pop %v2838
        %v2840 = vmul.f32 %v2729, 1.442695
        %v2841 = vpow.pop %v2840
        %v2842 = vmul.f32 %v2730, 1.442695
        %v2843 = vpow.pop %v2842
        %v2844 = vmul.f32 %v2731, 1.442695
        %v2845 = vpow.pop %v2844
        %v2846 = vmul.f32 %v2732, 1.442695
        %v2847 = vpow.pop %v2846
        %v2848 = vmul.f32 %v2733, 1.442695
        %v2849 = vpow.pop %v2848
        %v2850 = vmul.f32 %v2734, 1.442695
        %v2851 = vpow.pop %v2850
        %v2852 = vmul.f32 %v2735, 1.442695
        %v2853 = vpow.pop %v2852
        %v2854 = vmul.f32 %v2736, 1.442695
        %v2855 = vpow.pop %v2854
        %v2856 = vmul.f32 %v2737, 1.442695
        %v2857 = vpow.pop %v2856
        %v2858 = vmul.f32 %v2738, 1.442695
        %v2859 = vpow.pop %v2858
        %v2860 = vmul.f32 %v2739, 1.442695
        %v2861 = vpow.pop %v2860
        %v2862 = vmul.f32 %v2740, 1.442695
        %v2863 = vpow.pop %v2862
        %v2864 = vmul.f32 %v2741, 1.442695
        %v2865 = vpow.pop %v2864
        %v2866 = vmul.f32 %v2742, 1.442695
        %v2867 = vpow.pop %v2866
        %v2868 = vmul.f32 %v2743, 1.442695
        %v2869 = vpow.pop %v2868
        %v2870 = vmul.f32 %v2744, 1.442695
        %v2871 = vpow.pop %v2870
        %v2872 = vmul.f32 %v2745, 1.442695
        %v2873 = vpow.pop %v2872
        %v2874 = vadd.f32 %v2747, %v2751
        %v2875 = vadd.f32 %v2874, %v2755
        %v2876 = vadd.f32 %v2875, %v2759
        %v2877 = vadd.f32 %v2876, %v2763
        %v2878 = vadd.f32 %v2877, %v2767
        %v2879 = vadd.f32 %v2878, %v2771
        %v2880 = vadd.f32 %v2879, %v2775
        %v2881 = vadd.f32 %v2880, %v2779
        %v2882 = vadd.f32 %v2881, %v2783
        %v2883 = vadd.f32 %v2882, %v2787
        %v2884 = vadd.f32 %v2883, %v2791
        %v2885 = vadd.f32 %v2884, %v2795
        %v2886 = vadd.f32 %v2885, %v2799
        %v2887 = vadd.f32 %v2886, %v2803
        %v2888 = vadd.f32 %v2887, %v2807
        %v2889 = vadd.f32 %v2888, %v2811
        %v2890 = vadd.f32 %v2889, %v2815
        %v2891 = vadd.f32 %v2890, %v2819
        %v2892 = vadd.f32 %v2891, %v2823
        %v2893 = vadd.f32 %v2892, %v2827
        %v2894 = vadd.f32 %v2893, %v2831
        %v2895 = vadd.f32 %v2894, %v2835
        %v2896 = vadd.f32 %v2895, %v2839
        %v2897 = vadd.f32 %v2896, %v2843
        %v2898 = vadd.f32 %v2897, %v2847
        %v2899 = vadd.f32 %v2898, %v2851
        %v2900 = vadd.f32 %v2899, %v2855
        %v2901 = vadd.f32 %v2900, %v2859
        %v2902 = vadd.f32 %v2901, %v2863
        %v2903 = vadd.f32 %v2902, %v2867
        %v2904 = vadd.f32 %v2903, %v2871
        %v2905 = vrot.slane %v2904, 4
        %v2906 = vadd.f32 %v2904, %v2905
        %v2907 = vrot.slane %v2906, 2
        %v2908 = vadd.f32 %v2906, %v2907
        %v2909 = vrot.slane %v2908, 1
        %v2910 = vadd.f32 %v2908, %v2909
        %v2911 = vadd.f32 %v2749, %v2753
        %v2912 = vadd.f32 %v2911, %v2757
        %v2913 = vadd.f32 %v2912, %v2761
        %v2914 = vadd.f32 %v2913, %v2765
        %v2915 = vadd.f32 %v2914, %v2769
        %v2916 = vadd.f32 %v2915, %v2773
        %v2917 = vadd.f32 %v2916, %v2777
        %v2918 = vadd.f32 %v2917, %v2781
        %v2919 = vadd.f32 %v2918, %v2785
        %v2920 = vadd.f32 %v2919, %v2789
        %v2921 = vadd.f32 %v2920, %v2793
        %v2922 = vadd.f32 %v2921, %v2797
        %v2923 = vadd.f32 %v2922, %v2801
        %v2924 = vadd.f32 %v2923, %v2805
        %v2925 = vadd.f32 %v2924, %v2809
        %v2926 = vadd.f32 %v2925, %v2813
        %v2927 = vadd.f32 %v2926, %v2817
        %v2928 = vadd.f32 %v2927, %v2821
        %v2929 = vadd.f32 %v2928, %v2825
        %v2930 = vadd.f32 %v2929, %v2829
        %v2931 = vadd.f32 %v2930, %v2833
        %v2932 = vadd.f32 %v2931, %v2837
        %v2933 = vadd.f32 %v2932, %v2841
        %v2934 = vadd.f32 %v2933, %v2845
        %v2935 = vadd.f32 %v2934, %v2849
        %v2936 = vadd.f32 %v2935, %v2853
        %v2937 = vadd.f32 %v2936, %v2857
        %v2938 = vadd.f32 %v2937, %v2861
        %v2939 = vadd.f32 %v2938, %v2865
        %v2940 = vadd.f32 %v2939, %v2869
        %v2941 = vadd.f32 %v2940, %v2873
        %v2942 = vrot.slane %v2941, 4
        %v2943 = vadd.f32 %v2941, %v2942
        %v2944 = vrot.slane %v2943, 2
        %v2945 = vadd.f32 %v2943, %v2944
        %v2946 = vrot.slane %v2945, 1
        %v2947 = vadd.f32 %v2945, %v2946
        %v2948 = vpack.c.bf16 %v2751, %v2747
        %v2949 = vpack.c.bf16 %v2753, %v2749
        %v2950 = vpack.c.bf16 %v2759, %v2755
        %v2951 = vpack.c.bf16 %v2761, %v2757
        %v2952 = vpack.c.bf16 %v2767, %v2763
        %v2953 = vpack.c.bf16 %v2769, %v2765
        %v2954 = vpack.c.bf16 %v2775, %v2771
        %v2955 = vpack.c.bf16 %v2777, %v2773
        %v2956 = vpack.c.bf16 %v2783, %v2779
        %v2957 = vpack.c.bf16 %v2785, %v2781
        %v2958 = vpack.c.bf16 %v2791, %v2787
        %v2959 = vpack.c.bf16 %v2793, %v2789
        %v2960 = vpack.c.bf16 %v2799, %v2795
        %v2961 = vpack.c.bf16 %v2801, %v2797
        %v2962 = vpack.c.bf16 %v2807, %v2803
        %v2963 = vpack.c.bf16 %v2809, %v2805
        %v2964 = vpack.c.bf16 %v2815, %v2811
        %v2965 = vpack.c.bf16 %v2817, %v2813
        %v2966 = vpack.c.bf16 %v2823, %v2819
        %v2967 = vpack.c.bf16 %v2825, %v2821
        %v2968 = vpack.c.bf16 %v2831, %v2827
        %v2969 = vpack.c.bf16 %v2833, %v2829
        %v2970 = vpack.c.bf16 %v2839, %v2835
        %v2971 = vpack.c.bf16 %v2841, %v2837
        %v2972 = vpack.c.bf16 %v2847, %v2843
        %v2973 = vpack.c.bf16 %v2849, %v2845
        %v2974 = vpack.c.bf16 %v2855, %v2851
        %v2975 = vpack.c.bf16 %v2857, %v2853
        %v2976 = vpack.c.bf16 %v2863, %v2859
        %v2977 = vpack.c.bf16 %v2865, %v2861
        %v2978 = vpack.c.bf16 %v2871, %v2867
        %v2979 = vpack.c.bf16 %v2873, %v2869
        %2980 = vmatprep.subr.bf16.mxu0 %v2949
        %2981 = vmatpush1.bf16.msra.mxu0 %v2948
        %2982 = vmatprep.subr.bf16.mxu0 %v2951
        %2983 = vmatpush1.bf16.msra.mxu0 %v2950
        %2984 = vmatprep.subr.bf16.mxu0 %v2953
        %2985 = vmatpush1.bf16.msra.mxu0 %v2952
        %2986 = vmatprep.subr.bf16.mxu0 %v2955
        %2987 = vmatpush1.bf16.msra.mxu0 %v2954
        %2988 = vmatprep.subr.bf16.mxu0 %v2957
        %2989 = vmatpush1.bf16.msra.mxu0 %v2956
        %2990 = vmatprep.subr.bf16.mxu0 %v2959
        %2991 = vmatpush1.bf16.msra.mxu0 %v2958
        %2992 = vmatprep.subr.bf16.mxu0 %v2961
        %2993 = vmatpush1.bf16.msra.mxu0 %v2960
        %2994 = vmatprep.subr.bf16.mxu0 %v2963
        %2995 = vmatpush1.bf16.msra.mxu0 %v2962
        %2996 = vmatprep.subr.bf16.mxu0 %v2965
        %2997 = vmatpush1.bf16.msra.mxu0 %v2964
        %2998 = vmatprep.subr.bf16.mxu0 %v2967
        %2999 = vmatpush1.bf16.msra.mxu0 %v2966
        %3000 = vmatprep.subr.bf16.mxu0 %v2969
        %3001 = vmatpush1.bf16.msra.mxu0 %v2968
        %3002 = vmatprep.subr.bf16.mxu0 %v2971
        %3003 = vmatpush1.bf16.msra.mxu0 %v2970
        %3004 = vmatprep.subr.bf16.mxu0 %v2973
        %3005 = vmatpush1.bf16.msra.mxu0 %v2972
        %3006 = vmatprep.subr.bf16.mxu0 %v2975
        %3007 = vmatpush1.bf16.msra.mxu0 %v2974
        %3008 = vmatprep.subr.bf16.mxu0 %v2977
        %3009 = vmatpush1.bf16.msra.mxu0 %v2976
        %3010 = vmatprep.subr.bf16.mxu0 %v2979
        %3011 = vmatpush1.bf16.msra.mxu0 %v2978
        %3012 = vmatprep.mubr.bf16.mxu0 %v2328
        %3013 = vmatmul.mubr.bf16.gmra.mrb[0].mxu0 %v2327
        %v3014 = vpop.f32.mrb[0].mxu0
        %v3015 = vadd.f32 0.0, %v3014
        %v3016 = vpop.f32.mrb[0].mxu0
        %v3017 = vadd.f32 0.0, %v3016
        %v3018 = vpop.f32.mrb[0].mxu0
        %v3019 = vadd.f32 0.0, %v3018
        %v3020 = vpop.f32.mrb[0].mxu0
        %v3021 = vadd.f32 0.0, %v3020
        %3022 = vmatprep.mubr.bf16.mxu0 %v2330
        %3023 = vmatmul.mubr.bf16.gmra.mrb[0].mxu0 %v2329
        %v3024 = vpop.f32.mrb[0].mxu0
        %v3025 = vadd.f32 0.0, %v3024
        %v3026 = vpop.f32.mrb[0].mxu0
        %v3027 = vadd.f32 0.0, %v3026
        %v3028 = vpop.f32.mrb[0].mxu0
        %v3029 = vadd.f32 0.0, %v3028
        %v3030 = vpop.f32.mrb[0].mxu0
        %v3031 = vadd.f32 0.0, %v3030
        %3032 = vdwg.mxu0
        %v3033 = vrcp.pop %v2910
        %v3034 = vrcp.pop %v2947
        %v3035 = vmul.f32 %v3015, %v3033
        %v3036 = vmul.f32 %v3017, %v3034
        %v3037 = vmul.f32 %v3019, %v3033
        %v3038 = vmul.f32 %v3021, %v3034
        %v3039 = vmul.f32 %v3025, %v3033
        %v3040 = vmul.f32 %v3027, %v3034
        %v3041 = vmul.f32 %v3029, %v3033
        %v3042 = vmul.f32 %v3031, %v3034
        %v3043 = vpack.c.bf16 %v3037, %v3035
        %v3044 = vpack.c.bf16 %v3038, %v3036
        %v3045 = vpack.c.bf16 %v3041, %v3039
        %v3046 = vpack.c.bf16 %v3042, %v3040
        %3047 = vst [vmem:[#allocation2 + $0x20] sm:$0xff] %v3043
        %3048 = vst [vmem:[#allocation2 + $0x28] sm:$0xff] %v3044
        %3049 = vst [vmem:[#allocation2 + $0x30] sm:$0xff] %v3045
        %3050 = vst [vmem:[#allocation2 + $0x38] sm:$0xff] %v3046
        %v3051 = vld [vmem:[%s7] sm:$0xf]
        %v3052 = vld [vmem:[%s7 + $0x4] sm:$0xf]
        %v3053 = vld [vmem:[%s7 + $0x8] sm:$0xf]
        %v3054 = vld [vmem:[%s7 + $0xc] sm:$0xf]
        %v3055 = vld [vmem:[%s7 + $0x10] sm:$0xf]
        %v3056 = vld [vmem:[%s7 + $0x14] sm:$0xf]
        %v3057 = vld [vmem:[%s7 + $0x18] sm:$0xf]
        %v3058 = vld [vmem:[%s7 + $0x1c] sm:$0xf]
        %v3059 = vld [vmem:[#allocation2] sm:$0xff]
        %v3060 = vld [vmem:[#allocation2 + $0x8] sm:$0xff]
        %v3061 = vld [vmem:[#allocation2 + $0x10] sm:$0xff]
        %v3062 = vld [vmem:[#allocation2 + $0x18] sm:$0xff]
        %v3063 = vld [vmem:[#allocation2 + $0x20] sm:$0xff]
        %v3064 = vld [vmem:[#allocation2 + $0x28] sm:$0xff]
        %v3065 = vld [vmem:[#allocation2 + $0x30] sm:$0xff]
        %v3066 = vld [vmem:[#allocation2 + $0x38] sm:$0xff]
        %v3067 = vld [vmem:[%s8] sm:$0xff]
        %v3068 = vld [vmem:[%s8 + $0x8] sm:$0xff]
        %v3069 = vld [vmem:[%s8 + $0x10] sm:$0xff]
        %v3070 = vld [vmem:[%s8 + $0x18] sm:$0xff]
        %v3071 = vld [vmem:[%s8 + $0x20] sm:$0xff]
        %v3072 = vld [vmem:[%s8 + $0x28] sm:$0xff]
        %v3073 = vld [vmem:[%s8 + $0x30] sm:$0xff]
        %v3074 = vld [vmem:[%s8 + $0x38] sm:$0xff]
        %3076 = vset.pattern.permute.xlu0 0
        %3077 = vperm.xlu0 %3076, %v3067
        %v3078 = vpop.permute.xlu0 %3077
        %3081 = vset.pattern.permute.xlu0 0
        %3082 = vperm.xlu0 %3081, %v3068
        %v3083 = vpop.permute.xlu0 %3082
        %3086 = vset.pattern.permute.xlu0 0
        %3087 = vperm.xlu0 %3086, %v3069
        %v3088 = vpop.permute.xlu0 %3087
        %3091 = vset.pattern.permute.xlu0 0
        %3092 = vperm.xlu0 %3091, %v3070
        %v3093 = vpop.permute.xlu0 %3092
        %3096 = vset.pattern.permute.xlu0 0
        %3097 = vperm.xlu0 %3096, %v3071
        %v3098 = vpop.permute.xlu0 %3097
        %3101 = vset.pattern.permute.xlu0 0
        %3102 = vperm.xlu0 %3101, %v3072
        %v3103 = vpop.permute.xlu0 %3102
        %3106 = vset.pattern.permute.xlu0 0
        %3107 = vperm.xlu0 %3106, %v3073
        %v3108 = vpop.permute.xlu0 %3107
        %3111 = vset.pattern.permute.xlu0 0
        %3112 = vperm.xlu0 %3111, %v3074
        %v3113 = vpop.permute.xlu0 %3112
        %v3123 = vunpack.c.l.b16 %v3051
        %v3124 = vunpack.c.l.b16 %v3052
        %v3125 = vunpack.c.l.b16 %v3053
        %v3126 = vunpack.c.l.b16 %v3054
        %v3127 = vunpack.c.l.b16 %v3055
        %v3128 = vunpack.c.l.b16 %v3056
        %v3129 = vunpack.c.l.b16 %v3057
        %v3130 = vunpack.c.l.b16 %v3058
        %v3131 = vpack.c.b16 %v3124, %v3123
        %v3132 = vpack.c.b16 %v3126, %v3125
        %v3133 = vpack.c.b16 %v3128, %v3127
        %v3134 = vpack.c.b16 %v3130, %v3129
        %v3136 = vsel %vm424, %v3131, 0
        %v3139 = vsel %vm424, %v3132, 0
        %v3142 = vsel %vm424, %v3133, 0
        %v3145 = vsel %vm424, %v3134, 0
        %3147 = vmatprep.subr.bf16.mxu0 %v3060
        %3148 = vmatpush1.bf16.msra.mxu0 %v3059
        %3149 = vmatprep.subr.bf16.mxu0 %v3062
        %3150 = vmatpush1.bf16.msra.mxu0 %v3061
        %3151 = vmatprep.subr.bf16.mxu0 %v3064
        %3152 = vmatpush1.bf16.msra.mxu0 %v3063
        %3153 = vmatprep.subr.bf16.mxu0 %v3066
        %3154 = vmatpush1.bf16.msra.mxu0 %v3065
        %3155 = vmatprep.subr.bf16.mxu0 0
        %3156 = vmatpush1.bf16.msra.mxu0 0
        %3157 = vmatprep.subr.bf16.mxu0 0
        %3158 = vmatpush1.bf16.msra.mxu0 0
        %3159 = vmatprep.subr.bf16.mxu0 0
        %3160 = vmatpush1.bf16.msra.mxu0 0
        %3161 = vmatprep.subr.bf16.mxu0 0
        %3162 = vmatpush1.bf16.msra.mxu0 0
        %3163 = vmatprep.subr.bf16.mxu0 0
        %3164 = vmatpush1.bf16.msra.mxu0 0
        %3165 = vmatprep.subr.bf16.mxu0 0
        %3166 = vmatpush1.bf16.msra.mxu0 0
        %3167 = vmatprep.subr.bf16.mxu0 0
        %3168 = vmatpush1.bf16.msra.mxu0 0
        %3169 = vmatprep.subr.bf16.mxu0 0
        %3170 = vmatpush1.bf16.msra.mxu0 0
        %3171 = vmatprep.subr.bf16.mxu0 0
        %3172 = vmatpush1.bf16.msra.mxu0 0
        %3173 = vmatprep.subr.bf16.mxu0 0
        %3174 = vmatpush1.bf16.msra.mxu0 0
        %3175 = vmatprep.subr.bf16.mxu0 0
        %3176 = vmatpush1.bf16.msra.mxu0 0
        %3177 = vmatprep.subr.bf16.mxu0 0
        %3178 = vmatpush1.bf16.msra.mxu0 0
        %3179 = vmatprep.mubr.bf16.mxu0 0
        %3180 = vmatmul.mubr.bf16.gmra.mrb[0].mxu0 %v3136
        %v3181 = vpop.f32.mrb[0].mxu0
        %v3182 = vadd.f32 %v3078, %v3181
        %v3183 = vpop.f32.mrb[0].mxu0
        %v3184 = vadd.f32 %v3078, %v3183
        %v3185 = vpop.f32.mrb[0].mxu0
        %v3186 = vadd.f32 %v3083, %v3185
        %v3187 = vpop.f32.mrb[0].mxu0
        %v3188 = vadd.f32 %v3083, %v3187
        %3189 = vmatprep.mubr.bf16.mxu0 0
        %3190 = vmatmul.mubr.bf16.gmra.mrb[0].mxu0 %v3139
        %v3191 = vpop.f32.mrb[0].mxu0
        %v3192 = vadd.f32 %v3088, %v3191
        %v3193 = vpop.f32.mrb[0].mxu0
        %v3194 = vadd.f32 %v3088, %v3193
        %v3195 = vpop.f32.mrb[0].mxu0
        %v3196 = vadd.f32 %v3093, %v3195
        %v3197 = vpop.f32.mrb[0].mxu0
        %v3198 = vadd.f32 %v3093, %v3197
        %3199 = vmatprep.mubr.bf16.mxu0 0
        %3200 = vmatmul.mubr.bf16.gmra.mrb[0].mxu0 %v3142
        %v3201 = vpop.f32.mrb[0].mxu0
        %v3202 = vadd.f32 %v3098, %v3201
        %v3203 = vpop.f32.mrb[0].mxu0
        %v3204 = vadd.f32 %v3098, %v3203
        %v3205 = vpop.f32.mrb[0].mxu0
        %v3206 = vadd.f32 %v3103, %v3205
        %v3207 = vpop.f32.mrb[0].mxu0
        %v3208 = vadd.f32 %v3103, %v3207
        %3209 = vmatprep.mubr.bf16.mxu0 0
        %3210 = vmatmul.mubr.bf16.gmra.mrb[0].mxu0 %v3145
        %v3211 = vpop.f32.mrb[0].mxu0
        %v3212 = vadd.f32 %v3108, %v3211
        %v3213 = vpop.f32.mrb[0].mxu0
        %v3214 = vadd.f32 %v3108, %v3213
        %v3215 = vpop.f32.mrb[0].mxu0
        %v3216 = vadd.f32 %v3113, %v3215
        %v3217 = vpop.f32.mrb[0].mxu0
        %v3218 = vadd.f32 %v3113, %v3217
        %3219 = vdwg.mxu0
        %v3220 = vadd.f32 %v332, %v3182
        %v3221 = vadd.f32 %v333, %v3184
        %v3222 = vadd.f32 %v334, %v3186
        %v3223 = vadd.f32 %v335, %v3188
        %v3224 = vadd.f32 %v336, %v3192
        %v3225 = vadd.f32 %v337, %v3194
        %v3226 = vadd.f32 %v338, %v3196
        %v3227 = vadd.f32 %v339, %v3198
        %v3228 = vadd.f32 %v340, %v3202
        %v3229 = vadd.f32 %v341, %v3204
        %v3230 = vadd.f32 %v342, %v3206
        %v3231 = vadd.f32 %v343, %v3208
        %v3232 = vadd.f32 %v344, %v3212
        %v3233 = vadd.f32 %v345, %v3214
        %v3234 = vadd.f32 %v346, %v3216
        %v3235 = vadd.f32 %v347, %v3218
        %3236 = vst [vmem:[%s325] sm:$0xff] %v3220
        %3237 = vst [vmem:[%s325 + $0x8] sm:$0xff] %v3221
        %3238 = vst [vmem:[%s325 + $0x10] sm:$0xff] %v3222
        %3239 = vst [vmem:[%s325 + $0x18] sm:$0xff] %v3223
        %3240 = vst [vmem:[%s325 + $0x20] sm:$0xff] %v3224
        %3241 = vst [vmem:[%s325 + $0x28] sm:$0xff] %v3225
        %3242 = vst [vmem:[%s325 + $0x30] sm:$0xff] %v3226
        %3243 = vst [vmem:[%s325 + $0x38] sm:$0xff] %v3227
        %3244 = vst [vmem:[%s325 + $0x40] sm:$0xff] %v3228
        %3245 = vst [vmem:[%s325 + $0x48] sm:$0xff] %v3229
        %3246 = vst [vmem:[%s325 + $0x50] sm:$0xff] %v3230
        %3247 = vst [vmem:[%s325 + $0x58] sm:$0xff] %v3231
        %3248 = vst [vmem:[%s325 + $0x60] sm:$0xff] %v3232
        %3249 = vst [vmem:[%s325 + $0x68] sm:$0xff] %v3233
        %3250 = vst [vmem:[%s325 + $0x70] sm:$0xff] %v3234
        %3251 = vst [vmem:[%s325 + $0x78] sm:$0xff] %v3235
        %s3252 = sand.u32 %s225, 1
        %s3253 = scalar_lea.sflag [#allocation5], %s3252
        %s3254 = sand.u32 %s225, 1
        %s3255 = smul.addr %s3254, 128
        %s3256 = scalar_lea.vmem [#allocation4], %s3255
        // Predicated region
        $region57: #{tpu_custom_call.1} parent=55 // pred_check
          %p3257 = pneg %p235
        $region58: #{tpu_custom_call.1} parent=55 // pred_check_branch
          %3259 = sbr.rel (%p3257) target = $region60
        $region59: #{tpu_custom_call.1} parent=55 // pred_region
          %s3261 = ssub.s32 2048, 2048
          %3262 = vsyncadd %s3253, %s3261
          %s3263 = smul.addr %s23, 16
          %s3264 = smul.addr %s3263, 128
          %s3265 = scalar_lea.hbm %s9, %s3264
          %s3266 = sshll.u32 %s3256, 4
          %s3267 = int_to_ptr.vmem [resolvable:$true] %s3266
          %3272 = dma.vmem_to_hbm [thread:$0]  %s3267, 2048, %s3265, %s3253, 256, 256, 16
        $region60: #{tpu_custom_call.1} parent=55 // pred_fallthru
          _
      $region56: #{tpu_custom_call.1} parent=5 // pred_fallthru
        _
      %p3273 = scmp.le.s32.totalorder 2, %s18
      // Predicated region
      $region61: #{tpu_custom_call.1} parent=5 // pred_check
        %p3274 = pneg %p3273
      $region62: #{tpu_custom_call.1} parent=5 // pred_check_branch
        %3276 = sbr.rel (%p3274) target = $region64
      $region63: #{tpu_custom_call.1} parent=5 // pred_region
        %s3277 = ssub.s32 %s18, 2
        // Predicated region
        $region65: #{tpu_custom_call.1} parent=63 // pred_check
          %p3278 = pneg %p241
        $region66: #{tpu_custom_call.1} parent=63 // pred_check_branch
          %3280 = sbr.rel (%p3278) target = $region68
        $region67: #{tpu_custom_call.1} parent=63 // pred_region
          %s3281 = sand.u32 %s226, 1
          %s3282 = scalar_lea.sflag [#allocation5], %s3281
          %s3283 = sand.u32 %s226, 1
          %s3284 = smul.addr %s3283, 128
          %s3285 = scalar_lea.vmem [#allocation4], %s3284
          %3286 = dma.done %s3282, 2048
        $region68: #{tpu_custom_call.1} parent=63 // pred_fallthru
          _
      $region64: #{tpu_custom_call.1} parent=5 // pred_fallthru
        _
    $region6: #{tpu_custom_call.1} parent=1 // loop_footer
      %s22 = sadd.s32 1, %s18
    $region7: #{tpu_custom_call.1} parent=1 // loop_footer_branch
      %17 = sbr.rel target = $region3
    $region8: #{tpu_custom_call.1} parent=1 // loop_exit
      _
    %3287 = vsyncpa [#allocation5], 1
    %s3288 = scalar_lea.sflag [#allocation5], 1
    %3289 = vsyncpa %s3288, 1

</llo_original>
